<compile_context>
chip_gen: v7x
topology: tpu7x:2x2x1
jax: 0.10.0
libtpu: 0.0.40
codegen_flags: <defaults>
</compile_context>

<pallas_src>
import functools
import numpy as np
import jax
import jax.numpy as jnp
from jax.experimental import pallas as pl
from jax.experimental.pallas import tpu as pltpu


# ------------------------------------------------------------------
# Pallas kernel: fused 4x bilinear upsample + (sigmoid >) threshold
# ------------------------------------------------------------------

def _mask_upsample_kernel(x_ref, wk_ref, o_ref, *, logit_thr):
    # x_ref:  (tm, H*W)          bfloat16 -- raw mask logits, one mask per row
    # wk_ref: (H*W, Hout*Wout)   bfloat16 -- kron(Wh, Ww)^T bilinear matrix (resident)
    # o_ref:  (tm, Hout*Wout)    int8     -- thresholded masks in {0, 1}
    up = jnp.dot(x_ref[...], wk_ref[...], preferred_element_type=jnp.float32)
    o_ref[...] = (up > logit_thr).astype(jnp.int8)


def _pick_tm(M, candidates=(128, 96, 64, 32)):
    """Largest tile (multiple of 32) keeping >=4 grid steps and <=15% padding waste."""
    for tm in candidates:
        steps = -(-M // tm)
        if steps >= 4 and (steps * tm - M) <= 0.15 * steps * tm:
            return tm
    return candidates[-1]


def upsample_threshold(x2d, wk_t, logit_thr, tm=None):
    """x2d: (M, H*W) logits -> (M, Hout*Wout) int8 {0,1} upsampled thresholded masks."""
    M, D = x2d.shape
    Dout = wk_t.shape[1]
    if tm is None:
        tm = _pick_tm(M)
    steps = -(-M // tm)

    weight_bytes = D * Dout * 2          # bf16, single-buffered
    in_bytes = 2 * tm * D * 2            # bf16, double-buffered
    out_bytes = 2 * tm * Dout * 1        # int8, double-buffered
    if weight_bytes > (24 << 20):
        # TODO(synk): dense kron weight grows as (H*W)^2 and exhausts VMEM for masks
        # beyond ~24x24; switch to a separable two-pass (W then H) in-kernel upsample.
        raise NotImplementedError("dense bilinear weight too large for VMEM")
    vmem_limit = int(min(weight_bytes + in_bytes + out_bytes + (8 << 20), 64 << 20))

    cost = pl.CostEstimate(
        flops=2 * steps * tm * D * Dout,
        transcendentals=0,
        bytes_accessed=M * D * 2 + D * Dout * 2 + M * Dout,
    )

    kernel = functools.partial(_mask_upsample_kernel, logit_thr=float(logit_thr))
    return pl.pallas_call(
        kernel,
        out_shape=jax.ShapeDtypeStruct((M, Dout), jnp.int8),
        grid_spec=pltpu.PrefetchScalarGridSpec(
            num_scalar_prefetch=0,
            grid=(steps,),
            in_specs=[
                pl.BlockSpec((tm, D), lambda i: (i, 0)),
                # constant block: no re-DMA; single-buffer the resident weight
                pl.BlockSpec((D, Dout), lambda i: (0, 0),
                             pipeline_mode=pl.Buffered(1)),
            ],
            out_specs=pl.BlockSpec((tm, Dout), lambda i: (i, 0)),
        ),
        compiler_params=pltpu.CompilerParams(
            dimension_semantics=("parallel",),
            vmem_limit_bytes=vmem_limit),
        cost_estimate=cost,
    )(x2d.astype(jnp.bfloat16), wk_t)


# ------------------------------------------------------------------
# Glue (parameter-free setup, gathers, per-image dynamic-size handling)
# ------------------------------------------------------------------

def bilinear_resize_matrix_np(in_size, out_size):
    """PyTorch F.interpolate(mode='bilinear', align_corners=False) as a matrix (numpy)."""
    scale = in_size / out_size
    o = np.arange(out_size, dtype=np.float64)
    src = np.maximum((o + 0.5) * scale - 0.5, 0.0)
    i0 = np.minimum(np.floor(src).astype(np.int64), in_size - 1)
    i1 = np.minimum(i0 + 1, in_size - 1)
    lam = src - i0
    W = np.zeros((out_size, in_size), dtype=np.float32)
    np.add.at(W, (np.arange(out_size), i0), (1.0 - lam).astype(np.float32))
    np.add.at(W, (np.arange(out_size), i1), lam.astype(np.float32))
    return W


@functools.lru_cache(maxsize=8)
def bilinear_kron_bf16(H, W, scale=4):
    """Cached (H*W, Hout*Wout) bf16 kron(Wh, Ww)^T; 4x-bilinear weights are multiples
    of 1/64 and therefore exact in bf16. Device buffer stays alive across calls."""
    wh = bilinear_resize_matrix_np(H, H * scale)                 # (Hout, H)
    ww = bilinear_resize_matrix_np(W, W * scale)                 # (Wout, W)
    wk_t = np.ascontiguousarray(np.kron(wh, ww).T)               # (H*W, Hout*Wout)
    return jnp.asarray(wk_t, dtype=jnp.bfloat16)


def nearest_resize(x, out_h, out_w):
    """PyTorch F.interpolate(mode='nearest') index rule, pure gather."""
    H, W = x.shape[-2], x.shape[-1]
    ys = np.minimum(np.floor(np.arange(out_h) * (H / out_h)).astype(np.int64), H - 1)
    xs = np.minimum(np.floor(np.arange(out_w) * (W / out_w)).astype(np.int64), W - 1)
    return x[..., ys[:, None], xs[None, :]]


def post_process_segm(results, outputs, orig_target_sizes, max_target_sizes,
                      threshold=0.5, topk=100):
    assert len(orig_target_sizes) == len(max_target_sizes)
    assert 0.0 < threshold < 1.0
    out_refs = outputs['reference_points']     # (bs, nq, ref_dim)
    outputs_masks = outputs['pred_masks']      # (bs, nq, num_frames, H, W)
    out_logits = outputs['pred_logits']        # (bs, nq, nc)
    bs, nq, nc = out_logits.shape

    # TODO(synk): torch.topk (sorting) has no clean Pallas TPU equivalent; use lax.top_k glue.
    # sigmoid is strictly monotone -> top_k over raw logits gives identical indices;
    # sigmoid is applied only to the bs*topk kept values (tiny, plain jnp).
    flat_logits = out_logits.reshape(bs, nq * nc)
    topk_logits, topk_indexes = jax.lax.top_k(flat_logits, topk)
    scores = jax.nn.sigmoid(topk_logits)
    topk_boxes = topk_indexes // nc
    labels = topk_indexes % nc

    # gather the top-k queries (glue)
    batch_idx = jnp.arange(bs)[:, None]
    gathered_masks = outputs_masks[batch_idx, topk_boxes]    # (bs, K, F, H, W)
    references = out_refs[batch_idx, topk_boxes]             # (bs, K, ref_dim)

    K = topk
    _, _, num_frames, H, W = gathered_masks.shape
    Hout, Wout = H * 4, W * 4

    wk_t = bilinear_kron_bf16(H, W)                          # cached bf16 device array
    logit_thr = float(np.log(threshold / (1.0 - threshold)))

    flat = gathered_masks.reshape(bs * K * num_frames, H * W)
    up = upsample_threshold(flat, wk_t, logit_thr)           # (M, Hout*Wout) int8 {0,1}
    masks = up.reshape(bs, K, num_frames, Hout, Wout)
    masks = jnp.transpose(masks, (0, 2, 1, 3, 4))            # (bs, F, K, Hout, Wout)

    for i, (cur_mask, t, tt) in enumerate(zip(masks, max_target_sizes, orig_target_sizes)):
        img_h, img_w = int(t[0]), int(t[1])
        results[i]['scores'] = scores[i]
        results[i]['labels'] = labels[i]
        results[i]['reference_points'] = references[i]
        m = cur_mask[:, :, :img_h, :img_w]                   # (F, K, h, w) int8 {0,1}
        # TODO(synk): per-image dynamic output shape -> host-side loop with static sizes.
        m = nearest_resize(m, int(tt[0]), int(tt[1])).astype(jnp.uint8)
        results[i]['masks'] = jnp.transpose(m, (1, 0, 2, 3))  # (K, F, oh, ow)
    return results


# ------------------------------------------------------------------
# Demo
# ------------------------------------------------------------------

if __name__ == "__main__":
    key = jax.random.PRNGKey(0)
    bs, nq, nc, num_frames, H, W, ref_dim = 2, 20, 8, 2, 16, 16, 4
    k1, k2, k3 = jax.random.split(key, 3)

    outputs = {
        'pred_logits': jax.random.normal(k1, (bs, nq, nc), jnp.float32),
        'pred_masks': jax.random.normal(k2, (bs, nq, num_frames, H, W), jnp.float32),
        'reference_points': jax.random.uniform(k3, (bs, nq, ref_dim), jnp.float32),
    }
    max_target_sizes = np.array([[60, 56], [64, 48]], dtype=np.int64)   # <= (4H, 4W)
    orig_target_sizes = np.array([[72, 68], [80, 60]], dtype=np.int64)

    results = [dict() for _ in range(bs)]
    results = post_process_segm(results, outputs, orig_target_sizes, max_target_sizes,
                                threshold=0.5, topk=100)

    for r in results:
        for v in r.values():
            jax.block_until_ready(v)

    # light sanity checks on shapes/dtypes
    assert results[0]['scores'].shape == (100,)
    assert results[0]['labels'].shape == (100,)
    assert results[0]['reference_points'].shape == (100, ref_dim)
    assert results[0]['masks'].shape == (100, num_frames, 72, 68)
    assert results[0]['masks'].dtype == jnp.uint8
    assert results[1]['masks'].shape == (100, num_frames, 80, 60)
    print("KERNEL_OK")
</pallas_src>

<mosaic_0001>
module attributes {stable_mosaic.version = 11 : i64} {
  func.func @_mask_upsample_kernel(%arg0: i32, %arg1: memref<64x256xbf16, #tpu.memory_space<vmem>>, %arg2: memref<256x4096xbf16, #tpu.memory_space<vmem>>, %arg3: memref<64x4096xi8, #tpu.memory_space<vmem>>) attributes {dimension_semantics = [#tpu.dimension_semantics<parallel>], iteration_bounds = array<i64: 7>, scalar_prefetch = 0 : i64, scratch_operands = 0 : i64, tpu.core_type = #tpu.core_type<tc>, window_params = [{transform_indices = @transform_0, window_bounds = array<i64: 64, 256>}, {pipeline_mode = #tpu.pipeline_mode<synchronous>, transform_indices = @transform_1, window_bounds = array<i64: 256, 4096>}, {transform_indices = @transform_2, window_bounds = array<i64: 64, 4096>}]} {
    %c0 = arith.constant 0 : index
    %c0_0 = arith.constant 0 : index
    %0 = vector.load %arg1[%c0, %c0_0] : memref<64x256xbf16, #tpu.memory_space<vmem>>, vector<64x256xbf16>
    %c0_1 = arith.constant 0 : index
    %c0_2 = arith.constant 0 : index
    %1 = vector.load %arg2[%c0_1, %c0_2] : memref<256x4096xbf16, #tpu.memory_space<vmem>>, vector<256x4096xbf16>
    %cst = arith.constant dense<0.000000e+00> : vector<64x4096xf32>
    %2 = tpu.matmul %0, %1, %cst {dimension_numbers = #tpu.dot_dimension_numbers<[1], [0], [0], [1], [0, 0, 1, 1], [], []>} : vector<64x256xbf16>, vector<256x4096xbf16>, vector<64x4096xf32> -> vector<64x4096xf32>
    %cst_3 = arith.constant 0.000000e+00 : f32
    %3 = vector.broadcast %cst_3 : f32 to vector<64x4096xf32>
    %4 = arith.cmpf ogt, %2, %3 : vector<64x4096xf32>
    %5 = arith.extui %4 : vector<64x4096xi1> to vector<64x4096xi8>
    %c0_4 = arith.constant 0 : index
    %c0_5 = arith.constant 0 : index
    %6 = vector.load %arg3[%c0_4, %c0_5] : memref<64x4096xi8, #tpu.memory_space<vmem>>, vector<64x4096xi8>
    tpu.vector_store %arg3[%c0_4, %c0_5], %5 {strides = array<i32>} : memref<64x4096xi8, #tpu.memory_space<vmem>>, vector<64x4096xi8>,
    return
  }
  func.func @transform_0(%arg0: i32) -> (i32, i32) {
    %c0_i32 = arith.constant 0 : i32
    %c0_i32_0 = arith.constant 0 : i32
    return %arg0, %c0_i32 : i32, i32
  }
  func.func @transform_1(%arg0: i32) -> (i32, i32) {
    %c0_i32 = arith.constant 0 : i32
    %c0_i32_0 = arith.constant 0 : i32
    %c0_i32_1 = arith.constant 0 : i32
    return %c0_i32, %c0_i32_0 : i32, i32
  }
  func.func @transform_2(%arg0: i32) -> (i32, i32) {
    %c0_i32 = arith.constant 0 : i32
    %c0_i32_0 = arith.constant 0 : i32
    return %arg0, %c0_i32 : i32, i32
  }
}

</mosaic_0001>

<llo_original>
// kernel: tpu_custom_call.1
$region0: #{tpu_custom_call.1}
  #allocation0 [shape = 'u32[]', space=smem, size = 0x4, offset = 0x4, fixed_abs, tag = 'smem constant byte address 0x4 - core index']
  #allocation1 [shape = 'u32[144,128]{1,0:T(1,128)}', space=vmem, size = 0x12000, scoped, tag = 'internal scratch']
  %s0 = inlined_call_operand.hbm [shape: bf16[400,256], index: 0, kind: input, shape index: {}]
  %s1 = inlined_call_operand.hbm [shape: bf16[256,4096], index: 1, kind: input, shape index: {}]
  %s2 = inlined_call_operand.hbm [shape: s8[400,4096], index: 2, kind: output, shape index: {}]
  %s3 = sld [smem:[#allocation0]]
  $region49: #{tpu_custom_call.1} parent=0
    _
  %s5 = ssub.s32 1, %s3
  %s6 = scalar_select 0, %s5, %s3
  $region1: #{tpu_custom_call.1} parent=0
    #allocation2 [shape = 'u8[65536]{0}', space=vmem, size = 0x10000, scoped, tag = 'input window, operand 0']
    #allocation3 [shape = 's32[2]{0}', space=sflag, size = 0x8, scoped, tag = 'scoped memory for tpu_custom_call.1']
    #allocation4 [shape = 's32[2]{0}', space=sflag, size = 0x8, scoped, tag = 'scoped memory for tpu_custom_call.1']
    #allocation5 [shape = 'u8[2097152]{0}', space=vmem, size = 0x200000, scoped, tag = 'input window, operand 1, single buffered']
    #allocation6 [shape = 's32[1]{0}', space=sflag, size = 0x4, scoped, tag = 'scoped memory for tpu_custom_call.1']
    #allocation7 [shape = 'u8[524288]{0}', space=vmem, size = 0x80000, scoped, tag = 'output window, operand 0']
    %7 = vsyncpa [#allocation3], 0
    %s8 = scalar_lea.sflag [#allocation3], 1
    %9 = vsyncpa %s8, 0
    %10 = vsyncpa [#allocation6], 0
    %11 = vsyncpa [#allocation4], 0
    %s12 = scalar_lea.sflag [#allocation4], 1
    %13 = vsyncpa %s12, 0
    loop: start=0, step=1, limit=9
    $region2: #{tpu_custom_call.1} parent=1 // loop_pre_header
      _
    $region3: #{tpu_custom_call.1} parent=1 // loop_header
      %s15 = sphi 0, %s19
      %p16 = scmp.ge.s32.totalorder %s15, 9
      %s25 = sphi 0, %s27
      %s28 = sphi 0, %s25
      %s29 = sphi 0, %s28
      %s45 = sphi 0, %s29
      %s49 = sphi 0, %s49
      %s51 = sphi 0, %s49
      %s52 = sphi 0, %s51
      %s66 = sphi 0, %s52
      %s72 = sphi 0, %s74
      %s75 = sphi 0, %s72
      %s76 = sphi 0, %s75
      %s92 = sphi 0, %s76
    $region4: #{tpu_custom_call.1} parent=1 // loop_header_branch
      %18 = sbr.rel (%p16) target = $region8
    $region5: #{tpu_custom_call.1} parent=1 // loop_body
      %s20 = ssub.s32 %s15, 1
      %s21 = ssub.s32 %s15, 2
      %s22 = sadd.s32 %s15, 1
      %s23 = ssub.s32 %s15, %s22
      %p24 = scmp.eq.s32.totalorder %s23, 0
      %s26 = sadd.s32 %s25, 1
      %s27 = scalar_select %p24, %s25, %s26
      %p30 = pneg %p24
      %p31 = scmp.eq.s32.totalorder %s15, 6
      %p32 = por %p30, %p31
      %p33 = scmp.ne.s32.totalorder %s25, %s28
      %p34 = scmp.eq.s32.totalorder %s15, 0
      %p35 = por %p33, %p34
      %p36 = scmp.ne.s32.totalorder %s25, %s28
      %p37 = scmp.eq.s32.totalorder %s20, 6
      %p38 = por %p36, %p37
      %p39 = scmp.ne.s32.totalorder %s28, %s29
      %p40 = scmp.eq.s32.totalorder %s20, 0
      %p41 = por %p39, %p40
      %p42 = scmp.ne.s32.totalorder %s28, %s29
      %p43 = scmp.eq.s32.totalorder %s21, 6
      %p44 = por %p42, %p43
      %p46 = scmp.ne.s32.totalorder %s29, %s45
      %p47 = scmp.eq.s32.totalorder %s21, 0
      %p48 = por %p46, %p47
      %s50 = sadd.s32 %s49, 1
      %p53 = scmp.eq.s32.totalorder %s15, 6
      %p54 = scmp.ne.s32.totalorder %s49, %s51
      %p55 = scmp.eq.s32.totalorder %s15, 0
      %p56 = por %p54, %p55
      %p57 = scmp.ne.s32.totalorder %s49, %s51
      %p58 = scmp.eq.s32.totalorder %s20, 6
      %p59 = por %p57, %p58
      %p60 = scmp.ne.s32.totalorder %s51, %s52
      %p61 = scmp.eq.s32.totalorder %s20, 0
      %p62 = por %p60, %p61
      %p63 = scmp.ne.s32.totalorder %s51, %s52
      %p64 = scmp.eq.s32.totalorder %s21, 6
      %p65 = por %p63, %p64
      %p67 = scmp.ne.s32.totalorder %s52, %s66
      %p68 = scmp.eq.s32.totalorder %s21, 0
      %p69 = por %p67, %p68
      %s70 = ssub.s32 %s15, %s22
      %p71 = scmp.eq.s32.totalorder %s70, 0
      %s73 = sadd.s32 %s72, 1
      %s74 = scalar_select %p71, %s72, %s73
      %p77 = pneg %p71
      %p78 = scmp.eq.s32.totalorder %s15, 6
      %p79 = por %p77, %p78
      %p80 = scmp.ne.s32.totalorder %s72, %s75
      %p81 = scmp.eq.s32.totalorder %s15, 0
      %p82 = por %p80, %p81
      %p83 = scmp.ne.s32.totalorder %s72, %s75
      %p84 = scmp.eq.s32.totalorder %s20, 6
      %p85 = por %p83, %p84
      %p86 = scmp.ne.s32.totalorder %s75, %s76
      %p87 = scmp.eq.s32.totalorder %s20, 0
      %p88 = por %p86, %p87
      %p89 = scmp.ne.s32.totalorder %s75, %s76
      %p90 = scmp.eq.s32.totalorder %s21, 6
      %p91 = por %p89, %p90
      %p93 = scmp.ne.s32.totalorder %s76, %s92
      %p94 = scmp.eq.s32.totalorder %s21, 0
      %p95 = por %p93, %p94
      %p96 = scmp.le.s32.totalorder 1, %s15
      %p97 = scmp.lt.s32.totalorder %s15, 8
      %p98 = pnand %p96, %p97
      %p99 = pneg %p98
      // Predicated region
      $region9: #{tpu_custom_call.1} parent=5 // pred_check
        _
      $region10: #{tpu_custom_call.1} parent=5 // pred_check_branch
        %101 = sbr.rel (%p98) target = $region12
      $region11: #{tpu_custom_call.1} parent=5 // pred_region
        %s102 = ssub.s32 %s15, 1
        // Predicated region
        $region13: #{tpu_custom_call.1} parent=11 // pred_check
          %p103 = pneg %p62
        $region14: #{tpu_custom_call.1} parent=11 // pred_check_branch
          %105 = sbr.rel (%p103) target = $region16
        $region15: #{tpu_custom_call.1} parent=11 // pred_region
          %s107 = ssub.s32 65536, 65536
          %108 = vsyncadd [#allocation6], %s107
          %s109 = sshll.u32 [#allocation5], 4
          %s110 = int_to_ptr.vmem [resolvable:$true] %s109
          %115 = dma.hbm_to_vmem [thread:$0]  %s1, 65536, %s110, [#allocation6], 2048, 2048, 128
        $region16: #{tpu_custom_call.1} parent=11 // pred_fallthru
          _
      $region12: #{tpu_custom_call.1} parent=5 // pred_fallthru
        _
      %p116 = scmp.lt.s32.totalorder %s15, 7
      // Predicated region
      $region17: #{tpu_custom_call.1} parent=5 // pred_check
        %p117 = pneg %p116
      $region18: #{tpu_custom_call.1} parent=5 // pred_check_branch
        %119 = sbr.rel (%p117) target = $region20
      $region19: #{tpu_custom_call.1} parent=5 // pred_region
        // Predicated region
        $region21: #{tpu_custom_call.1} parent=19 // pred_check
          %p120 = pneg %p35
        $region22: #{tpu_custom_call.1} parent=19 // pred_check_branch
          %122 = sbr.rel (%p120) target = $region24
        $region23: #{tpu_custom_call.1} parent=19 // pred_region
          %s123 = sand.u32 %s25, 1
          %s124 = scalar_lea.sflag [#allocation3], %s123
          %s125 = sand.u32 %s25, 1
          %s126 = smul.addr %s125, 64
          %s127 = scalar_lea.vmem [#allocation2], %s126
          %s128 = smul.u32 8, %s15
          %s129 = ssub.s32 50, %s128
          %p130 = scmp.lt.s32.totalorder %s129, 8
          %s131 = scalar_select %p130, %s129, 8
          %s132 = smul.u32 64, %s131
          %s133 = smul.u32 %s132, 2
          %s135 = ssub.s32 1024, %s133
          %136 = vsyncadd %s124, %s135
          %p137 = scmp.ne.s32.totalorder 0, %s133
          %s138 = smul.addr %s128, 2
          %s139 = smul.addr %s138, 64
          %s140 = scalar_lea.hbm %s0, %s139
          %s141 = smul.u32 8, %s131
          %s142 = sshll.u32 %s127, 4
          %s143 = int_to_ptr.vmem [resolvable:$true] %s142
          %s144 = sshll.u32 %s141, 4
          %148 = dma.hbm_to_vmem [thread:$0]  (%p137), %s140, %s144, %s143, %s124, 128, 128, 8
        $region24: #{tpu_custom_call.1} parent=19 // pred_fallthru
          _
      $region20: #{tpu_custom_call.1} parent=5 // pred_fallthru
        _
      %p149 = scmp.le.s32.totalorder 1, %s15
      %p150 = scmp.lt.s32.totalorder %s15, 8
      %p151 = pnand %p149, %p150
      %p152 = pneg %p151
      // Predicated region
      $region25: #{tpu_custom_call.1} parent=5 // pred_check
        _
      $region26: #{tpu_custom_call.1} parent=5 // pred_check_branch
        %154 = sbr.rel (%p151) target = $region28
      $region27: #{tpu_custom_call.1} parent=5 // pred_region
        %s155 = ssub.s32 %s15, 1
        %s156 = sand.u32 %s28, 1
        %s157 = scalar_lea.sflag [#allocation3], %s156
        %s158 = sand.u32 %s28, 1
        %s159 = smul.addr %s158, 64
        %s160 = scalar_lea.vmem [#allocation2], %s159
        // Predicated region
        $region29: #{tpu_custom_call.1} parent=27 // pred_check
          %p161 = pneg %p41
        $region30: #{tpu_custom_call.1} parent=27 // pred_check_branch
          %163 = sbr.rel (%p161) target = $region32
        $region31: #{tpu_custom_call.1} parent=27 // pred_region
          %164 = dma.done %s157, 1024
        $region32: #{tpu_custom_call.1} parent=27 // pred_fallthru
          _
        // Predicated region
        $region33: #{tpu_custom_call.1} parent=27 // pred_check
          %p165 = pneg %p62
        $region34: #{tpu_custom_call.1} parent=27 // pred_check_branch
          %167 = sbr.rel (%p165) target = $region36
        $region35: #{tpu_custom_call.1} parent=27 // pred_region
          %168 = dma.done [#allocation6], 65536
        $region36: #{tpu_custom_call.1} parent=27 // pred_fallthru
          _
        %s169 = sand.u32 %s28, 1
        %s170 = scalar_lea.sflag [#allocation3], %s169
        %s171 = sand.u32 %s28, 1
        %s172 = smul.addr %s171, 64
        %s173 = scalar_lea.vmem [#allocation2], %s172
        %p174 = pneg %p41
        %p175 = pneg %p38
        %p176 = pneg %p62
        %p177 = pneg %p59
        %p178 = pneg %p88
        %p179 = pneg %p85
        %s180 = sand.u32 %s75, 1
        %s181 = scalar_lea.sflag [#allocation4], %s180
        %s182 = sand.u32 %s75, 1
        %s183 = smul.addr %s182, 512
        %s184 = scalar_lea.vmem [#allocation7], %s183
        %s185 = smul.u32 8, %s20
        %s186 = ssub.s32 50, %s185
        %p187 = scmp.lt.s32.totalorder %s186, 8
        %s188 = scalar_select %p187, %s186, 8
        %s189 = smul.u32 64, %s188
        %s190 = smul.u32 %s189, 2
        %s191 = smul.u32 8, %s20
        %s192 = ssub.s32 50, %s191
        %p193 = scmp.lt.s32.totalorder %s192, 8
        %s194 = scalar_select %p193, %s192, 8
        %s195 = smul.u32 32, %s194
        %s196 = smul.u32 %s195, 32
        %v199 = vld [vmem:[%s160] sm:$0xff]
        %v200 = vld [vmem:[%s160 + $0x8] sm:$0xff]
        %v201 = vld [vmem:[%s160 + $0x10] sm:$0xff]
        %v202 = vld [vmem:[%s160 + $0x18] sm:$0xff]
        %v203 = vld [vmem:[%s160 + $0x20] sm:$0xff]
        %v204 = vld [vmem:[%s160 + $0x28] sm:$0xff]
        %v205 = vld [vmem:[%s160 + $0x30] sm:$0xff]
        %v206 = vld [vmem:[%s160 + $0x38] sm:$0xff]
        %v207 = vld [vmem:[#allocation5] sm:$0xff]
        %v208 = vld [vmem:[#allocation5 + $0x8] sm:$0xff]
        %v209 = vld [vmem:[#allocation5 + $0x10] sm:$0xff]
        %v210 = vld [vmem:[#allocation5 + $0x18] sm:$0xff]
        %v211 = vld [vmem:[#allocation5 + $0x20] sm:$0xff]
        %v212 = vld [vmem:[#allocation5 + $0x28] sm:$0xff]
        %v213 = vld [vmem:[#allocation5 + $0x30] sm:$0xff]
        %v214 = vld [vmem:[#allocation5 + $0x38] sm:$0xff]
        %v215 = vld [vmem:[#allocation5 + $0x40] sm:$0xff]
        %v216 = vld [vmem:[#allocation5 + $0x48] sm:$0xff]
        %v217 = vld [vmem:[#allocation5 + $0x50] sm:$0xff]
        %v218 = vld [vmem:[#allocation5 + $0x58] sm:$0xff]
        %v219 = vld [vmem:[#allocation5 + $0x60] sm:$0xff]
        %v220 = vld [vmem:[#allocation5 + $0x68] sm:$0xff]
        %v221 = vld [vmem:[#allocation5 + $0x70] sm:$0xff]
        %v222 = vld [vmem:[#allocation5 + $0x78] sm:$0xff]
        %v223 = vld [vmem:[#allocation5 + $0x80] sm:$0xff]
        %v224 = vld [vmem:[#allocation5 + $0x88] sm:$0xff]
        %v225 = vld [vmem:[#allocation5 + $0x90] sm:$0xff]
        %v226 = vld [vmem:[#allocation5 + $0x98] sm:$0xff]
        %v227 = vld [vmem:[#allocation5 + $0xa0] sm:$0xff]
        %v228 = vld [vmem:[#allocation5 + $0xa8] sm:$0xff]
        %v229 = vld [vmem:[#allocation5 + $0xb0] sm:$0xff]
        %v230 = vld [vmem:[#allocation5 + $0xb8] sm:$0xff]
        %v231 = vld [vmem:[#allocation5 + $0xc0] sm:$0xff]
        %v232 = vld [vmem:[#allocation5 + $0xc8] sm:$0xff]
        %v233 = vld [vmem:[#allocation5 + $0xd0] sm:$0xff]
        %v234 = vld [vmem:[#allocation5 + $0xd8] sm:$0xff]
        %v235 = vld [vmem:[#allocation5 + $0xe0] sm:$0xff]
        %v236 = vld [vmem:[#allocation5 + $0xe8] sm:$0xff]
        %v237 = vld [vmem:[#allocation5 + $0xf0] sm:$0xff]
        %v238 = vld [vmem:[#allocation5 + $0xf8] sm:$0xff]
        %v239 = vld [vmem:[#allocation5 + $0x100] sm:$0xff]
        %v240 = vld [vmem:[#allocation5 + $0x108] sm:$0xff]
        %v241 = vld [vmem:[#allocation5 + $0x110] sm:$0xff]
        %v242 = vld [vmem:[#allocation5 + $0x118] sm:$0xff]
        %v243 = vld [vmem:[#allocation5 + $0x120] sm:$0xff]
        %v244 = vld [vmem:[#allocation5 + $0x128] sm:$0xff]
        %v245 = vld [vmem:[#allocation5 + $0x130] sm:$0xff]
        %v246 = vld [vmem:[#allocation5 + $0x138] sm:$0xff]
        %v247 = vld [vmem:[#allocation5 + $0x140] sm:$0xff]
        %v248 = vld [vmem:[#allocation5 + $0x148] sm:$0xff]
        %v249 = vld [vmem:[#allocation5 + $0x150] sm:$0xff]
        %v250 = vld [vmem:[#allocation5 + $0x158] sm:$0xff]
        %v251 = vld [vmem:[#allocation5 + $0x160] sm:$0xff]
        %v252 = vld [vmem:[#allocation5 + $0x168] sm:$0xff]
        %v253 = vld [vmem:[#allocation5 + $0x170] sm:$0xff]
        %v254 = vld [vmem:[#allocation5 + $0x178] sm:$0xff]
        %v255 = vld [vmem:[#allocation5 + $0x180] sm:$0xff]
        %v256 = vld [vmem:[#allocation5 + $0x188] sm:$0xff]
        %v257 = vld [vmem:[#allocation5 + $0x190] sm:$0xff]
        %v258 = vld [vmem:[#allocation5 + $0x198] sm:$0xff]
        %v259 = vld [vmem:[#allocation5 + $0x1a0] sm:$0xff]
        %v260 = vld [vmem:[#allocation5 + $0x1a8] sm:$0xff]
        %v261 = vld [vmem:[#allocation5 + $0x1b0] sm:$0xff]
        %v262 = vld [vmem:[#allocation5 + $0x1b8] sm:$0xff]
        %v263 = vld [vmem:[#allocation5 + $0x1c0] sm:$0xff]
        %v264 = vld [vmem:[#allocation5 + $0x1c8] sm:$0xff]
        %v265 = vld [vmem:[#allocation5 + $0x1d0] sm:$0xff]
        %v266 = vld [vmem:[#allocation5 + $0x1d8] sm:$0xff]
        %v267 = vld [vmem:[#allocation5 + $0x1e0] sm:$0xff]
        %v268 = vld [vmem:[#allocation5 + $0x1e8] sm:$0xff]
        %v269 = vld [vmem:[#allocation5 + $0x1f0] sm:$0xff]
        %v270 = vld [vmem:[#allocation5 + $0x1f8] sm:$0xff]
        %v271 = vld [vmem:[#allocation5 + $0x200] sm:$0xff]
        %v272 = vld [vmem:[#allocation5 + $0x208] sm:$0xff]
        %v273 = vld [vmem:[#allocation5 + $0x210] sm:$0xff]
        %v274 = vld [vmem:[#allocation5 + $0x218] sm:$0xff]
        %v275 = vld [vmem:[#allocation5 + $0x220] sm:$0xff]
        %v276 = vld [vmem:[#allocation5 + $0x228] sm:$0xff]
        %v277 = vld [vmem:[#allocation5 + $0x230] sm:$0xff]
        %v278 = vld [vmem:[#allocation5 + $0x238] sm:$0xff]
        %v279 = vld [vmem:[#allocation5 + $0x240] sm:$0xff]
        %v280 = vld [vmem:[#allocation5 + $0x248] sm:$0xff]
        %v281 = vld [vmem:[#allocation5 + $0x250] sm:$0xff]
        %v282 = vld [vmem:[#allocation5 + $0x258] sm:$0xff]
        %v283 = vld [vmem:[#allocation5 + $0x260] sm:$0xff]
        %v284 = vld [vmem:[#allocation5 + $0x268] sm:$0xff]
        %v285 = vld [vmem:[#allocation5 + $0x270] sm:$0xff]
        %v286 = vld [vmem:[#allocation5 + $0x278] sm:$0xff]
        %v287 = vld [vmem:[#allocation5 + $0x280] sm:$0xff]
        %v288 = vld [vmem:[#allocation5 + $0x288] sm:$0xff]
        %v289 = vld [vmem:[#allocation5 + $0x290] sm:$0xff]
        %v290 = vld [vmem:[#allocation5 + $0x298] sm:$0xff]
        %v291 = vld [vmem:[#allocation5 + $0x2a0] sm:$0xff]
        %v292 = vld [vmem:[#allocation5 + $0x2a8] sm:$0xff]
        %v293 = vld [vmem:[#allocation5 + $0x2b0] sm:$0xff]
        %v294 = vld [vmem:[#allocation5 + $0x2b8] sm:$0xff]
        %v295 = vld [vmem:[#allocation5 + $0x2c0] sm:$0xff]
        %v296 = vld [vmem:[#allocation5 + $0x2c8] sm:$0xff]
        %v297 = vld [vmem:[#allocation5 + $0x2d0] sm:$0xff]
        %v298 = vld [vmem:[#allocation5 + $0x2d8] sm:$0xff]
        %v299 = vld [vmem:[#allocation5 + $0x2e0] sm:$0xff]
        %v300 = vld [vmem:[#allocation5 + $0x2e8] sm:$0xff]
        %v301 = vld [vmem:[#allocation5 + $0x2f0] sm:$0xff]
        %v302 = vld [vmem:[#allocation5 + $0x2f8] sm:$0xff]
        %v303 = vld [vmem:[#allocation5 + $0x300] sm:$0xff]
        %v304 = vld [vmem:[#allocation5 + $0x308] sm:$0xff]
        %v305 = vld [vmem:[#allocation5 + $0x310] sm:$0xff]
        %v306 = vld [vmem:[#allocation5 + $0x318] sm:$0xff]
        %v307 = vld [vmem:[#allocation5 + $0x320] sm:$0xff]
        %v308 = vld [vmem:[#allocation5 + $0x328] sm:$0xff]
        %v309 = vld [vmem:[#allocation5 + $0x330] sm:$0xff]
        %v310 = vld [vmem:[#allocation5 + $0x338] sm:$0xff]
        %v311 = vld [vmem:[#allocation5 + $0x340] sm:$0xff]
        %v312 = vld [vmem:[#allocation5 + $0x348] sm:$0xff]
        %v313 = vld [vmem:[#allocation5 + $0x350] sm:$0xff]
        %v314 = vld [vmem:[#allocation5 + $0x358] sm:$0xff]
        %v315 = vld [vmem:[#allocation5 + $0x360] sm:$0xff]
        %v316 = vld [vmem:[#allocation5 + $0x368] sm:$0xff]
        %v317 = vld [vmem:[#allocation5 + $0x370] sm:$0xff]
        %v318 = vld [vmem:[#allocation5 + $0x378] sm:$0xff]
        %v319 = vld [vmem:[#allocation5 + $0x380] sm:$0xff]
        %v320 = vld [vmem:[#allocation5 + $0x388] sm:$0xff]
        %v321 = vld [vmem:[#allocation5 + $0x390] sm:$0xff]
        %v322 = vld [vmem:[#allocation5 + $0x398] sm:$0xff]
        %v323 = vld [vmem:[#allocation5 + $0x3a0] sm:$0xff]
        %v324 = vld [vmem:[#allocation5 + $0x3a8] sm:$0xff]
        %v325 = vld [vmem:[#allocation5 + $0x3b0] sm:$0xff]
        %v326 = vld [vmem:[#allocation5 + $0x3b8] sm:$0xff]
        %v327 = vld [vmem:[#allocation5 + $0x3c0] sm:$0xff]
        %v328 = vld [vmem:[#allocation5 + $0x3c8] sm:$0xff]
        %v329 = vld [vmem:[#allocation5 + $0x3d0] sm:$0xff]
        %v330 = vld [vmem:[#allocation5 + $0x3d8] sm:$0xff]
        %v331 = vld [vmem:[#allocation5 + $0x3e0] sm:$0xff]
        %v332 = vld [vmem:[#allocation5 + $0x3e8] sm:$0xff]
        %v333 = vld [vmem:[#allocation5 + $0x3f0] sm:$0xff]
        %v334 = vld [vmem:[#allocation5 + $0x3f8] sm:$0xff]
        %v335 = vld [vmem:[#allocation5 + $0x400] sm:$0xff]
        %v336 = vld [vmem:[#allocation5 + $0x408] sm:$0xff]
        %v337 = vld [vmem:[#allocation5 + $0x410] sm:$0xff]
        %v338 = vld [vmem:[#allocation5 + $0x418] sm:$0xff]
        %v339 = vld [vmem:[#allocation5 + $0x420] sm:$0xff]
        %v340 = vld [vmem:[#allocation5 + $0x428] sm:$0xff]
        %v341 = vld [vmem:[#allocation5 + $0x430] sm:$0xff]
        %v342 = vld [vmem:[#allocation5 + $0x438] sm:$0xff]
        %v343 = vld [vmem:[#allocation5 + $0x440] sm:$0xff]
        %v344 = vld [vmem:[#allocation5 + $0x448] sm:$0xff]
        %v345 = vld [vmem:[#allocation5 + $0x450] sm:$0xff]
        %v346 = vld [vmem:[#allocation5 + $0x458] sm:$0xff]
        %v347 = vld [vmem:[#allocation5 + $0x460] sm:$0xff]
        %v348 = vld [vmem:[#allocation5 + $0x468] sm:$0xff]
        %v349 = vld [vmem:[#allocation5 + $0x470] sm:$0xff]
        %v350 = vld [vmem:[#allocation5 + $0x478] sm:$0xff]
        %v351 = vld [vmem:[#allocation5 + $0x480] sm:$0xff]
        %v352 = vld [vmem:[#allocation5 + $0x488] sm:$0xff]
        %v353 = vld [vmem:[#allocation5 + $0x490] sm:$0xff]
        %v354 = vld [vmem:[#allocation5 + $0x498] sm:$0xff]
        %v355 = vld [vmem:[#allocation5 + $0x4a0] sm:$0xff]
        %v356 = vld [vmem:[#allocation5 + $0x4a8] sm:$0xff]
        %v357 = vld [vmem:[#allocation5 + $0x4b0] sm:$0xff]
        %v358 = vld [vmem:[#allocation5 + $0x4b8] sm:$0xff]
        %v359 = vld [vmem:[#allocation5 + $0x4c0] sm:$0xff]
        %v360 = vld [vmem:[#allocation5 + $0x4c8] sm:$0xff]
        %v361 = vld [vmem:[#allocation5 + $0x4d0] sm:$0xff]
        %v362 = vld [vmem:[#allocation5 + $0x4d8] sm:$0xff]
        %v363 = vld [vmem:[#allocation5 + $0x4e0] sm:$0xff]
        %v364 = vld [vmem:[#allocation5 + $0x4e8] sm:$0xff]
        %v365 = vld [vmem:[#allocation5 + $0x4f0] sm:$0xff]
        %v366 = vld [vmem:[#allocation5 + $0x4f8] sm:$0xff]
        %v367 = vld [vmem:[#allocation5 + $0x500] sm:$0xff]
        %v368 = vld [vmem:[#allocation5 + $0x508] sm:$0xff]
        %v369 = vld [vmem:[#allocation5 + $0x510] sm:$0xff]
        %v370 = vld [vmem:[#allocation5 + $0x518] sm:$0xff]
        %v371 = vld [vmem:[#allocation5 + $0x520] sm:$0xff]
        %v372 = vld [vmem:[#allocation5 + $0x528] sm:$0xff]
        %v373 = vld [vmem:[#allocation5 + $0x530] sm:$0xff]
        %v374 = vld [vmem:[#allocation5 + $0x538] sm:$0xff]
        %v375 = vld [vmem:[#allocation5 + $0x540] sm:$0xff]
        %v376 = vld [vmem:[#allocation5 + $0x548] sm:$0xff]
        %v377 = vld [vmem:[#allocation5 + $0x550] sm:$0xff]
        %v378 = vld [vmem:[#allocation5 + $0x558] sm:$0xff]
        %v379 = vld [vmem:[#allocation5 + $0x560] sm:$0xff]
        %v380 = vld [vmem:[#allocation5 + $0x568] sm:$0xff]
        %v381 = vld [vmem:[#allocation5 + $0x570] sm:$0xff]
        %v382 = vld [vmem:[#allocation5 + $0x578] sm:$0xff]
        %v383 = vld [vmem:[#allocation5 + $0x580] sm:$0xff]
        %v384 = vld [vmem:[#allocation5 + $0x588] sm:$0xff]
        %v385 = vld [vmem:[#allocation5 + $0x590] sm:$0xff]
        %v386 = vld [vmem:[#allocation5 + $0x598] sm:$0xff]
        %v387 = vld [vmem:[#allocation5 + $0x5a0] sm:$0xff]
        %v388 = vld [vmem:[#allocation5 + $0x5a8] sm:$0xff]
        %v389 = vld [vmem:[#allocation5 + $0x5b0] sm:$0xff]
        %v390 = vld [vmem:[#allocation5 + $0x5b8] sm:$0xff]
        %v391 = vld [vmem:[#allocation5 + $0x5c0] sm:$0xff]
        %v392 = vld [vmem:[#allocation5 + $0x5c8] sm:$0xff]
        %v393 = vld [vmem:[#allocation5 + $0x5d0] sm:$0xff]
        %v394 = vld [vmem:[#allocation5 + $0x5d8] sm:$0xff]
        %v395 = vld [vmem:[#allocation5 + $0x5e0] sm:$0xff]
        %v396 = vld [vmem:[#allocation5 + $0x5e8] sm:$0xff]
        %v397 = vld [vmem:[#allocation5 + $0x5f0] sm:$0xff]
        %v398 = vld [vmem:[#allocation5 + $0x5f8] sm:$0xff]
        %v399 = vld [vmem:[#allocation5 + $0x600] sm:$0xff]
        %v400 = vld [vmem:[#allocation5 + $0x608] sm:$0xff]
        %v401 = vld [vmem:[#allocation5 + $0x610] sm:$0xff]
        %v402 = vld [vmem:[#allocation5 + $0x618] sm:$0xff]
        %v403 = vld [vmem:[#allocation5 + $0x620] sm:$0xff]
        %v404 = vld [vmem:[#allocation5 + $0x628] sm:$0xff]
        %v405 = vld [vmem:[#allocation5 + $0x630] sm:$0xff]
        %v406 = vld [vmem:[#allocation5 + $0x638] sm:$0xff]
        %v407 = vld [vmem:[#allocation5 + $0x640] sm:$0xff]
        %v408 = vld [vmem:[#allocation5 + $0x648] sm:$0xff]
        %v409 = vld [vmem:[#allocation5 + $0x650] sm:$0xff]
        %v410 = vld [vmem:[#allocation5 + $0x658] sm:$0xff]
        %v411 = vld [vmem:[#allocation5 + $0x660] sm:$0xff]
        %v412 = vld [vmem:[#allocation5 + $0x668] sm:$0xff]
        %v413 = vld [vmem:[#allocation5 + $0x670] sm:$0xff]
        %v414 = vld [vmem:[#allocation5 + $0x678] sm:$0xff]
        %v415 = vld [vmem:[#allocation5 + $0x680] sm:$0xff]
        %v416 = vld [vmem:[#allocation5 + $0x688] sm:$0xff]
        %v417 = vld [vmem:[#allocation5 + $0x690] sm:$0xff]
        %v418 = vld [vmem:[#allocation5 + $0x698] sm:$0xff]
        %v419 = vld [vmem:[#allocation5 + $0x6a0] sm:$0xff]
        %v420 = vld [vmem:[#allocation5 + $0x6a8] sm:$0xff]
        %v421 = vld [vmem:[#allocation5 + $0x6b0] sm:$0xff]
        %v422 = vld [vmem:[#allocation5 + $0x6b8] sm:$0xff]
        %v423 = vld [vmem:[#allocation5 + $0x6c0] sm:$0xff]
        %v424 = vld [vmem:[#allocation5 + $0x6c8] sm:$0xff]
        %v425 = vld [vmem:[#allocation5 + $0x6d0] sm:$0xff]
        %v426 = vld [vmem:[#allocation5 + $0x6d8] sm:$0xff]
        %v427 = vld [vmem:[#allocation5 + $0x6e0] sm:$0xff]
        %v428 = vld [vmem:[#allocation5 + $0x6e8] sm:$0xff]
        %v429 = vld [vmem:[#allocation5 + $0x6f0] sm:$0xff]
        %v430 = vld [vmem:[#allocation5 + $0x6f8] sm:$0xff]
        %v431 = vld [vmem:[#allocation5 + $0x700] sm:$0xff]
        %v432 = vld [vmem:[#allocation5 + $0x708] sm:$0xff]
        %v433 = vld [vmem:[#allocation5 + $0x710] sm:$0xff]
        %v434 = vld [vmem:[#allocation5 + $0x718] sm:$0xff]
        %v435 = vld [vmem:[#allocation5 + $0x720] sm:$0xff]
        %v436 = vld [vmem:[#allocation5 + $0x728] sm:$0xff]
        %v437 = vld [vmem:[#allocation5 + $0x730] sm:$0xff]
        %v438 = vld [vmem:[#allocation5 + $0x738] sm:$0xff]
        %v439 = vld [vmem:[#allocation5 + $0x740] sm:$0xff]
        %v440 = vld [vmem:[#allocation5 + $0x748] sm:$0xff]
        %v441 = vld [vmem:[#allocation5 + $0x750] sm:$0xff]
        %v442 = vld [vmem:[#allocation5 + $0x758] sm:$0xff]
        %v443 = vld [vmem:[#allocation5 + $0x760] sm:$0xff]
        %v444 = vld [vmem:[#allocation5 + $0x768] sm:$0xff]
        %v445 = vld [vmem:[#allocation5 + $0x770] sm:$0xff]
        %v446 = vld [vmem:[#allocation5 + $0x778] sm:$0xff]
        %v447 = vld [vmem:[#allocation5 + $0x780] sm:$0xff]
        %v448 = vld [vmem:[#allocation5 + $0x788] sm:$0xff]
        %v449 = vld [vmem:[#allocation5 + $0x790] sm:$0xff]
        %v450 = vld [vmem:[#allocation5 + $0x798] sm:$0xff]
        %v451 = vld [vmem:[#allocation5 + $0x7a0] sm:$0xff]
        %v452 = vld [vmem:[#allocation5 + $0x7a8] sm:$0xff]
        %v453 = vld [vmem:[#allocation5 + $0x7b0] sm:$0xff]
        %v454 = vld [vmem:[#allocation5 + $0x7b8] sm:$0xff]
        %v455 = vld [vmem:[#allocation5 + $0x7c0] sm:$0xff]
        %v456 = vld [vmem:[#allocation5 + $0x7c8] sm:$0xff]
        %v457 = vld [vmem:[#allocation5 + $0x7d0] sm:$0xff]
        %v458 = vld [vmem:[#allocation5 + $0x7d8] sm:$0xff]
        %v459 = vld [vmem:[#allocation5 + $0x7e0] sm:$0xff]
        %v460 = vld [vmem:[#allocation5 + $0x7e8] sm:$0xff]
        %v461 = vld [vmem:[#allocation5 + $0x7f0] sm:$0xff]
        %v462 = vld [vmem:[#allocation5 + $0x7f8] sm:$0xff]
        %v463 = vld [vmem:[#allocation5 + $0x800] sm:$0xff]
        %v464 = vld [vmem:[#allocation5 + $0x808] sm:$0xff]
        %v465 = vld [vmem:[#allocation5 + $0x810] sm:$0xff]
        %v466 = vld [vmem:[#allocation5 + $0x818] sm:$0xff]
        %v467 = vld [vmem:[#allocation5 + $0x820] sm:$0xff]
        %v468 = vld [vmem:[#allocation5 + $0x828] sm:$0xff]
        %v469 = vld [vmem:[#allocation5 + $0x830] sm:$0xff]
        %v470 = vld [vmem:[#allocation5 + $0x838] sm:$0xff]
        %v471 = vld [vmem:[#allocation5 + $0x840] sm:$0xff]
        %v472 = vld [vmem:[#allocation5 + $0x848] sm:$0xff]
        %v473 = vld [vmem:[#allocation5 + $0x850] sm:$0xff]
        %v474 = vld [vmem:[#allocation5 + $0x858] sm:$0xff]
        %v475 = vld [vmem:[#allocation5 + $0x860] sm:$0xff]
        %v476 = vld [vmem:[#allocation5 + $0x868] sm:$0xff]
        %v477 = vld [vmem:[#allocation5 + $0x870] sm:$0xff]
        %v478 = vld [vmem:[#allocation5 + $0x878] sm:$0xff]
        %v479 = vld [vmem:[#allocation5 + $0x880] sm:$0xff]
        %v480 = vld [vmem:[#allocation5 + $0x888] sm:$0xff]
        %v481 = vld [vmem:[#allocation5 + $0x890] sm:$0xff]
        %v482 = vld [vmem:[#allocation5 + $0x898] sm:$0xff]
        %v483 = vld [vmem:[#allocation5 + $0x8a0] sm:$0xff]
        %v484 = vld [vmem:[#allocation5 + $0x8a8] sm:$0xff]
        %v485 = vld [vmem:[#allocation5 + $0x8b0] sm:$0xff]
        %v486 = vld [vmem:[#allocation5 + $0x8b8] sm:$0xff]
        %v487 = vld [vmem:[#allocation5 + $0x8c0] sm:$0xff]
        %v488 = vld [vmem:[#allocation5 + $0x8c8] sm:$0xff]
        %v489 = vld [vmem:[#allocation5 + $0x8d0] sm:$0xff]
        %v490 = vld [vmem:[#allocation5 + $0x8d8] sm:$0xff]
        %v491 = vld [vmem:[#allocation5 + $0x8e0] sm:$0xff]
        %v492 = vld [vmem:[#allocation5 + $0x8e8] sm:$0xff]
        %v493 = vld [vmem:[#allocation5 + $0x8f0] sm:$0xff]
        %v494 = vld [vmem:[#allocation5 + $0x8f8] sm:$0xff]
        %v495 = vld [vmem:[#allocation5 + $0x900] sm:$0xff]
        %v496 = vld [vmem:[#allocation5 + $0x908] sm:$0xff]
        %v497 = vld [vmem:[#allocation5 + $0x910] sm:$0xff]
        %v498 = vld [vmem:[#allocation5 + $0x918] sm:$0xff]
        %v499 = vld [vmem:[#allocation5 + $0x920] sm:$0xff]
        %v500 = vld [vmem:[#allocation5 + $0x928] sm:$0xff]
        %v501 = vld [vmem:[#allocation5 + $0x930] sm:$0xff]
        %v502 = vld [vmem:[#allocation5 + $0x938] sm:$0xff]
        %v503 = vld [vmem:[#allocation5 + $0x940] sm:$0xff]
        %v504 = vld [vmem:[#allocation5 + $0x948] sm:$0xff]
        %v505 = vld [vmem:[#allocation5 + $0x950] sm:$0xff]
        %v506 = vld [vmem:[#allocation5 + $0x958] sm:$0xff]
        %v507 = vld [vmem:[#allocation5 + $0x960] sm:$0xff]
        %v508 = vld [vmem:[#allocation5 + $0x968] sm:$0xff]
        %v509 = vld [vmem:[#allocation5 + $0x970] sm:$0xff]
        %v510 = vld [vmem:[#allocation5 + $0x978] sm:$0xff]
        %v511 = vld [vmem:[#allocation5 + $0x980] sm:$0xff]
        %v512 = vld [vmem:[#allocation5 + $0x988] sm:$0xff]
        %v513 = vld [vmem:[#allocation5 + $0x990] sm:$0xff]
        %v514 = vld [vmem:[#allocation5 + $0x998] sm:$0xff]
        %v515 = vld [vmem:[#allocation5 + $0x9a0] sm:$0xff]
        %v516 = vld [vmem:[#allocation5 + $0x9a8] sm:$0xff]
        %v517 = vld [vmem:[#allocation5 + $0x9b0] sm:$0xff]
        %v518 = vld [vmem:[#allocation5 + $0x9b8] sm:$0xff]
        %v519 = vld [vmem:[#allocation5 + $0x9c0] sm:$0xff]
        %v520 = vld [vmem:[#allocation5 + $0x9c8] sm:$0xff]
        %v521 = vld [vmem:[#allocation5 + $0x9d0] sm:$0xff]
        %v522 = vld [vmem:[#allocation5 + $0x9d8] sm:$0xff]
        %v523 = vld [vmem:[#allocation5 + $0x9e0] sm:$0xff]
        %v524 = vld [vmem:[#allocation5 + $0x9e8] sm:$0xff]
        %v525 = vld [vmem:[#allocation5 + $0x9f0] sm:$0xff]
        %v526 = vld [vmem:[#allocation5 + $0x9f8] sm:$0xff]
        %v527 = vld [vmem:[#allocation5 + $0xa00] sm:$0xff]
        %v528 = vld [vmem:[#allocation5 + $0xa08] sm:$0xff]
        %v529 = vld [vmem:[#allocation5 + $0xa10] sm:$0xff]
        %v530 = vld [vmem:[#allocation5 + $0xa18] sm:$0xff]
        %v531 = vld [vmem:[#allocation5 + $0xa20] sm:$0xff]
        %v532 = vld [vmem:[#allocation5 + $0xa28] sm:$0xff]
        %v533 = vld [vmem:[#allocation5 + $0xa30] sm:$0xff]
        %v534 = vld [vmem:[#allocation5 + $0xa38] sm:$0xff]
        %v535 = vld [vmem:[#allocation5 + $0xa40] sm:$0xff]
        %v536 = vld [vmem:[#allocation5 + $0xa48] sm:$0xff]
        %v537 = vld [vmem:[#allocation5 + $0xa50] sm:$0xff]
        %v538 = vld [vmem:[#allocation5 + $0xa58] sm:$0xff]
        %v539 = vld [vmem:[#allocation5 + $0xa60] sm:$0xff]
        %v540 = vld [vmem:[#allocation5 + $0xa68] sm:$0xff]
        %v541 = vld [vmem:[#allocation5 + $0xa70] sm:$0xff]
        %v542 = vld [vmem:[#allocation5 + $0xa78] sm:$0xff]
        %v543 = vld [vmem:[#allocation5 + $0xa80] sm:$0xff]
        %v544 = vld [vmem:[#allocation5 + $0xa88] sm:$0xff]
        %v545 = vld [vmem:[#allocation5 + $0xa90] sm:$0xff]
        %v546 = vld [vmem:[#allocation5 + $0xa98] sm:$0xff]
        %v547 = vld [vmem:[#allocation5 + $0xaa0] sm:$0xff]
        %v548 = vld [vmem:[#allocation5 + $0xaa8] sm:$0xff]
        %v549 = vld [vmem:[#allocation5 + $0xab0] sm:$0xff]
        %v550 = vld [vmem:[#allocation5 + $0xab8] sm:$0xff]
        %v551 = vld [vmem:[#allocation5 + $0xac0] sm:$0xff]
        %v552 = vld [vmem:[#allocation5 + $0xac8] sm:$0xff]
        %v553 = vld [vmem:[#allocation5 + $0xad0] sm:$0xff]
        %v554 = vld [vmem:[#allocation5 + $0xad8] sm:$0xff]
        %v555 = vld [vmem:[#allocation5 + $0xae0] sm:$0xff]
        %v556 = vld [vmem:[#allocation5 + $0xae8] sm:$0xff]
        %v557 = vld [vmem:[#allocation5 + $0xaf0] sm:$0xff]
        %v558 = vld [vmem:[#allocation5 + $0xaf8] sm:$0xff]
        %v559 = vld [vmem:[#allocation5 + $0xb00] sm:$0xff]
        %v560 = vld [vmem:[#allocation5 + $0xb08] sm:$0xff]
        %v561 = vld [vmem:[#allocation5 + $0xb10] sm:$0xff]
        %v562 = vld [vmem:[#allocation5 + $0xb18] sm:$0xff]
        %v563 = vld [vmem:[#allocation5 + $0xb20] sm:$0xff]
        %v564 = vld [vmem:[#allocation5 + $0xb28] sm:$0xff]
        %v565 = vld [vmem:[#allocation5 + $0xb30] sm:$0xff]
        %v566 = vld [vmem:[#allocation5 + $0xb38] sm:$0xff]
        %v567 = vld [vmem:[#allocation5 + $0xb40] sm:$0xff]
        %v568 = vld [vmem:[#allocation5 + $0xb48] sm:$0xff]
        %v569 = vld [vmem:[#allocation5 + $0xb50] sm:$0xff]
        %v570 = vld [vmem:[#allocation5 + $0xb58] sm:$0xff]
        %v571 = vld [vmem:[#allocation5 + $0xb60] sm:$0xff]
        %v572 = vld [vmem:[#allocation5 + $0xb68] sm:$0xff]
        %v573 = vld [vmem:[#allocation5 + $0xb70] sm:$0xff]
        %v574 = vld [vmem:[#allocation5 + $0xb78] sm:$0xff]
        %v575 = vld [vmem:[#allocation5 + $0xb80] sm:$0xff]
        %v576 = vld [vmem:[#allocation5 + $0xb88] sm:$0xff]
        %v577 = vld [vmem:[#allocation5 + $0xb90] sm:$0xff]
        %v578 = vld [vmem:[#allocation5 + $0xb98] sm:$0xff]
        %v579 = vld [vmem:[#allocation5 + $0xba0] sm:$0xff]
        %v580 = vld [vmem:[#allocation5 + $0xba8] sm:$0xff]
        %v581 = vld [vmem:[#allocation5 + $0xbb0] sm:$0xff]
        %v582 = vld [vmem:[#allocation5 + $0xbb8] sm:$0xff]
        %v583 = vld [vmem:[#allocation5 + $0xbc0] sm:$0xff]
        %v584 = vld [vmem:[#allocation5 + $0xbc8] sm:$0xff]
        %v585 = vld [vmem:[#allocation5 + $0xbd0] sm:$0xff]
        %v586 = vld [vmem:[#allocation5 + $0xbd8] sm:$0xff]
        %v587 = vld [vmem:[#allocation5 + $0xbe0] sm:$0xff]
        %v588 = vld [vmem:[#allocation5 + $0xbe8] sm:$0xff]
        %v589 = vld [vmem:[#allocation5 + $0xbf0] sm:$0xff]
        %v590 = vld [vmem:[#allocation5 + $0xbf8] sm:$0xff]
        %v591 = vld [vmem:[#allocation5 + $0xc00] sm:$0xff]
        %v592 = vld [vmem:[#allocation5 + $0xc08] sm:$0xff]
        %v593 = vld [vmem:[#allocation5 + $0xc10] sm:$0xff]
        %v594 = vld [vmem:[#allocation5 + $0xc18] sm:$0xff]
        %v595 = vld [vmem:[#allocation5 + $0xc20] sm:$0xff]
        %v596 = vld [vmem:[#allocation5 + $0xc28] sm:$0xff]
        %v597 = vld [vmem:[#allocation5 + $0xc30] sm:$0xff]
        %v598 = vld [vmem:[#allocation5 + $0xc38] sm:$0xff]
        %v599 = vld [vmem:[#allocation5 + $0xc40] sm:$0xff]
        %v600 = vld [vmem:[#allocation5 + $0xc48] sm:$0xff]
        %v601 = vld [vmem:[#allocation5 + $0xc50] sm:$0xff]
        %v602 = vld [vmem:[#allocation5 + $0xc58] sm:$0xff]
        %v603 = vld [vmem:[#allocation5 + $0xc60] sm:$0xff]
        %v604 = vld [vmem:[#allocation5 + $0xc68] sm:$0xff]
        %v605 = vld [vmem:[#allocation5 + $0xc70] sm:$0xff]
        %v606 = vld [vmem:[#allocation5 + $0xc78] sm:$0xff]
        %v607 = vld [vmem:[#allocation5 + $0xc80] sm:$0xff]
        %v608 = vld [vmem:[#allocation5 + $0xc88] sm:$0xff]
        %v609 = vld [vmem:[#allocation5 + $0xc90] sm:$0xff]
        %v610 = vld [vmem:[#allocation5 + $0xc98] sm:$0xff]
        %v611 = vld [vmem:[#allocation5 + $0xca0] sm:$0xff]
        %v612 = vld [vmem:[#allocation5 + $0xca8] sm:$0xff]
        %v613 = vld [vmem:[#allocation5 + $0xcb0] sm:$0xff]
        %v614 = vld [vmem:[#allocation5 + $0xcb8] sm:$0xff]
        %v615 = vld [vmem:[#allocation5 + $0xcc0] sm:$0xff]
        %v616 = vld [vmem:[#allocation5 + $0xcc8] sm:$0xff]
        %v617 = vld [vmem:[#allocation5 + $0xcd0] sm:$0xff]
        %v618 = vld [vmem:[#allocation5 + $0xcd8] sm:$0xff]
        %v619 = vld [vmem:[#allocation5 + $0xce0] sm:$0xff]
        %v620 = vld [vmem:[#allocation5 + $0xce8] sm:$0xff]
        %v621 = vld [vmem:[#allocation5 + $0xcf0] sm:$0xff]
        %v622 = vld [vmem:[#allocation5 + $0xcf8] sm:$0xff]
        %v623 = vld [vmem:[#allocation5 + $0xd00] sm:$0xff]
        %v624 = vld [vmem:[#allocation5 + $0xd08] sm:$0xff]
        %v625 = vld [vmem:[#allocation5 + $0xd10] sm:$0xff]
        %v626 = vld [vmem:[#allocation5 + $0xd18] sm:$0xff]
        %v627 = vld [vmem:[#allocation5 + $0xd20] sm:$0xff]
        %v628 = vld [vmem:[#allocation5 + $0xd28] sm:$0xff]
        %v629 = vld [vmem:[#allocation5 + $0xd30] sm:$0xff]
        %v630 = vld [vmem:[#allocation5 + $0xd38] sm:$0xff]
        %v631 = vld [vmem:[#allocation5 + $0xd40] sm:$0xff]
        %v632 = vld [vmem:[#allocation5 + $0xd48] sm:$0xff]
        %v633 = vld [vmem:[#allocation5 + $0xd50] sm:$0xff]
        %v634 = vld [vmem:[#allocation5 + $0xd58] sm:$0xff]
        %v635 = vld [vmem:[#allocation5 + $0xd60] sm:$0xff]
        %v636 = vld [vmem:[#allocation5 + $0xd68] sm:$0xff]
        %v637 = vld [vmem:[#allocation5 + $0xd70] sm:$0xff]
        %v638 = vld [vmem:[#allocation5 + $0xd78] sm:$0xff]
        %v639 = vld [vmem:[#allocation5 + $0xd80] sm:$0xff]
        %v640 = vld [vmem:[#allocation5 + $0xd88] sm:$0xff]
        %v641 = vld [vmem:[#allocation5 + $0xd90] sm:$0xff]
        %v642 = vld [vmem:[#allocation5 + $0xd98] sm:$0xff]
        %v643 = vld [vmem:[#allocation5 + $0xda0] sm:$0xff]
        %v644 = vld [vmem:[#allocation5 + $0xda8] sm:$0xff]
        %v645 = vld [vmem:[#allocation5 + $0xdb0] sm:$0xff]
        %v646 = vld [vmem:[#allocation5 + $0xdb8] sm:$0xff]
        %v647 = vld [vmem:[#allocation5 + $0xdc0] sm:$0xff]
        %v648 = vld [vmem:[#allocation5 + $0xdc8] sm:$0xff]
        %v649 = vld [vmem:[#allocation5 + $0xdd0] sm:$0xff]
        %v650 = vld [vmem:[#allocation5 + $0xdd8] sm:$0xff]
        %v651 = vld [vmem:[#allocation5 + $0xde0] sm:$0xff]
        %v652 = vld [vmem:[#allocation5 + $0xde8] sm:$0xff]
        %v653 = vld [vmem:[#allocation5 + $0xdf0] sm:$0xff]
        %v654 = vld [vmem:[#allocation5 + $0xdf8] sm:$0xff]
        %v655 = vld [vmem:[#allocation5 + $0xe00] sm:$0xff]
        %v656 = vld [vmem:[#allocation5 + $0xe08] sm:$0xff]
        %v657 = vld [vmem:[#allocation5 + $0xe10] sm:$0xff]
        %v658 = vld [vmem:[#allocation5 + $0xe18] sm:$0xff]
        %v659 = vld [vmem:[#allocation5 + $0xe20] sm:$0xff]
        %v660 = vld [vmem:[#allocation5 + $0xe28] sm:$0xff]
        %v661 = vld [vmem:[#allocation5 + $0xe30] sm:$0xff]
        %v662 = vld [vmem:[#allocation5 + $0xe38] sm:$0xff]
        %v663 = vld [vmem:[#allocation5 + $0xe40] sm:$0xff]
        %v664 = vld [vmem:[#allocation5 + $0xe48] sm:$0xff]
        %v665 = vld [vmem:[#allocation5 + $0xe50] sm:$0xff]
        %v666 = vld [vmem:[#allocation5 + $0xe58] sm:$0xff]
        %v667 = vld [vmem:[#allocation5 + $0xe60] sm:$0xff]
        %v668 = vld [vmem:[#allocation5 + $0xe68] sm:$0xff]
        %v669 = vld [vmem:[#allocation5 + $0xe70] sm:$0xff]
        %v670 = vld [vmem:[#allocation5 + $0xe78] sm:$0xff]
        %v671 = vld [vmem:[#allocation5 + $0xe80] sm:$0xff]
        %v672 = vld [vmem:[#allocation5 + $0xe88] sm:$0xff]
        %v673 = vld [vmem:[#allocation5 + $0xe90] sm:$0xff]
        %v674 = vld [vmem:[#allocation5 + $0xe98] sm:$0xff]
        %v675 = vld [vmem:[#allocation5 + $0xea0] sm:$0xff]
        %v676 = vld [vmem:[#allocation5 + $0xea8] sm:$0xff]
        %v677 = vld [vmem:[#allocation5 + $0xeb0] sm:$0xff]
        %v678 = vld [vmem:[#allocation5 + $0xeb8] sm:$0xff]
        %v679 = vld [vmem:[#allocation5 + $0xec0] sm:$0xff]
        %v680 = vld [vmem:[#allocation5 + $0xec8] sm:$0xff]
        %v681 = vld [vmem:[#allocation5 + $0xed0] sm:$0xff]
        %v682 = vld [vmem:[#allocation5 + $0xed8] sm:$0xff]
        %v683 = vld [vmem:[#allocation5 + $0xee0] sm:$0xff]
        %v684 = vld [vmem:[#allocation5 + $0xee8] sm:$0xff]
        %v685 = vld [vmem:[#allocation5 + $0xef0] sm:$0xff]
        %v686 = vld [vmem:[#allocation5 + $0xef8] sm:$0xff]
        %v687 = vld [vmem:[#allocation5 + $0xf00] sm:$0xff]
        %v688 = vld [vmem:[#allocation5 + $0xf08] sm:$0xff]
        %v689 = vld [vmem:[#allocation5 + $0xf10] sm:$0xff]
        %v690 = vld [vmem:[#allocation5 + $0xf18] sm:$0xff]
        %v691 = vld [vmem:[#allocation5 + $0xf20] sm:$0xff]
        %v692 = vld [vmem:[#allocation5 + $0xf28] sm:$0xff]
        %v693 = vld [vmem:[#allocation5 + $0xf30] sm:$0xff]
        %v694 = vld [vmem:[#allocation5 + $0xf38] sm:$0xff]
        %v695 = vld [vmem:[#allocation5 + $0xf40] sm:$0xff]
        %v696 = vld [vmem:[#allocation5 + $0xf48] sm:$0xff]
        %v697 = vld [vmem:[#allocation5 + $0xf50] sm:$0xff]
        %v698 = vld [vmem:[#allocation5 + $0xf58] sm:$0xff]
        %v699 = vld [vmem:[#allocation5 + $0xf60] sm:$0xff]
        %v700 = vld [vmem:[#allocation5 + $0xf68] sm:$0xff]
        %v701 = vld [vmem:[#allocation5 + $0xf70] sm:$0xff]
        %v702 = vld [vmem:[#allocation5 + $0xf78] sm:$0xff]
        %v703 = vld [vmem:[#allocation5 + $0xf80] sm:$0xff]
        %v704 = vld [vmem:[#allocation5 + $0xf88] sm:$0xff]
        %v705 = vld [vmem:[#allocation5 + $0xf90] sm:$0xff]
        %v706 = vld [vmem:[#allocation5 + $0xf98] sm:$0xff]
        %v707 = vld [vmem:[#allocation5 + $0xfa0] sm:$0xff]
        %v708 = vld [vmem:[#allocation5 + $0xfa8] sm:$0xff]
        %v709 = vld [vmem:[#allocation5 + $0xfb0] sm:$0xff]
        %v710 = vld [vmem:[#allocation5 + $0xfb8] sm:$0xff]
        %v711 = vld [vmem:[#allocation5 + $0xfc0] sm:$0xff]
        %v712 = vld [vmem:[#allocation5 + $0xfc8] sm:$0xff]
        %v713 = vld [vmem:[#allocation5 + $0xfd0] sm:$0xff]
        %v714 = vld [vmem:[#allocation5 + $0xfd8] sm:$0xff]
        %v715 = vld [vmem:[#allocation5 + $0xfe0] sm:$0xff]
        %v716 = vld [vmem:[#allocation5 + $0xfe8] sm:$0xff]
        %v717 = vld [vmem:[#allocation5 + $0xff0] sm:$0xff]
        %v718 = vld [vmem:[#allocation5 + $0xff8] sm:$0xff]
        %v727 = vunpack.c.l.b16 %v199
        %v728 = vunpack.c.h.b16 %v199
        %v729 = vunpack.c.l.b16 %v200
        %v730 = vunpack.c.h.b16 %v200
        %v731 = vunpack.c.l.b16 %v201
        %v732 = vunpack.c.h.b16 %v201
        %v733 = vunpack.c.l.b16 %v202
        %v734 = vunpack.c.h.b16 %v202
        %v735 = vunpack.c.l.b16 %v203
        %v736 = vunpack.c.h.b16 %v203
        %v737 = vunpack.c.l.b16 %v204
        %v738 = vunpack.c.h.b16 %v204
        %v739 = vunpack.c.l.b16 %v205
        %v740 = vunpack.c.h.b16 %v205
        %v741 = vunpack.c.l.b16 %v206
        %v742 = vunpack.c.h.b16 %v206
        %v743 = vpack.c.b16 %v729, %v727
        %v744 = vpack.c.b16 %v730, %v728
        %v745 = vpack.c.b16 %v733, %v731
        %v746 = vpack.c.b16 %v734, %v732
        %v747 = vpack.c.b16 %v737, %v735
        %v748 = vpack.c.b16 %v738, %v736
        %v749 = vpack.c.b16 %v741, %v739
        %v750 = vpack.c.b16 %v742, %v740
        %v1271 = vunpack.c.l.b16 %v207
        %v1272 = vunpack.c.h.b16 %v207
        %v1273 = vunpack.c.l.b16 %v208
        %v1274 = vunpack.c.h.b16 %v208
        %v1275 = vunpack.c.l.b16 %v209
        %v1276 = vunpack.c.h.b16 %v209
        %v1277 = vunpack.c.l.b16 %v210
        %v1278 = vunpack.c.h.b16 %v210
        %v1279 = vunpack.c.l.b16 %v211
        %v1280 = vunpack.c.h.b16 %v211
        %v1281 = vunpack.c.l.b16 %v212
        %v1282 = vunpack.c.h.b16 %v212
        %v1283 = vunpack.c.l.b16 %v213
        %v1284 = vunpack.c.h.b16 %v213
        %v1285 = vunpack.c.l.b16 %v214
        %v1286 = vunpack.c.h.b16 %v214
        %v1287 = vunpack.c.l.b16 %v215
        %v1288 = vunpack.c.h.b16 %v215
        %v1289 = vunpack.c.l.b16 %v216
        %v1290 = vunpack.c.h.b16 %v216
        %v1291 = vunpack.c.l.b16 %v217
        %v1292 = vunpack.c.h.b16 %v217
        %v1293 = vunpack.c.l.b16 %v218
        %v1294 = vunpack.c.h.b16 %v218
        %v1295 = vunpack.c.l.b16 %v219
        %v1296 = vunpack.c.h.b16 %v219
        %v1297 = vunpack.c.l.b16 %v220
        %v1298 = vunpack.c.h.b16 %v220
        %v1299 = vunpack.c.l.b16 %v221
        %v1300 = vunpack.c.h.b16 %v221
        %v1301 = vunpack.c.l.b16 %v222
        %v1302 = vunpack.c.h.b16 %v222
        %v1303 = vunpack.c.l.b16 %v223
        %v1304 = vunpack.c.h.b16 %v223
        %v1305 = vunpack.c.l.b16 %v224
        %v1306 = vunpack.c.h.b16 %v224
        %v1307 = vunpack.c.l.b16 %v225
        %v1308 = vunpack.c.h.b16 %v225
        %v1309 = vunpack.c.l.b16 %v226
        %v1310 = vunpack.c.h.b16 %v226
        %v1311 = vunpack.c.l.b16 %v227
        %v1312 = vunpack.c.h.b16 %v227
        %v1313 = vunpack.c.l.b16 %v228
        %v1314 = vunpack.c.h.b16 %v228
        %v1315 = vunpack.c.l.b16 %v229
        %v1316 = vunpack.c.h.b16 %v229
        %v1317 = vunpack.c.l.b16 %v230
        %v1318 = vunpack.c.h.b16 %v230
        %v1319 = vunpack.c.l.b16 %v231
        %v1320 = vunpack.c.h.b16 %v231
        %v1321 = vunpack.c.l.b16 %v232
        %v1322 = vunpack.c.h.b16 %v232
        %v1323 = vunpack.c.l.b16 %v233
        %v1324 = vunpack.c.h.b16 %v233
        %v1325 = vunpack.c.l.b16 %v234
        %v1326 = vunpack.c.h.b16 %v234
        %v1327 = vunpack.c.l.b16 %v235
        %v1328 = vunpack.c.h.b16 %v235
        %v1329 = vunpack.c.l.b16 %v236
        %v1330 = vunpack.c.h.b16 %v236
        %v1331 = vunpack.c.l.b16 %v237
        %v1332 = vunpack.c.h.b16 %v237
        %v1333 = vunpack.c.l.b16 %v238
        %v1334 = vunpack.c.h.b16 %v238
        %v1335 = vunpack.c.l.b16 %v239
        %v1336 = vunpack.c.h.b16 %v239
        %v1337 = vunpack.c.l.b16 %v240
        %v1338 = vunpack.c.h.b16 %v240
        %v1339 = vunpack.c.l.b16 %v241
        %v1340 = vunpack.c.h.b16 %v241
        %v1341 = vunpack.c.l.b16 %v242
        %v1342 = vunpack.c.h.b16 %v242
        %v1343 = vunpack.c.l.b16 %v243
        %v1344 = vunpack.c.h.b16 %v243
        %v1345 = vunpack.c.l.b16 %v244
        %v1346 = vunpack.c.h.b16 %v244
        %v1347 = vunpack.c.l.b16 %v245
        %v1348 = vunpack.c.h.b16 %v245
        %v1349 = vunpack.c.l.b16 %v246
        %v1350 = vunpack.c.h.b16 %v246
        %v1351 = vunpack.c.l.b16 %v247
        %v1352 = vunpack.c.h.b16 %v247
        %v1353 = vunpack.c.l.b16 %v248
        %v1354 = vunpack.c.h.b16 %v248
        %v1355 = vunpack.c.l.b16 %v249
        %v1356 = vunpack.c.h.b16 %v249
        %v1357 = vunpack.c.l.b16 %v250
        %v1358 = vunpack.c.h.b16 %v250
        %v1359 = vunpack.c.l.b16 %v251
        %v1360 = vunpack.c.h.b16 %v251
        %v1361 = vunpack.c.l.b16 %v252
        %v1362 = vunpack.c.h.b16 %v252
        %v1363 = vunpack.c.l.b16 %v253
        %v1364 = vunpack.c.h.b16 %v253
        %v1365 = vunpack.c.l.b16 %v254
        %v1366 = vunpack.c.h.b16 %v254
        %v1367 = vunpack.c.l.b16 %v255
        %v1368 = vunpack.c.h.b16 %v255
        %v1369 = vunpack.c.l.b16 %v256
        %v1370 = vunpack.c.h.b16 %v256
        %v1371 = vunpack.c.l.b16 %v257
        %v1372 = vunpack.c.h.b16 %v257
        %v1373 = vunpack.c.l.b16 %v258
        %v1374 = vunpack.c.h.b16 %v258
        %v1375 = vunpack.c.l.b16 %v259
        %v1376 = vunpack.c.h.b16 %v259
        %v1377 = vunpack.c.l.b16 %v260
        %v1378 = vunpack.c.h.b16 %v260
        %v1379 = vunpack.c.l.b16 %v261
        %v1380 = vunpack.c.h.b16 %v261
        %v1381 = vunpack.c.l.b16 %v262
        %v1382 = vunpack.c.h.b16 %v262
        %v1383 = vunpack.c.l.b16 %v263
        %v1384 = vunpack.c.h.b16 %v263
        %v1385 = vunpack.c.l.b16 %v264
        %v1386 = vunpack.c.h.b16 %v264
        %v1387 = vunpack.c.l.b16 %v265
        %v1388 = vunpack.c.h.b16 %v265
        %v1389 = vunpack.c.l.b16 %v266
        %v1390 = vunpack.c.h.b16 %v266
        %v1391 = vunpack.c.l.b16 %v267
        %v1392 = vunpack.c.h.b16 %v267
        %v1393 = vunpack.c.l.b16 %v268
        %v1394 = vunpack.c.h.b16 %v268
        %v1395 = vunpack.c.l.b16 %v269
        %v1396 = vunpack.c.h.b16 %v269
        %v1397 = vunpack.c.l.b16 %v270
        %v1398 = vunpack.c.h.b16 %v270
        %v1399 = vunpack.c.l.b16 %v271
        %v1400 = vunpack.c.h.b16 %v271
        %v1401 = vunpack.c.l.b16 %v272
        %v1402 = vunpack.c.h.b16 %v272
        %v1403 = vunpack.c.l.b16 %v273
        %v1404 = vunpack.c.h.b16 %v273
        %v1405 = vunpack.c.l.b16 %v274
        %v1406 = vunpack.c.h.b16 %v274
        %v1407 = vunpack.c.l.b16 %v275
        %v1408 = vunpack.c.h.b16 %v275
        %v1409 = vunpack.c.l.b16 %v276
        %v1410 = vunpack.c.h.b16 %v276
        %v1411 = vunpack.c.l.b16 %v277
        %v1412 = vunpack.c.h.b16 %v277
        %v1413 = vunpack.c.l.b16 %v278
        %v1414 = vunpack.c.h.b16 %v278
        %v1415 = vunpack.c.l.b16 %v279
        %v1416 = vunpack.c.h.b16 %v279
        %v1417 = vunpack.c.l.b16 %v280
        %v1418 = vunpack.c.h.b16 %v280
        %v1419 = vunpack.c.l.b16 %v281
        %v1420 = vunpack.c.h.b16 %v281
        %v1421 = vunpack.c.l.b16 %v282
        %v1422 = vunpack.c.h.b16 %v282
        %v1423 = vunpack.c.l.b16 %v283
        %v1424 = vunpack.c.h.b16 %v283
        %v1425 = vunpack.c.l.b16 %v284
        %v1426 = vunpack.c.h.b16 %v284
        %v1427 = vunpack.c.l.b16 %v285
        %v1428 = vunpack.c.h.b16 %v285
        %v1429 = vunpack.c.l.b16 %v286
        %v1430 = vunpack.c.h.b16 %v286
        %v1431 = vunpack.c.l.b16 %v287
        %v1432 = vunpack.c.h.b16 %v287
        %v1433 = vunpack.c.l.b16 %v288
        %v1434 = vunpack.c.h.b16 %v288
        %v1435 = vunpack.c.l.b16 %v289
        %v1436 = vunpack.c.h.b16 %v289
        %v1437 = vunpack.c.l.b16 %v290
        %v1438 = vunpack.c.h.b16 %v290
        %v1439 = vunpack.c.l.b16 %v291
        %v1440 = vunpack.c.h.b16 %v291
        %v1441 = vunpack.c.l.b16 %v292
        %v1442 = vunpack.c.h.b16 %v292
        %v1443 = vunpack.c.l.b16 %v293
        %v1444 = vunpack.c.h.b16 %v293
        %v1445 = vunpack.c.l.b16 %v294
        %v1446 = vunpack.c.h.b16 %v294
        %v1447 = vunpack.c.l.b16 %v295
        %v1448 = vunpack.c.h.b16 %v295
        %v1449 = vunpack.c.l.b16 %v296
        %v1450 = vunpack.c.h.b16 %v296
        %v1451 = vunpack.c.l.b16 %v297
        %v1452 = vunpack.c.h.b16 %v297
        %v1453 = vunpack.c.l.b16 %v298
        %v1454 = vunpack.c.h.b16 %v298
        %v1455 = vunpack.c.l.b16 %v299
        %v1456 = vunpack.c.h.b16 %v299
        %v1457 = vunpack.c.l.b16 %v300
        %v1458 = vunpack.c.h.b16 %v300
        %v1459 = vunpack.c.l.b16 %v301
        %v1460 = vunpack.c.h.b16 %v301
        %v1461 = vunpack.c.l.b16 %v302
        %v1462 = vunpack.c.h.b16 %v302
        %v1463 = vunpack.c.l.b16 %v303
        %v1464 = vunpack.c.h.b16 %v303
        %v1465 = vunpack.c.l.b16 %v304
        %v1466 = vunpack.c.h.b16 %v304
        %v1467 = vunpack.c.l.b16 %v305
        %v1468 = vunpack.c.h.b16 %v305
        %v1469 = vunpack.c.l.b16 %v306
        %v1470 = vunpack.c.h.b16 %v306
        %v1471 = vunpack.c.l.b16 %v307
        %v1472 = vunpack.c.h.b16 %v307
        %v1473 = vunpack.c.l.b16 %v308
        %v1474 = vunpack.c.h.b16 %v308
        %v1475 = vunpack.c.l.b16 %v309
        %v1476 = vunpack.c.h.b16 %v309
        %v1477 = vunpack.c.l.b16 %v310
        %v1478 = vunpack.c.h.b16 %v310
        %v1479 = vunpack.c.l.b16 %v311
        %v1480 = vunpack.c.h.b16 %v311
        %v1481 = vunpack.c.l.b16 %v312
        %v1482 = vunpack.c.h.b16 %v312
        %v1483 = vunpack.c.l.b16 %v313
        %v1484 = vunpack.c.h.b16 %v313
        %v1485 = vunpack.c.l.b16 %v314
        %v1486 = vunpack.c.h.b16 %v314
        %v1487 = vunpack.c.l.b16 %v315
        %v1488 = vunpack.c.h.b16 %v315
        %v1489 = vunpack.c.l.b16 %v316
        %v1490 = vunpack.c.h.b16 %v316
        %v1491 = vunpack.c.l.b16 %v317
        %v1492 = vunpack.c.h.b16 %v317
        %v1493 = vunpack.c.l.b16 %v318
        %v1494 = vunpack.c.h.b16 %v318
        %v1495 = vunpack.c.l.b16 %v319
        %v1496 = vunpack.c.h.b16 %v319
        %v1497 = vunpack.c.l.b16 %v320
        %v1498 = vunpack.c.h.b16 %v320
        %v1499 = vunpack.c.l.b16 %v321
        %v1500 = vunpack.c.h.b16 %v321
        %v1501 = vunpack.c.l.b16 %v322
        %v1502 = vunpack.c.h.b16 %v322
        %v1503 = vunpack.c.l.b16 %v323
        %v1504 = vunpack.c.h.b16 %v323
        %v1505 = vunpack.c.l.b16 %v324
        %v1506 = vunpack.c.h.b16 %v324
        %v1507 = vunpack.c.l.b16 %v325
        %v1508 = vunpack.c.h.b16 %v325
        %v1509 = vunpack.c.l.b16 %v326
        %v1510 = vunpack.c.h.b16 %v326
        %v1511 = vunpack.c.l.b16 %v327
        %v1512 = vunpack.c.h.b16 %v327
        %v1513 = vunpack.c.l.b16 %v328
        %v1514 = vunpack.c.h.b16 %v328
        %v1515 = vunpack.c.l.b16 %v329
        %v1516 = vunpack.c.h.b16 %v329
        %v1517 = vunpack.c.l.b16 %v330
        %v1518 = vunpack.c.h.b16 %v330
        %v1519 = vunpack.c.l.b16 %v331
        %v1520 = vunpack.c.h.b16 %v331
        %v1521 = vunpack.c.l.b16 %v332
        %v1522 = vunpack.c.h.b16 %v332
        %v1523 = vunpack.c.l.b16 %v333
        %v1524 = vunpack.c.h.b16 %v333
        %v1525 = vunpack.c.l.b16 %v334
        %v1526 = vunpack.c.h.b16 %v334
        %v1527 = vunpack.c.l.b16 %v335
        %v1528 = vunpack.c.h.b16 %v335
        %v1529 = vunpack.c.l.b16 %v336
        %v1530 = vunpack.c.h.b16 %v336
        %v1531 = vunpack.c.l.b16 %v337
        %v1532 = vunpack.c.h.b16 %v337
        %v1533 = vunpack.c.l.b16 %v338
        %v1534 = vunpack.c.h.b16 %v338
        %v1535 = vunpack.c.l.b16 %v339
        %v1536 = vunpack.c.h.b16 %v339
        %v1537 = vunpack.c.l.b16 %v340
        %v1538 = vunpack.c.h.b16 %v340
        %v1539 = vunpack.c.l.b16 %v341
        %v1540 = vunpack.c.h.b16 %v341
        %v1541 = vunpack.c.l.b16 %v342
        %v1542 = vunpack.c.h.b16 %v342
        %v1543 = vunpack.c.l.b16 %v343
        %v1544 = vunpack.c.h.b16 %v343
        %v1545 = vunpack.c.l.b16 %v344
        %v1546 = vunpack.c.h.b16 %v344
        %v1547 = vunpack.c.l.b16 %v345
        %v1548 = vunpack.c.h.b16 %v345
        %v1549 = vunpack.c.l.b16 %v346
        %v1550 = vunpack.c.h.b16 %v346
        %v1551 = vunpack.c.l.b16 %v347
        %v1552 = vunpack.c.h.b16 %v347
        %v1553 = vunpack.c.l.b16 %v348
        %v1554 = vunpack.c.h.b16 %v348
        %v1555 = vunpack.c.l.b16 %v349
        %v1556 = vunpack.c.h.b16 %v349
        %v1557 = vunpack.c.l.b16 %v350
        %v1558 = vunpack.c.h.b16 %v350
        %v1559 = vunpack.c.l.b16 %v351
        %v1560 = vunpack.c.h.b16 %v351
        %v1561 = vunpack.c.l.b16 %v352
        %v1562 = vunpack.c.h.b16 %v352
        %v1563 = vunpack.c.l.b16 %v353
        %v1564 = vunpack.c.h.b16 %v353
        %v1565 = vunpack.c.l.b16 %v354
        %v1566 = vunpack.c.h.b16 %v354
        %v1567 = vunpack.c.l.b16 %v355
        %v1568 = vunpack.c.h.b16 %v355
        %v1569 = vunpack.c.l.b16 %v356
        %v1570 = vunpack.c.h.b16 %v356
        %v1571 = vunpack.c.l.b16 %v357
        %v1572 = vunpack.c.h.b16 %v357
        %v1573 = vunpack.c.l.b16 %v358
        %v1574 = vunpack.c.h.b16 %v358
        %v1575 = vunpack.c.l.b16 %v359
        %v1576 = vunpack.c.h.b16 %v359
        %v1577 = vunpack.c.l.b16 %v360
        %v1578 = vunpack.c.h.b16 %v360
        %v1579 = vunpack.c.l.b16 %v361
        %v1580 = vunpack.c.h.b16 %v361
        %v1581 = vunpack.c.l.b16 %v362
        %v1582 = vunpack.c.h.b16 %v362
        %v1583 = vunpack.c.l.b16 %v363
        %v1584 = vunpack.c.h.b16 %v363
        %v1585 = vunpack.c.l.b16 %v364
        %v1586 = vunpack.c.h.b16 %v364
        %v1587 = vunpack.c.l.b16 %v365
        %v1588 = vunpack.c.h.b16 %v365
        %v1589 = vunpack.c.l.b16 %v366
        %v1590 = vunpack.c.h.b16 %v366
        %v1591 = vunpack.c.l.b16 %v367
        %v1592 = vunpack.c.h.b16 %v367
        %v1593 = vunpack.c.l.b16 %v368
        %v1594 = vunpack.c.h.b16 %v368
        %v1595 = vunpack.c.l.b16 %v369
        %v1596 = vunpack.c.h.b16 %v369
        %v1597 = vunpack.c.l.b16 %v370
        %v1598 = vunpack.c.h.b16 %v370
        %v1599 = vunpack.c.l.b16 %v371
        %v1600 = vunpack.c.h.b16 %v371
        %v1601 = vunpack.c.l.b16 %v372
        %v1602 = vunpack.c.h.b16 %v372
        %v1603 = vunpack.c.l.b16 %v373
        %v1604 = vunpack.c.h.b16 %v373
        %v1605 = vunpack.c.l.b16 %v374
        %v1606 = vunpack.c.h.b16 %v374
        %v1607 = vunpack.c.l.b16 %v375
        %v1608 = vunpack.c.h.b16 %v375
        %v1609 = vunpack.c.l.b16 %v376
        %v1610 = vunpack.c.h.b16 %v376
        %v1611 = vunpack.c.l.b16 %v377
        %v1612 = vunpack.c.h.b16 %v377
        %v1613 = vunpack.c.l.b16 %v378
        %v1614 = vunpack.c.h.b16 %v378
        %v1615 = vunpack.c.l.b16 %v379
        %v1616 = vunpack.c.h.b16 %v379
        %v1617 = vunpack.c.l.b16 %v380
        %v1618 = vunpack.c.h.b16 %v380
        %v1619 = vunpack.c.l.b16 %v381
        %v1620 = vunpack.c.h.b16 %v381
        %v1621 = vunpack.c.l.b16 %v382
        %v1622 = vunpack.c.h.b16 %v382
        %v1623 = vunpack.c.l.b16 %v383
        %v1624 = vunpack.c.h.b16 %v383
        %v1625 = vunpack.c.l.b16 %v384
        %v1626 = vunpack.c.h.b16 %v384
        %v1627 = vunpack.c.l.b16 %v385
        %v1628 = vunpack.c.h.b16 %v385
        %v1629 = vunpack.c.l.b16 %v386
        %v1630 = vunpack.c.h.b16 %v386
        %v1631 = vunpack.c.l.b16 %v387
        %v1632 = vunpack.c.h.b16 %v387
        %v1633 = vunpack.c.l.b16 %v388
        %v1634 = vunpack.c.h.b16 %v388
        %v1635 = vunpack.c.l.b16 %v389
        %v1636 = vunpack.c.h.b16 %v389
        %v1637 = vunpack.c.l.b16 %v390
        %v1638 = vunpack.c.h.b16 %v390
        %v1639 = vunpack.c.l.b16 %v391
        %v1640 = vunpack.c.h.b16 %v391
        %v1641 = vunpack.c.l.b16 %v392
        %v1642 = vunpack.c.h.b16 %v392
        %v1643 = vunpack.c.l.b16 %v393
        %v1644 = vunpack.c.h.b16 %v393
        %v1645 = vunpack.c.l.b16 %v394
        %v1646 = vunpack.c.h.b16 %v394
        %v1647 = vunpack.c.l.b16 %v395
        %v1648 = vunpack.c.h.b16 %v395
        %v1649 = vunpack.c.l.b16 %v396
        %v1650 = vunpack.c.h.b16 %v396
        %v1651 = vunpack.c.l.b16 %v397
        %v1652 = vunpack.c.h.b16 %v397
        %v1653 = vunpack.c.l.b16 %v398
        %v1654 = vunpack.c.h.b16 %v398
        %v1655 = vunpack.c.l.b16 %v399
        %v1656 = vunpack.c.h.b16 %v399
        %v1657 = vunpack.c.l.b16 %v400
        %v1658 = vunpack.c.h.b16 %v400
        %v1659 = vunpack.c.l.b16 %v401
        %v1660 = vunpack.c.h.b16 %v401
        %v1661 = vunpack.c.l.b16 %v402
        %v1662 = vunpack.c.h.b16 %v402
        %v1663 = vunpack.c.l.b16 %v403
        %v1664 = vunpack.c.h.b16 %v403
        %v1665 = vunpack.c.l.b16 %v404
        %v1666 = vunpack.c.h.b16 %v404
        %v1667 = vunpack.c.l.b16 %v405
        %v1668 = vunpack.c.h.b16 %v405
        %v1669 = vunpack.c.l.b16 %v406
        %v1670 = vunpack.c.h.b16 %v406
        %v1671 = vunpack.c.l.b16 %v407
        %v1672 = vunpack.c.h.b16 %v407
        %v1673 = vunpack.c.l.b16 %v408
        %v1674 = vunpack.c.h.b16 %v408
        %v1675 = vunpack.c.l.b16 %v409
        %v1676 = vunpack.c.h.b16 %v409
        %v1677 = vunpack.c.l.b16 %v410
        %v1678 = vunpack.c.h.b16 %v410
        %v1679 = vunpack.c.l.b16 %v411
        %v1680 = vunpack.c.h.b16 %v411
        %v1681 = vunpack.c.l.b16 %v412
        %v1682 = vunpack.c.h.b16 %v412
        %v1683 = vunpack.c.l.b16 %v413
        %v1684 = vunpack.c.h.b16 %v413
        %v1685 = vunpack.c.l.b16 %v414
        %v1686 = vunpack.c.h.b16 %v414
        %v1687 = vunpack.c.l.b16 %v415
        %v1688 = vunpack.c.h.b16 %v415
        %v1689 = vunpack.c.l.b16 %v416
        %v1690 = vunpack.c.h.b16 %v416
        %v1691 = vunpack.c.l.b16 %v417
        %v1692 = vunpack.c.h.b16 %v417
        %v1693 = vunpack.c.l.b16 %v418
        %v1694 = vunpack.c.h.b16 %v418
        %v1695 = vunpack.c.l.b16 %v419
        %v1696 = vunpack.c.h.b16 %v419
        %v1697 = vunpack.c.l.b16 %v420
        %v1698 = vunpack.c.h.b16 %v420
        %v1699 = vunpack.c.l.b16 %v421
        %v1700 = vunpack.c.h.b16 %v421
        %v1701 = vunpack.c.l.b16 %v422
        %v1702 = vunpack.c.h.b16 %v422
        %v1703 = vunpack.c.l.b16 %v423
        %v1704 = vunpack.c.h.b16 %v423
        %v1705 = vunpack.c.l.b16 %v424
        %v1706 = vunpack.c.h.b16 %v424
        %v1707 = vunpack.c.l.b16 %v425
        %v1708 = vunpack.c.h.b16 %v425
        %v1709 = vunpack.c.l.b16 %v426
        %v1710 = vunpack.c.h.b16 %v426
        %v1711 = vunpack.c.l.b16 %v427
        %v1712 = vunpack.c.h.b16 %v427
        %v1713 = vunpack.c.l.b16 %v428
        %v1714 = vunpack.c.h.b16 %v428
        %v1715 = vunpack.c.l.b16 %v429
        %v1716 = vunpack.c.h.b16 %v429
        %v1717 = vunpack.c.l.b16 %v430
        %v1718 = vunpack.c.h.b16 %v430
        %v1719 = vunpack.c.l.b16 %v431
        %v1720 = vunpack.c.h.b16 %v431
        %v1721 = vunpack.c.l.b16 %v432
        %v1722 = vunpack.c.h.b16 %v432
        %v1723 = vunpack.c.l.b16 %v433
        %v1724 = vunpack.c.h.b16 %v433
        %v1725 = vunpack.c.l.b16 %v434
        %v1726 = vunpack.c.h.b16 %v434
        %v1727 = vunpack.c.l.b16 %v435
        %v1728 = vunpack.c.h.b16 %v435
        %v1729 = vunpack.c.l.b16 %v436
        %v1730 = vunpack.c.h.b16 %v436
        %v1731 = vunpack.c.l.b16 %v437
        %v1732 = vunpack.c.h.b16 %v437
        %v1733 = vunpack.c.l.b16 %v438
        %v1734 = vunpack.c.h.b16 %v438
        %v1735 = vunpack.c.l.b16 %v439
        %v1736 = vunpack.c.h.b16 %v439
        %v1737 = vunpack.c.l.b16 %v440
        %v1738 = vunpack.c.h.b16 %v440
        %v1739 = vunpack.c.l.b16 %v441
        %v1740 = vunpack.c.h.b16 %v441
        %v1741 = vunpack.c.l.b16 %v442
        %v1742 = vunpack.c.h.b16 %v442
        %v1743 = vunpack.c.l.b16 %v443
        %v1744 = vunpack.c.h.b16 %v443
        %v1745 = vunpack.c.l.b16 %v444
        %v1746 = vunpack.c.h.b16 %v444
        %v1747 = vunpack.c.l.b16 %v445
        %v1748 = vunpack.c.h.b16 %v445
        %v1749 = vunpack.c.l.b16 %v446
        %v1750 = vunpack.c.h.b16 %v446
        %v1751 = vunpack.c.l.b16 %v447
        %v1752 = vunpack.c.h.b16 %v447
        %v1753 = vunpack.c.l.b16 %v448
        %v1754 = vunpack.c.h.b16 %v448
        %v1755 = vunpack.c.l.b16 %v449
        %v1756 = vunpack.c.h.b16 %v449
        %v1757 = vunpack.c.l.b16 %v450
        %v1758 = vunpack.c.h.b16 %v450
        %v1759 = vunpack.c.l.b16 %v451
        %v1760 = vunpack.c.h.b16 %v451
        %v1761 = vunpack.c.l.b16 %v452
        %v1762 = vunpack.c.h.b16 %v452
        %v1763 = vunpack.c.l.b16 %v453
        %v1764 = vunpack.c.h.b16 %v453
        %v1765 = vunpack.c.l.b16 %v454
        %v1766 = vunpack.c.h.b16 %v454
        %v1767 = vunpack.c.l.b16 %v455
        %v1768 = vunpack.c.h.b16 %v455
        %v1769 = vunpack.c.l.b16 %v456
        %v1770 = vunpack.c.h.b16 %v456
        %v1771 = vunpack.c.l.b16 %v457
        %v1772 = vunpack.c.h.b16 %v457
        %v1773 = vunpack.c.l.b16 %v458
        %v1774 = vunpack.c.h.b16 %v458
        %v1775 = vunpack.c.l.b16 %v459
        %v1776 = vunpack.c.h.b16 %v459
        %v1777 = vunpack.c.l.b16 %v460
        %v1778 = vunpack.c.h.b16 %v460
        %v1779 = vunpack.c.l.b16 %v461
        %v1780 = vunpack.c.h.b16 %v461
        %v1781 = vunpack.c.l.b16 %v462
        %v1782 = vunpack.c.h.b16 %v462
        %v1783 = vunpack.c.l.b16 %v463
        %v1784 = vunpack.c.h.b16 %v463
        %v1785 = vunpack.c.l.b16 %v464
        %v1786 = vunpack.c.h.b16 %v464
        %v1787 = vunpack.c.l.b16 %v465
        %v1788 = vunpack.c.h.b16 %v465
        %v1789 = vunpack.c.l.b16 %v466
        %v1790 = vunpack.c.h.b16 %v466
        %v1791 = vunpack.c.l.b16 %v467
        %v1792 = vunpack.c.h.b16 %v467
        %v1793 = vunpack.c.l.b16 %v468
        %v1794 = vunpack.c.h.b16 %v468
        %v1795 = vunpack.c.l.b16 %v469
        %v1796 = vunpack.c.h.b16 %v469
        %v1797 = vunpack.c.l.b16 %v470
        %v1798 = vunpack.c.h.b16 %v470
        %v1799 = vunpack.c.l.b16 %v471
        %v1800 = vunpack.c.h.b16 %v471
        %v1801 = vunpack.c.l.b16 %v472
        %v1802 = vunpack.c.h.b16 %v472
        %v1803 = vunpack.c.l.b16 %v473
        %v1804 = vunpack.c.h.b16 %v473
        %v1805 = vunpack.c.l.b16 %v474
        %v1806 = vunpack.c.h.b16 %v474
        %v1807 = vunpack.c.l.b16 %v475
        %v1808 = vunpack.c.h.b16 %v475
        %v1809 = vunpack.c.l.b16 %v476
        %v1810 = vunpack.c.h.b16 %v476
        %v1811 = vunpack.c.l.b16 %v477
        %v1812 = vunpack.c.h.b16 %v477
        %v1813 = vunpack.c.l.b16 %v478
        %v1814 = vunpack.c.h.b16 %v478
        %v1815 = vunpack.c.l.b16 %v479
        %v1816 = vunpack.c.h.b16 %v479
        %v1817 = vunpack.c.l.b16 %v480
        %v1818 = vunpack.c.h.b16 %v480
        %v1819 = vunpack.c.l.b16 %v481
        %v1820 = vunpack.c.h.b16 %v481
        %v1821 = vunpack.c.l.b16 %v482
        %v1822 = vunpack.c.h.b16 %v482
        %v1823 = vunpack.c.l.b16 %v483
        %v1824 = vunpack.c.h.b16 %v483
        %v1825 = vunpack.c.l.b16 %v484
        %v1826 = vunpack.c.h.b16 %v484
        %v1827 = vunpack.c.l.b16 %v485
        %v1828 = vunpack.c.h.b16 %v485
        %v1829 = vunpack.c.l.b16 %v486
        %v1830 = vunpack.c.h.b16 %v486
        %v1831 = vunpack.c.l.b16 %v487
        %v1832 = vunpack.c.h.b16 %v487
        %v1833 = vunpack.c.l.b16 %v488
        %v1834 = vunpack.c.h.b16 %v488
        %v1835 = vunpack.c.l.b16 %v489
        %v1836 = vunpack.c.h.b16 %v489
        %v1837 = vunpack.c.l.b16 %v490
        %v1838 = vunpack.c.h.b16 %v490
        %v1839 = vunpack.c.l.b16 %v491
        %v1840 = vunpack.c.h.b16 %v491
        %v1841 = vunpack.c.l.b16 %v492
        %v1842 = vunpack.c.h.b16 %v492
        %v1843 = vunpack.c.l.b16 %v493
        %v1844 = vunpack.c.h.b16 %v493
        %v1845 = vunpack.c.l.b16 %v494
        %v1846 = vunpack.c.h.b16 %v494
        %v1847 = vunpack.c.l.b16 %v495
        %v1848 = vunpack.c.h.b16 %v495
        %v1849 = vunpack.c.l.b16 %v496
        %v1850 = vunpack.c.h.b16 %v496
        %v1851 = vunpack.c.l.b16 %v497
        %v1852 = vunpack.c.h.b16 %v497
        %v1853 = vunpack.c.l.b16 %v498
        %v1854 = vunpack.c.h.b16 %v498
        %v1855 = vunpack.c.l.b16 %v499
        %v1856 = vunpack.c.h.b16 %v499
        %v1857 = vunpack.c.l.b16 %v500
        %v1858 = vunpack.c.h.b16 %v500
        %v1859 = vunpack.c.l.b16 %v501
        %v1860 = vunpack.c.h.b16 %v501
        %v1861 = vunpack.c.l.b16 %v502
        %v1862 = vunpack.c.h.b16 %v502
        %v1863 = vunpack.c.l.b16 %v503
        %v1864 = vunpack.c.h.b16 %v503
        %v1865 = vunpack.c.l.b16 %v504
        %v1866 = vunpack.c.h.b16 %v504
        %v1867 = vunpack.c.l.b16 %v505
        %v1868 = vunpack.c.h.b16 %v505
        %v1869 = vunpack.c.l.b16 %v506
        %v1870 = vunpack.c.h.b16 %v506
        %v1871 = vunpack.c.l.b16 %v507
        %v1872 = vunpack.c.h.b16 %v507
        %v1873 = vunpack.c.l.b16 %v508
        %v1874 = vunpack.c.h.b16 %v508
        %v1875 = vunpack.c.l.b16 %v509
        %v1876 = vunpack.c.h.b16 %v509
        %v1877 = vunpack.c.l.b16 %v510
        %v1878 = vunpack.c.h.b16 %v510
        %v1879 = vunpack.c.l.b16 %v511
        %v1880 = vunpack.c.h.b16 %v511
        %v1881 = vunpack.c.l.b16 %v512
        %v1882 = vunpack.c.h.b16 %v512
        %v1883 = vunpack.c.l.b16 %v513
        %v1884 = vunpack.c.h.b16 %v513
        %v1885 = vunpack.c.l.b16 %v514
        %v1886 = vunpack.c.h.b16 %v514
        %v1887 = vunpack.c.l.b16 %v515
        %v1888 = vunpack.c.h.b16 %v515
        %v1889 = vunpack.c.l.b16 %v516
        %v1890 = vunpack.c.h.b16 %v516
        %v1891 = vunpack.c.l.b16 %v517
        %v1892 = vunpack.c.h.b16 %v517
        %v1893 = vunpack.c.l.b16 %v518
        %v1894 = vunpack.c.h.b16 %v518
        %v1895 = vunpack.c.l.b16 %v519
        %v1896 = vunpack.c.h.b16 %v519
        %v1897 = vunpack.c.l.b16 %v520
        %v1898 = vunpack.c.h.b16 %v520
        %v1899 = vunpack.c.l.b16 %v521
        %v1900 = vunpack.c.h.b16 %v521
        %v1901 = vunpack.c.l.b16 %v522
        %v1902 = vunpack.c.h.b16 %v522
        %v1903 = vunpack.c.l.b16 %v523
        %v1904 = vunpack.c.h.b16 %v523
        %v1905 = vunpack.c.l.b16 %v524
        %v1906 = vunpack.c.h.b16 %v524
        %v1907 = vunpack.c.l.b16 %v525
        %v1908 = vunpack.c.h.b16 %v525
        %v1909 = vunpack.c.l.b16 %v526
        %v1910 = vunpack.c.h.b16 %v526
        %v1911 = vunpack.c.l.b16 %v527
        %v1912 = vunpack.c.h.b16 %v527
        %v1913 = vunpack.c.l.b16 %v528
        %v1914 = vunpack.c.h.b16 %v528
        %v1915 = vunpack.c.l.b16 %v529
        %v1916 = vunpack.c.h.b16 %v529
        %v1917 = vunpack.c.l.b16 %v530
        %v1918 = vunpack.c.h.b16 %v530
        %v1919 = vunpack.c.l.b16 %v531
        %v1920 = vunpack.c.h.b16 %v531
        %v1921 = vunpack.c.l.b16 %v532
        %v1922 = vunpack.c.h.b16 %v532
        %v1923 = vunpack.c.l.b16 %v533
        %v1924 = vunpack.c.h.b16 %v533
        %v1925 = vunpack.c.l.b16 %v534
        %v1926 = vunpack.c.h.b16 %v534
        %v1927 = vunpack.c.l.b16 %v535
        %v1928 = vunpack.c.h.b16 %v535
        %v1929 = vunpack.c.l.b16 %v536
        %v1930 = vunpack.c.h.b16 %v536
        %v1931 = vunpack.c.l.b16 %v537
        %v1932 = vunpack.c.h.b16 %v537
        %v1933 = vunpack.c.l.b16 %v538
        %v1934 = vunpack.c.h.b16 %v538
        %v1935 = vunpack.c.l.b16 %v539
        %v1936 = vunpack.c.h.b16 %v539
        %v1937 = vunpack.c.l.b16 %v540
        %v1938 = vunpack.c.h.b16 %v540
        %v1939 = vunpack.c.l.b16 %v541
        %v1940 = vunpack.c.h.b16 %v541
        %v1941 = vunpack.c.l.b16 %v542
        %v1942 = vunpack.c.h.b16 %v542
        %v1943 = vunpack.c.l.b16 %v543
        %v1944 = vunpack.c.h.b16 %v543
        %v1945 = vunpack.c.l.b16 %v544
        %v1946 = vunpack.c.h.b16 %v544
        %v1947 = vunpack.c.l.b16 %v545
        %v1948 = vunpack.c.h.b16 %v545
        %v1949 = vunpack.c.l.b16 %v546
        %v1950 = vunpack.c.h.b16 %v546
        %v1951 = vunpack.c.l.b16 %v547
        %v1952 = vunpack.c.h.b16 %v547
        %v1953 = vunpack.c.l.b16 %v548
        %v1954 = vunpack.c.h.b16 %v548
        %v1955 = vunpack.c.l.b16 %v549
        %v1956 = vunpack.c.h.b16 %v549
        %v1957 = vunpack.c.l.b16 %v550
        %v1958 = vunpack.c.h.b16 %v550
        %v1959 = vunpack.c.l.b16 %v551
        %v1960 = vunpack.c.h.b16 %v551
        %v1961 = vunpack.c.l.b16 %v552
        %v1962 = vunpack.c.h.b16 %v552
        %v1963 = vunpack.c.l.b16 %v553
        %v1964 = vunpack.c.h.b16 %v553
        %v1965 = vunpack.c.l.b16 %v554
        %v1966 = vunpack.c.h.b16 %v554
        %v1967 = vunpack.c.l.b16 %v555
        %v1968 = vunpack.c.h.b16 %v555
        %v1969 = vunpack.c.l.b16 %v556
        %v1970 = vunpack.c.h.b16 %v556
        %v1971 = vunpack.c.l.b16 %v557
        %v1972 = vunpack.c.h.b16 %v557
        %v1973 = vunpack.c.l.b16 %v558
        %v1974 = vunpack.c.h.b16 %v558
        %v1975 = vunpack.c.l.b16 %v559
        %v1976 = vunpack.c.h.b16 %v559
        %v1977 = vunpack.c.l.b16 %v560
        %v1978 = vunpack.c.h.b16 %v560
        %v1979 = vunpack.c.l.b16 %v561
        %v1980 = vunpack.c.h.b16 %v561
        %v1981 = vunpack.c.l.b16 %v562
        %v1982 = vunpack.c.h.b16 %v562
        %v1983 = vunpack.c.l.b16 %v563
        %v1984 = vunpack.c.h.b16 %v563
        %v1985 = vunpack.c.l.b16 %v564
        %v1986 = vunpack.c.h.b16 %v564
        %v1987 = vunpack.c.l.b16 %v565
        %v1988 = vunpack.c.h.b16 %v565
        %v1989 = vunpack.c.l.b16 %v566
        %v1990 = vunpack.c.h.b16 %v566
        %v1991 = vunpack.c.l.b16 %v567
        %v1992 = vunpack.c.h.b16 %v567
        %v1993 = vunpack.c.l.b16 %v568
        %v1994 = vunpack.c.h.b16 %v568
        %v1995 = vunpack.c.l.b16 %v569
        %v1996 = vunpack.c.h.b16 %v569
        %v1997 = vunpack.c.l.b16 %v570
        %v1998 = vunpack.c.h.b16 %v570
        %v1999 = vunpack.c.l.b16 %v571
        %v2000 = vunpack.c.h.b16 %v571
        %v2001 = vunpack.c.l.b16 %v572
        %v2002 = vunpack.c.h.b16 %v572
        %v2003 = vunpack.c.l.b16 %v573
        %v2004 = vunpack.c.h.b16 %v573
        %v2005 = vunpack.c.l.b16 %v574
        %v2006 = vunpack.c.h.b16 %v574
        %v2007 = vunpack.c.l.b16 %v575
        %v2008 = vunpack.c.h.b16 %v575
        %v2009 = vunpack.c.l.b16 %v576
        %v2010 = vunpack.c.h.b16 %v576
        %v2011 = vunpack.c.l.b16 %v577
        %v2012 = vunpack.c.h.b16 %v577
        %v2013 = vunpack.c.l.b16 %v578
        %v2014 = vunpack.c.h.b16 %v578
        %v2015 = vunpack.c.l.b16 %v579
        %v2016 = vunpack.c.h.b16 %v579
        %v2017 = vunpack.c.l.b16 %v580
        %v2018 = vunpack.c.h.b16 %v580
        %v2019 = vunpack.c.l.b16 %v581
        %v2020 = vunpack.c.h.b16 %v581
        %v2021 = vunpack.c.l.b16 %v582
        %v2022 = vunpack.c.h.b16 %v582
        %v2023 = vunpack.c.l.b16 %v583
        %v2024 = vunpack.c.h.b16 %v583
        %v2025 = vunpack.c.l.b16 %v584
        %v2026 = vunpack.c.h.b16 %v584
        %v2027 = vunpack.c.l.b16 %v585
        %v2028 = vunpack.c.h.b16 %v585
        %v2029 = vunpack.c.l.b16 %v586
        %v2030 = vunpack.c.h.b16 %v586
        %v2031 = vunpack.c.l.b16 %v587
        %v2032 = vunpack.c.h.b16 %v587
        %v2033 = vunpack.c.l.b16 %v588
        %v2034 = vunpack.c.h.b16 %v588
        %v2035 = vunpack.c.l.b16 %v589
        %v2036 = vunpack.c.h.b16 %v589
        %v2037 = vunpack.c.l.b16 %v590
        %v2038 = vunpack.c.h.b16 %v590
        %v2039 = vunpack.c.l.b16 %v591
        %v2040 = vunpack.c.h.b16 %v591
        %v2041 = vunpack.c.l.b16 %v592
        %v2042 = vunpack.c.h.b16 %v592
        %v2043 = vunpack.c.l.b16 %v593
        %v2044 = vunpack.c.h.b16 %v593
        %v2045 = vunpack.c.l.b16 %v594
        %v2046 = vunpack.c.h.b16 %v594
        %v2047 = vunpack.c.l.b16 %v595
        %v2048 = vunpack.c.h.b16 %v595
        %v2049 = vunpack.c.l.b16 %v596
        %v2050 = vunpack.c.h.b16 %v596
        %v2051 = vunpack.c.l.b16 %v597
        %v2052 = vunpack.c.h.b16 %v597
        %v2053 = vunpack.c.l.b16 %v598
        %v2054 = vunpack.c.h.b16 %v598
        %v2055 = vunpack.c.l.b16 %v599
        %v2056 = vunpack.c.h.b16 %v599
        %v2057 = vunpack.c.l.b16 %v600
        %v2058 = vunpack.c.h.b16 %v600
        %v2059 = vunpack.c.l.b16 %v601
        %v2060 = vunpack.c.h.b16 %v601
        %v2061 = vunpack.c.l.b16 %v602
        %v2062 = vunpack.c.h.b16 %v602
        %v2063 = vunpack.c.l.b16 %v603
        %v2064 = vunpack.c.h.b16 %v603
        %v2065 = vunpack.c.l.b16 %v604
        %v2066 = vunpack.c.h.b16 %v604
        %v2067 = vunpack.c.l.b16 %v605
        %v2068 = vunpack.c.h.b16 %v605
        %v2069 = vunpack.c.l.b16 %v606
        %v2070 = vunpack.c.h.b16 %v606
        %v2071 = vunpack.c.l.b16 %v607
        %v2072 = vunpack.c.h.b16 %v607
        %v2073 = vunpack.c.l.b16 %v608
        %v2074 = vunpack.c.h.b16 %v608
        %v2075 = vunpack.c.l.b16 %v609
        %v2076 = vunpack.c.h.b16 %v609
        %v2077 = vunpack.c.l.b16 %v610
        %v2078 = vunpack.c.h.b16 %v610
        %v2079 = vunpack.c.l.b16 %v611
        %v2080 = vunpack.c.h.b16 %v611
        %v2081 = vunpack.c.l.b16 %v612
        %v2082 = vunpack.c.h.b16 %v612
        %v2083 = vunpack.c.l.b16 %v613
        %v2084 = vunpack.c.h.b16 %v613
        %v2085 = vunpack.c.l.b16 %v614
        %v2086 = vunpack.c.h.b16 %v614
        %v2087 = vunpack.c.l.b16 %v615
        %v2088 = vunpack.c.h.b16 %v615
        %v2089 = vunpack.c.l.b16 %v616
        %v2090 = vunpack.c.h.b16 %v616
        %v2091 = vunpack.c.l.b16 %v617
        %v2092 = vunpack.c.h.b16 %v617
        %v2093 = vunpack.c.l.b16 %v618
        %v2094 = vunpack.c.h.b16 %v618
        %v2095 = vunpack.c.l.b16 %v619
        %v2096 = vunpack.c.h.b16 %v619
        %v2097 = vunpack.c.l.b16 %v620
        %v2098 = vunpack.c.h.b16 %v620
        %v2099 = vunpack.c.l.b16 %v621
        %v2100 = vunpack.c.h.b16 %v621
        %v2101 = vunpack.c.l.b16 %v622
        %v2102 = vunpack.c.h.b16 %v622
        %v2103 = vunpack.c.l.b16 %v623
        %v2104 = vunpack.c.h.b16 %v623
        %v2105 = vunpack.c.l.b16 %v624
        %v2106 = vunpack.c.h.b16 %v624
        %v2107 = vunpack.c.l.b16 %v625
        %v2108 = vunpack.c.h.b16 %v625
        %v2109 = vunpack.c.l.b16 %v626
        %v2110 = vunpack.c.h.b16 %v626
        %v2111 = vunpack.c.l.b16 %v627
        %v2112 = vunpack.c.h.b16 %v627
        %v2113 = vunpack.c.l.b16 %v628
        %v2114 = vunpack.c.h.b16 %v628
        %v2115 = vunpack.c.l.b16 %v629
        %v2116 = vunpack.c.h.b16 %v629
        %v2117 = vunpack.c.l.b16 %v630
        %v2118 = vunpack.c.h.b16 %v630
        %v2119 = vunpack.c.l.b16 %v631
        %v2120 = vunpack.c.h.b16 %v631
        %v2121 = vunpack.c.l.b16 %v632
        %v2122 = vunpack.c.h.b16 %v632
        %v2123 = vunpack.c.l.b16 %v633
        %v2124 = vunpack.c.h.b16 %v633
        %v2125 = vunpack.c.l.b16 %v634
        %v2126 = vunpack.c.h.b16 %v634
        %v2127 = vunpack.c.l.b16 %v635
        %v2128 = vunpack.c.h.b16 %v635
        %v2129 = vunpack.c.l.b16 %v636
        %v2130 = vunpack.c.h.b16 %v636
        %v2131 = vunpack.c.l.b16 %v637
        %v2132 = vunpack.c.h.b16 %v637
        %v2133 = vunpack.c.l.b16 %v638
        %v2134 = vunpack.c.h.b16 %v638
        %v2135 = vunpack.c.l.b16 %v639
        %v2136 = vunpack.c.h.b16 %v639
        %v2137 = vunpack.c.l.b16 %v640
        %v2138 = vunpack.c.h.b16 %v640
        %v2139 = vunpack.c.l.b16 %v641
        %v2140 = vunpack.c.h.b16 %v641
        %v2141 = vunpack.c.l.b16 %v642
        %v2142 = vunpack.c.h.b16 %v642
        %v2143 = vunpack.c.l.b16 %v643
        %v2144 = vunpack.c.h.b16 %v643
        %v2145 = vunpack.c.l.b16 %v644
        %v2146 = vunpack.c.h.b16 %v644
        %v2147 = vunpack.c.l.b16 %v645
        %v2148 = vunpack.c.h.b16 %v645
        %v2149 = vunpack.c.l.b16 %v646
        %v2150 = vunpack.c.h.b16 %v646
        %v2151 = vunpack.c.l.b16 %v647
        %v2152 = vunpack.c.h.b16 %v647
        %v2153 = vunpack.c.l.b16 %v648
        %v2154 = vunpack.c.h.b16 %v648
        %v2155 = vunpack.c.l.b16 %v649
        %v2156 = vunpack.c.h.b16 %v649
        %v2157 = vunpack.c.l.b16 %v650
        %v2158 = vunpack.c.h.b16 %v650
        %v2159 = vunpack.c.l.b16 %v651
        %v2160 = vunpack.c.h.b16 %v651
        %v2161 = vunpack.c.l.b16 %v652
        %v2162 = vunpack.c.h.b16 %v652
        %v2163 = vunpack.c.l.b16 %v653
        %v2164 = vunpack.c.h.b16 %v653
        %v2165 = vunpack.c.l.b16 %v654
        %v2166 = vunpack.c.h.b16 %v654
        %v2167 = vunpack.c.l.b16 %v655
        %v2168 = vunpack.c.h.b16 %v655
        %v2169 = vunpack.c.l.b16 %v656
        %v2170 = vunpack.c.h.b16 %v656
        %v2171 = vunpack.c.l.b16 %v657
        %v2172 = vunpack.c.h.b16 %v657
        %v2173 = vunpack.c.l.b16 %v658
        %v2174 = vunpack.c.h.b16 %v658
        %v2175 = vunpack.c.l.b16 %v659
        %v2176 = vunpack.c.h.b16 %v659
        %v2177 = vunpack.c.l.b16 %v660
        %v2178 = vunpack.c.h.b16 %v660
        %v2179 = vunpack.c.l.b16 %v661
        %v2180 = vunpack.c.h.b16 %v661
        %v2181 = vunpack.c.l.b16 %v662
        %v2182 = vunpack.c.h.b16 %v662
        %v2183 = vunpack.c.l.b16 %v663
        %v2184 = vunpack.c.h.b16 %v663
        %v2185 = vunpack.c.l.b16 %v664
        %v2186 = vunpack.c.h.b16 %v664
        %v2187 = vunpack.c.l.b16 %v665
        %v2188 = vunpack.c.h.b16 %v665
        %v2189 = vunpack.c.l.b16 %v666
        %v2190 = vunpack.c.h.b16 %v666
        %v2191 = vunpack.c.l.b16 %v667
        %v2192 = vunpack.c.h.b16 %v667
        %v2193 = vunpack.c.l.b16 %v668
        %v2194 = vunpack.c.h.b16 %v668
        %v2195 = vunpack.c.l.b16 %v669
        %v2196 = vunpack.c.h.b16 %v669
        %v2197 = vunpack.c.l.b16 %v670
        %v2198 = vunpack.c.h.b16 %v670
        %v2199 = vunpack.c.l.b16 %v671
        %v2200 = vunpack.c.h.b16 %v671
        %v2201 = vunpack.c.l.b16 %v672
        %v2202 = vunpack.c.h.b16 %v672
        %v2203 = vunpack.c.l.b16 %v673
        %v2204 = vunpack.c.h.b16 %v673
        %v2205 = vunpack.c.l.b16 %v674
        %v2206 = vunpack.c.h.b16 %v674
        %v2207 = vunpack.c.l.b16 %v675
        %v2208 = vunpack.c.h.b16 %v675
        %v2209 = vunpack.c.l.b16 %v676
        %v2210 = vunpack.c.h.b16 %v676
        %v2211 = vunpack.c.l.b16 %v677
        %v2212 = vunpack.c.h.b16 %v677
        %v2213 = vunpack.c.l.b16 %v678
        %v2214 = vunpack.c.h.b16 %v678
        %v2215 = vunpack.c.l.b16 %v679
        %v2216 = vunpack.c.h.b16 %v679
        %v2217 = vunpack.c.l.b16 %v680
        %v2218 = vunpack.c.h.b16 %v680
        %v2219 = vunpack.c.l.b16 %v681
        %v2220 = vunpack.c.h.b16 %v681
        %v2221 = vunpack.c.l.b16 %v682
        %v2222 = vunpack.c.h.b16 %v682
        %v2223 = vunpack.c.l.b16 %v683
        %v2224 = vunpack.c.h.b16 %v683
        %v2225 = vunpack.c.l.b16 %v684
        %v2226 = vunpack.c.h.b16 %v684
        %v2227 = vunpack.c.l.b16 %v685
        %v2228 = vunpack.c.h.b16 %v685
        %v2229 = vunpack.c.l.b16 %v686
        %v2230 = vunpack.c.h.b16 %v686
        %v2231 = vunpack.c.l.b16 %v687
        %v2232 = vunpack.c.h.b16 %v687
        %v2233 = vunpack.c.l.b16 %v688
        %v2234 = vunpack.c.h.b16 %v688
        %v2235 = vunpack.c.l.b16 %v689
        %v2236 = vunpack.c.h.b16 %v689
        %v2237 = vunpack.c.l.b16 %v690
        %v2238 = vunpack.c.h.b16 %v690
        %v2239 = vunpack.c.l.b16 %v691
        %v2240 = vunpack.c.h.b16 %v691
        %v2241 = vunpack.c.l.b16 %v692
        %v2242 = vunpack.c.h.b16 %v692
        %v2243 = vunpack.c.l.b16 %v693
        %v2244 = vunpack.c.h.b16 %v693
        %v2245 = vunpack.c.l.b16 %v694
        %v2246 = vunpack.c.h.b16 %v694
        %v2247 = vunpack.c.l.b16 %v695
        %v2248 = vunpack.c.h.b16 %v695
        %v2249 = vunpack.c.l.b16 %v696
        %v2250 = vunpack.c.h.b16 %v696
        %v2251 = vunpack.c.l.b16 %v697
        %v2252 = vunpack.c.h.b16 %v697
        %v2253 = vunpack.c.l.b16 %v698
        %v2254 = vunpack.c.h.b16 %v698
        %v2255 = vunpack.c.l.b16 %v699
        %v2256 = vunpack.c.h.b16 %v699
        %v2257 = vunpack.c.l.b16 %v700
        %v2258 = vunpack.c.h.b16 %v700
        %v2259 = vunpack.c.l.b16 %v701
        %v2260 = vunpack.c.h.b16 %v701
        %v2261 = vunpack.c.l.b16 %v702
        %v2262 = vunpack.c.h.b16 %v702
        %v2263 = vunpack.c.l.b16 %v703
        %v2264 = vunpack.c.h.b16 %v703
        %v2265 = vunpack.c.l.b16 %v704
        %v2266 = vunpack.c.h.b16 %v704
        %v2267 = vunpack.c.l.b16 %v705
        %v2268 = vunpack.c.h.b16 %v705
        %v2269 = vunpack.c.l.b16 %v706
        %v2270 = vunpack.c.h.b16 %v706
        %v2271 = vunpack.c.l.b16 %v707
        %v2272 = vunpack.c.h.b16 %v707
        %v2273 = vunpack.c.l.b16 %v708
        %v2274 = vunpack.c.h.b16 %v708
        %v2275 = vunpack.c.l.b16 %v709
        %v2276 = vunpack.c.h.b16 %v709
        %v2277 = vunpack.c.l.b16 %v710
        %v2278 = vunpack.c.h.b16 %v710
        %v2279 = vunpack.c.l.b16 %v711
        %v2280 = vunpack.c.h.b16 %v711
        %v2281 = vunpack.c.l.b16 %v712
        %v2282 = vunpack.c.h.b16 %v712
        %v2283 = vunpack.c.l.b16 %v713
        %v2284 = vunpack.c.h.b16 %v713
        %v2285 = vunpack.c.l.b16 %v714
        %v2286 = vunpack.c.h.b16 %v714
        %v2287 = vunpack.c.l.b16 %v715
        %v2288 = vunpack.c.h.b16 %v715
        %v2289 = vunpack.c.l.b16 %v716
        %v2290 = vunpack.c.h.b16 %v716
        %v2291 = vunpack.c.l.b16 %v717
        %v2292 = vunpack.c.h.b16 %v717
        %v2293 = vunpack.c.l.b16 %v718
        %v2294 = vunpack.c.h.b16 %v718
        %v2295 = vpack.c.b16 %v1303, %v1271
        %v2296 = vpack.c.b16 %v1304, %v1272
        %v2297 = vpack.c.b16 %v1305, %v1273
        %v2298 = vpack.c.b16 %v1306, %v1274
        %v2299 = vpack.c.b16 %v1307, %v1275
        %v2300 = vpack.c.b16 %v1308, %v1276
        %v2301 = vpack.c.b16 %v1309, %v1277
        %v2302 = vpack.c.b16 %v1310, %v1278
        %v2303 = vpack.c.b16 %v1311, %v1279
        %v2304 = vpack.c.b16 %v1312, %v1280
        %v2305 = vpack.c.b16 %v1313, %v1281
        %v2306 = vpack.c.b16 %v1314, %v1282
        %v2307 = vpack.c.b16 %v1315, %v1283
        %v2308 = vpack.c.b16 %v1316, %v1284
        %v2309 = vpack.c.b16 %v1317, %v1285
        %v2310 = vpack.c.b16 %v1318, %v1286
        %v2311 = vpack.c.b16 %v1319, %v1287
        %v2312 = vpack.c.b16 %v1320, %v1288
        %v2313 = vpack.c.b16 %v1321, %v1289
        %v2314 = vpack.c.b16 %v1322, %v1290
        %v2315 = vpack.c.b16 %v1323, %v1291
        %v2316 = vpack.c.b16 %v1324, %v1292
        %v2317 = vpack.c.b16 %v1325, %v1293
        %v2318 = vpack.c.b16 %v1326, %v1294
        %v2319 = vpack.c.b16 %v1327, %v1295
        %v2320 = vpack.c.b16 %v1328, %v1296
        %v2321 = vpack.c.b16 %v1329, %v1297
        %v2322 = vpack.c.b16 %v1330, %v1298
        %v2323 = vpack.c.b16 %v1331, %v1299
        %v2324 = vpack.c.b16 %v1332, %v1300
        %v2325 = vpack.c.b16 %v1333, %v1301
        %v2326 = vpack.c.b16 %v1334, %v1302
        %v2327 = vpack.c.b16 %v1367, %v1335
        %v2328 = vpack.c.b16 %v1368, %v1336
        %v2329 = vpack.c.b16 %v1369, %v1337
        %v2330 = vpack.c.b16 %v1370, %v1338
        %v2331 = vpack.c.b16 %v1371, %v1339
        %v2332 = vpack.c.b16 %v1372, %v1340
        %v2333 = vpack.c.b16 %v1373, %v1341
        %v2334 = vpack.c.b16 %v1374, %v1342
        %v2335 = vpack.c.b16 %v1375, %v1343
        %v2336 = vpack.c.b16 %v1376, %v1344
        %v2337 = vpack.c.b16 %v1377, %v1345
        %v2338 = vpack.c.b16 %v1378, %v1346
        %v2339 = vpack.c.b16 %v1379, %v1347
        %v2340 = vpack.c.b16 %v1380, %v1348
        %v2341 = vpack.c.b16 %v1381, %v1349
        %v2342 = vpack.c.b16 %v1382, %v1350
        %v2343 = vpack.c.b16 %v1383, %v1351
        %v2344 = vpack.c.b16 %v1384, %v1352
        %v2345 = vpack.c.b16 %v1385, %v1353
        %v2346 = vpack.c.b16 %v1386, %v1354
        %v2347 = vpack.c.b16 %v1387, %v1355
        %v2348 = vpack.c.b16 %v1388, %v1356
        %v2349 = vpack.c.b16 %v1389, %v1357
        %v2350 = vpack.c.b16 %v1390, %v1358
        %v2351 = vpack.c.b16 %v1391, %v1359
        %v2352 = vpack.c.b16 %v1392, %v1360
        %v2353 = vpack.c.b16 %v1393, %v1361
        %v2354 = vpack.c.b16 %v1394, %v1362
        %v2355 = vpack.c.b16 %v1395, %v1363
        %v2356 = vpack.c.b16 %v1396, %v1364
        %v2357 = vpack.c.b16 %v1397, %v1365
        %v2358 = vpack.c.b16 %v1398, %v1366
        %v2359 = vpack.c.b16 %v1431, %v1399
        %v2360 = vpack.c.b16 %v1432, %v1400
        %v2361 = vpack.c.b16 %v1433, %v1401
        %v2362 = vpack.c.b16 %v1434, %v1402
        %v2363 = vpack.c.b16 %v1435, %v1403
        %v2364 = vpack.c.b16 %v1436, %v1404
        %v2365 = vpack.c.b16 %v1437, %v1405
        %v2366 = vpack.c.b16 %v1438, %v1406
        %v2367 = vpack.c.b16 %v1439, %v1407
        %v2368 = vpack.c.b16 %v1440, %v1408
        %v2369 = vpack.c.b16 %v1441, %v1409
        %v2370 = vpack.c.b16 %v1442, %v1410
        %v2371 = vpack.c.b16 %v1443, %v1411
        %v2372 = vpack.c.b16 %v1444, %v1412
        %v2373 = vpack.c.b16 %v1445, %v1413
        %v2374 = vpack.c.b16 %v1446, %v1414
        %v2375 = vpack.c.b16 %v1447, %v1415
        %v2376 = vpack.c.b16 %v1448, %v1416
        %v2377 = vpack.c.b16 %v1449, %v1417
        %v2378 = vpack.c.b16 %v1450, %v1418
        %v2379 = vpack.c.b16 %v1451, %v1419
        %v2380 = vpack.c.b16 %v1452, %v1420
        %v2381 = vpack.c.b16 %v1453, %v1421
        %v2382 = vpack.c.b16 %v1454, %v1422
        %v2383 = vpack.c.b16 %v1455, %v1423
        %v2384 = vpack.c.b16 %v1456, %v1424
        %v2385 = vpack.c.b16 %v1457, %v1425
        %v2386 = vpack.c.b16 %v1458, %v1426
        %v2387 = vpack.c.b16 %v1459, %v1427
        %v2388 = vpack.c.b16 %v1460, %v1428
        %v2389 = vpack.c.b16 %v1461, %v1429
        %v2390 = vpack.c.b16 %v1462, %v1430
        %v2391 = vpack.c.b16 %v1495, %v1463
        %v2392 = vpack.c.b16 %v1496, %v1464
        %v2393 = vpack.c.b16 %v1497, %v1465
        %v2394 = vpack.c.b16 %v1498, %v1466
        %v2395 = vpack.c.b16 %v1499, %v1467
        %v2396 = vpack.c.b16 %v1500, %v1468
        %v2397 = vpack.c.b16 %v1501, %v1469
        %v2398 = vpack.c.b16 %v1502, %v1470
        %v2399 = vpack.c.b16 %v1503, %v1471
        %v2400 = vpack.c.b16 %v1504, %v1472
        %v2401 = vpack.c.b16 %v1505, %v1473
        %v2402 = vpack.c.b16 %v1506, %v1474
        %v2403 = vpack.c.b16 %v1507, %v1475
        %v2404 = vpack.c.b16 %v1508, %v1476
        %v2405 = vpack.c.b16 %v1509, %v1477
        %v2406 = vpack.c.b16 %v1510, %v1478
        %v2407 = vpack.c.b16 %v1511, %v1479
        %v2408 = vpack.c.b16 %v1512, %v1480
        %v2409 = vpack.c.b16 %v1513, %v1481
        %v2410 = vpack.c.b16 %v1514, %v1482
        %v2411 = vpack.c.b16 %v1515, %v1483
        %v2412 = vpack.c.b16 %v1516, %v1484
        %v2413 = vpack.c.b16 %v1517, %v1485
        %v2414 = vpack.c.b16 %v1518, %v1486
        %v2415 = vpack.c.b16 %v1519, %v1487
        %v2416 = vpack.c.b16 %v1520, %v1488
        %v2417 = vpack.c.b16 %v1521, %v1489
        %v2418 = vpack.c.b16 %v1522, %v1490
        %v2419 = vpack.c.b16 %v1523, %v1491
        %v2420 = vpack.c.b16 %v1524, %v1492
        %v2421 = vpack.c.b16 %v1525, %v1493
        %v2422 = vpack.c.b16 %v1526, %v1494
        %v2423 = vpack.c.b16 %v1559, %v1527
        %v2424 = vpack.c.b16 %v1560, %v1528
        %v2425 = vpack.c.b16 %v1561, %v1529
        %v2426 = vpack.c.b16 %v1562, %v1530
        %v2427 = vpack.c.b16 %v1563, %v1531
        %v2428 = vpack.c.b16 %v1564, %v1532
        %v2429 = vpack.c.b16 %v1565, %v1533
        %v2430 = vpack.c.b16 %v1566, %v1534
        %v2431 = vpack.c.b16 %v1567, %v1535
        %v2432 = vpack.c.b16 %v1568, %v1536
        %v2433 = vpack.c.b16 %v1569, %v1537
        %v2434 = vpack.c.b16 %v1570, %v1538
        %v2435 = vpack.c.b16 %v1571, %v1539
        %v2436 = vpack.c.b16 %v1572, %v1540
        %v2437 = vpack.c.b16 %v1573, %v1541
        %v2438 = vpack.c.b16 %v1574, %v1542
        %v2439 = vpack.c.b16 %v1575, %v1543
        %v2440 = vpack.c.b16 %v1576, %v1544
        %v2441 = vpack.c.b16 %v1577, %v1545
        %v2442 = vpack.c.b16 %v1578, %v1546
        %v2443 = vpack.c.b16 %v1579, %v1547
        %v2444 = vpack.c.b16 %v1580, %v1548
        %v2445 = vpack.c.b16 %v1581, %v1549
        %v2446 = vpack.c.b16 %v1582, %v1550
        %v2447 = vpack.c.b16 %v1583, %v1551
        %v2448 = vpack.c.b16 %v1584, %v1552
        %v2449 = vpack.c.b16 %v1585, %v1553
        %v2450 = vpack.c.b16 %v1586, %v1554
        %v2451 = vpack.c.b16 %v1587, %v1555
        %v2452 = vpack.c.b16 %v1588, %v1556
        %v2453 = vpack.c.b16 %v1589, %v1557
        %v2454 = vpack.c.b16 %v1590, %v1558
        %v2455 = vpack.c.b16 %v1623, %v1591
        %v2456 = vpack.c.b16 %v1624, %v1592
        %v2457 = vpack.c.b16 %v1625, %v1593
        %v2458 = vpack.c.b16 %v1626, %v1594
        %v2459 = vpack.c.b16 %v1627, %v1595
        %v2460 = vpack.c.b16 %v1628, %v1596
        %v2461 = vpack.c.b16 %v1629, %v1597
        %v2462 = vpack.c.b16 %v1630, %v1598
        %v2463 = vpack.c.b16 %v1631, %v1599
        %v2464 = vpack.c.b16 %v1632, %v1600
        %v2465 = vpack.c.b16 %v1633, %v1601
        %v2466 = vpack.c.b16 %v1634, %v1602
        %v2467 = vpack.c.b16 %v1635, %v1603
        %v2468 = vpack.c.b16 %v1636, %v1604
        %v2469 = vpack.c.b16 %v1637, %v1605
        %v2470 = vpack.c.b16 %v1638, %v1606
        %v2471 = vpack.c.b16 %v1639, %v1607
        %v2472 = vpack.c.b16 %v1640, %v1608
        %v2473 = vpack.c.b16 %v1641, %v1609
        %v2474 = vpack.c.b16 %v1642, %v1610
        %v2475 = vpack.c.b16 %v1643, %v1611
        %v2476 = vpack.c.b16 %v1644, %v1612
        %v2477 = vpack.c.b16 %v1645, %v1613
        %v2478 = vpack.c.b16 %v1646, %v1614
        %v2479 = vpack.c.b16 %v1647, %v1615
        %v2480 = vpack.c.b16 %v1648, %v1616
        %v2481 = vpack.c.b16 %v1649, %v1617
        %v2482 = vpack.c.b16 %v1650, %v1618
        %v2483 = vpack.c.b16 %v1651, %v1619
        %v2484 = vpack.c.b16 %v1652, %v1620
        %v2485 = vpack.c.b16 %v1653, %v1621
        %v2486 = vpack.c.b16 %v1654, %v1622
        %v2487 = vpack.c.b16 %v1687, %v1655
        %v2488 = vpack.c.b16 %v1688, %v1656
        %v2489 = vpack.c.b16 %v1689, %v1657
        %v2490 = vpack.c.b16 %v1690, %v1658
        %v2491 = vpack.c.b16 %v1691, %v1659
        %v2492 = vpack.c.b16 %v1692, %v1660
        %v2493 = vpack.c.b16 %v1693, %v1661
        %v2494 = vpack.c.b16 %v1694, %v1662
        %v2495 = vpack.c.b16 %v1695, %v1663
        %v2496 = vpack.c.b16 %v1696, %v1664
        %v2497 = vpack.c.b16 %v1697, %v1665
        %v2498 = vpack.c.b16 %v1698, %v1666
        %v2499 = vpack.c.b16 %v1699, %v1667
        %v2500 = vpack.c.b16 %v1700, %v1668
        %v2501 = vpack.c.b16 %v1701, %v1669
        %v2502 = vpack.c.b16 %v1702, %v1670
        %v2503 = vpack.c.b16 %v1703, %v1671
        %v2504 = vpack.c.b16 %v1704, %v1672
        %v2505 = vpack.c.b16 %v1705, %v1673
        %v2506 = vpack.c.b16 %v1706, %v1674
        %v2507 = vpack.c.b16 %v1707, %v1675
        %v2508 = vpack.c.b16 %v1708, %v1676
        %v2509 = vpack.c.b16 %v1709, %v1677
        %v2510 = vpack.c.b16 %v1710, %v1678
        %v2511 = vpack.c.b16 %v1711, %v1679
        %v2512 = vpack.c.b16 %v1712, %v1680
        %v2513 = vpack.c.b16 %v1713, %v1681
        %v2514 = vpack.c.b16 %v1714, %v1682
        %v2515 = vpack.c.b16 %v1715, %v1683
        %v2516 = vpack.c.b16 %v1716, %v1684
        %v2517 = vpack.c.b16 %v1717, %v1685
        %v2518 = vpack.c.b16 %v1718, %v1686
        %v2519 = vpack.c.b16 %v1751, %v1719
        %v2520 = vpack.c.b16 %v1752, %v1720
        %v2521 = vpack.c.b16 %v1753, %v1721
        %v2522 = vpack.c.b16 %v1754, %v1722
        %v2523 = vpack.c.b16 %v1755, %v1723
        %v2524 = vpack.c.b16 %v1756, %v1724
        %v2525 = vpack.c.b16 %v1757, %v1725
        %v2526 = vpack.c.b16 %v1758, %v1726
        %v2527 = vpack.c.b16 %v1759, %v1727
        %v2528 = vpack.c.b16 %v1760, %v1728
        %v2529 = vpack.c.b16 %v1761, %v1729
        %v2530 = vpack.c.b16 %v1762, %v1730
        %v2531 = vpack.c.b16 %v1763, %v1731
        %v2532 = vpack.c.b16 %v1764, %v1732
        %v2533 = vpack.c.b16 %v1765, %v1733
        %v2534 = vpack.c.b16 %v1766, %v1734
        %v2535 = vpack.c.b16 %v1767, %v1735
        %v2536 = vpack.c.b16 %v1768, %v1736
        %v2537 = vpack.c.b16 %v1769, %v1737
        %v2538 = vpack.c.b16 %v1770, %v1738
        %v2539 = vpack.c.b16 %v1771, %v1739
        %v2540 = vpack.c.b16 %v1772, %v1740
        %v2541 = vpack.c.b16 %v1773, %v1741
        %v2542 = vpack.c.b16 %v1774, %v1742
        %v2543 = vpack.c.b16 %v1775, %v1743
        %v2544 = vpack.c.b16 %v1776, %v1744
        %v2545 = vpack.c.b16 %v1777, %v1745
        %v2546 = vpack.c.b16 %v1778, %v1746
        %v2547 = vpack.c.b16 %v1779, %v1747
        %v2548 = vpack.c.b16 %v1780, %v1748
        %v2549 = vpack.c.b16 %v1781, %v1749
        %v2550 = vpack.c.b16 %v1782, %v1750
        %v2551 = vpack.c.b16 %v1815, %v1783
        %v2552 = vpack.c.b16 %v1816, %v1784
        %v2553 = vpack.c.b16 %v1817, %v1785
        %v2554 = vpack.c.b16 %v1818, %v1786
        %v2555 = vpack.c.b16 %v1819, %v1787
        %v2556 = vpack.c.b16 %v1820, %v1788
        %v2557 = vpack.c.b16 %v1821, %v1789
        %v2558 = vpack.c.b16 %v1822, %v1790
        %v2559 = vpack.c.b16 %v1823, %v1791
        %v2560 = vpack.c.b16 %v1824, %v1792
        %v2561 = vpack.c.b16 %v1825, %v1793
        %v2562 = vpack.c.b16 %v1826, %v1794
        %v2563 = vpack.c.b16 %v1827, %v1795
        %v2564 = vpack.c.b16 %v1828, %v1796
        %v2565 = vpack.c.b16 %v1829, %v1797
        %v2566 = vpack.c.b16 %v1830, %v1798
        %v2567 = vpack.c.b16 %v1831, %v1799
        %v2568 = vpack.c.b16 %v1832, %v1800
        %v2569 = vpack.c.b16 %v1833, %v1801
        %v2570 = vpack.c.b16 %v1834, %v1802
        %v2571 = vpack.c.b16 %v1835, %v1803
        %v2572 = vpack.c.b16 %v1836, %v1804
        %v2573 = vpack.c.b16 %v1837, %v1805
        %v2574 = vpack.c.b16 %v1838, %v1806
        %v2575 = vpack.c.b16 %v1839, %v1807
        %v2576 = vpack.c.b16 %v1840, %v1808
        %v2577 = vpack.c.b16 %v1841, %v1809
        %v2578 = vpack.c.b16 %v1842, %v1810
        %v2579 = vpack.c.b16 %v1843, %v1811
        %v2580 = vpack.c.b16 %v1844, %v1812
        %v2581 = vpack.c.b16 %v1845, %v1813
        %v2582 = vpack.c.b16 %v1846, %v1814
        %v2583 = vpack.c.b16 %v1879, %v1847
        %v2584 = vpack.c.b16 %v1880, %v1848
        %v2585 = vpack.c.b16 %v1881, %v1849
        %v2586 = vpack.c.b16 %v1882, %v1850
        %v2587 = vpack.c.b16 %v1883, %v1851
        %v2588 = vpack.c.b16 %v1884, %v1852
        %v2589 = vpack.c.b16 %v1885, %v1853
        %v2590 = vpack.c.b16 %v1886, %v1854
        %v2591 = vpack.c.b16 %v1887, %v1855
        %v2592 = vpack.c.b16 %v1888, %v1856
        %v2593 = vpack.c.b16 %v1889, %v1857
        %v2594 = vpack.c.b16 %v1890, %v1858
        %v2595 = vpack.c.b16 %v1891, %v1859
        %v2596 = vpack.c.b16 %v1892, %v1860
        %v2597 = vpack.c.b16 %v1893, %v1861
        %v2598 = vpack.c.b16 %v1894, %v1862
        %v2599 = vpack.c.b16 %v1895, %v1863
        %v2600 = vpack.c.b16 %v1896, %v1864
        %v2601 = vpack.c.b16 %v1897, %v1865
        %v2602 = vpack.c.b16 %v1898, %v1866
        %v2603 = vpack.c.b16 %v1899, %v1867
        %v2604 = vpack.c.b16 %v1900, %v1868
        %v2605 = vpack.c.b16 %v1901, %v1869
        %v2606 = vpack.c.b16 %v1902, %v1870
        %v2607 = vpack.c.b16 %v1903, %v1871
        %v2608 = vpack.c.b16 %v1904, %v1872
        %v2609 = vpack.c.b16 %v1905, %v1873
        %v2610 = vpack.c.b16 %v1906, %v1874
        %v2611 = vpack.c.b16 %v1907, %v1875
        %v2612 = vpack.c.b16 %v1908, %v1876
        %v2613 = vpack.c.b16 %v1909, %v1877
        %v2614 = vpack.c.b16 %v1910, %v1878
        %v2615 = vpack.c.b16 %v1943, %v1911
        %v2616 = vpack.c.b16 %v1944, %v1912
        %v2617 = vpack.c.b16 %v1945, %v1913
        %v2618 = vpack.c.b16 %v1946, %v1914
        %v2619 = vpack.c.b16 %v1947, %v1915
        %v2620 = vpack.c.b16 %v1948, %v1916
        %v2621 = vpack.c.b16 %v1949, %v1917
        %v2622 = vpack.c.b16 %v1950, %v1918
        %v2623 = vpack.c.b16 %v1951, %v1919
        %v2624 = vpack.c.b16 %v1952, %v1920
        %v2625 = vpack.c.b16 %v1953, %v1921
        %v2626 = vpack.c.b16 %v1954, %v1922
        %v2627 = vpack.c.b16 %v1955, %v1923
        %v2628 = vpack.c.b16 %v1956, %v1924
        %v2629 = vpack.c.b16 %v1957, %v1925
        %v2630 = vpack.c.b16 %v1958, %v1926
        %v2631 = vpack.c.b16 %v1959, %v1927
        %v2632 = vpack.c.b16 %v1960, %v1928
        %v2633 = vpack.c.b16 %v1961, %v1929
        %v2634 = vpack.c.b16 %v1962, %v1930
        %v2635 = vpack.c.b16 %v1963, %v1931
        %v2636 = vpack.c.b16 %v1964, %v1932
        %v2637 = vpack.c.b16 %v1965, %v1933
        %v2638 = vpack.c.b16 %v1966, %v1934
        %v2639 = vpack.c.b16 %v1967, %v1935
        %v2640 = vpack.c.b16 %v1968, %v1936
        %v2641 = vpack.c.b16 %v1969, %v1937
        %v2642 = vpack.c.b16 %v1970, %v1938
        %v2643 = vpack.c.b16 %v1971, %v1939
        %v2644 = vpack.c.b16 %v1972, %v1940
        %v2645 = vpack.c.b16 %v1973, %v1941
        %v2646 = vpack.c.b16 %v1974, %v1942
        %v2647 = vpack.c.b16 %v2007, %v1975
        %v2648 = vpack.c.b16 %v2008, %v1976
        %v2649 = vpack.c.b16 %v2009, %v1977
        %v2650 = vpack.c.b16 %v2010, %v1978
        %v2651 = vpack.c.b16 %v2011, %v1979
        %v2652 = vpack.c.b16 %v2012, %v1980
        %v2653 = vpack.c.b16 %v2013, %v1981
        %v2654 = vpack.c.b16 %v2014, %v1982
        %v2655 = vpack.c.b16 %v2015, %v1983
        %v2656 = vpack.c.b16 %v2016, %v1984
        %v2657 = vpack.c.b16 %v2017, %v1985
        %v2658 = vpack.c.b16 %v2018, %v1986
        %v2659 = vpack.c.b16 %v2019, %v1987
        %v2660 = vpack.c.b16 %v2020, %v1988
        %v2661 = vpack.c.b16 %v2021, %v1989
        %v2662 = vpack.c.b16 %v2022, %v1990
        %v2663 = vpack.c.b16 %v2023, %v1991
        %v2664 = vpack.c.b16 %v2024, %v1992
        %v2665 = vpack.c.b16 %v2025, %v1993
        %v2666 = vpack.c.b16 %v2026, %v1994
        %v2667 = vpack.c.b16 %v2027, %v1995
        %v2668 = vpack.c.b16 %v2028, %v1996
        %v2669 = vpack.c.b16 %v2029, %v1997
        %v2670 = vpack.c.b16 %v2030, %v1998
        %v2671 = vpack.c.b16 %v2031, %v1999
        %v2672 = vpack.c.b16 %v2032, %v2000
        %v2673 = vpack.c.b16 %v2033, %v2001
        %v2674 = vpack.c.b16 %v2034, %v2002
        %v2675 = vpack.c.b16 %v2035, %v2003
        %v2676 = vpack.c.b16 %v2036, %v2004
        %v2677 = vpack.c.b16 %v2037, %v2005
        %v2678 = vpack.c.b16 %v2038, %v2006
        %v2679 = vpack.c.b16 %v2071, %v2039
        %v2680 = vpack.c.b16 %v2072, %v2040
        %v2681 = vpack.c.b16 %v2073, %v2041
        %v2682 = vpack.c.b16 %v2074, %v2042
        %v2683 = vpack.c.b16 %v2075, %v2043
        %v2684 = vpack.c.b16 %v2076, %v2044
        %v2685 = vpack.c.b16 %v2077, %v2045
        %v2686 = vpack.c.b16 %v2078, %v2046
        %v2687 = vpack.c.b16 %v2079, %v2047
        %v2688 = vpack.c.b16 %v2080, %v2048
        %v2689 = vpack.c.b16 %v2081, %v2049
        %v2690 = vpack.c.b16 %v2082, %v2050
        %v2691 = vpack.c.b16 %v2083, %v2051
        %v2692 = vpack.c.b16 %v2084, %v2052
        %v2693 = vpack.c.b16 %v2085, %v2053
        %v2694 = vpack.c.b16 %v2086, %v2054
        %v2695 = vpack.c.b16 %v2087, %v2055
        %v2696 = vpack.c.b16 %v2088, %v2056
        %v2697 = vpack.c.b16 %v2089, %v2057
        %v2698 = vpack.c.b16 %v2090, %v2058
        %v2699 = vpack.c.b16 %v2091, %v2059
        %v2700 = vpack.c.b16 %v2092, %v2060
        %v2701 = vpack.c.b16 %v2093, %v2061
        %v2702 = vpack.c.b16 %v2094, %v2062
        %v2703 = vpack.c.b16 %v2095, %v2063
        %v2704 = vpack.c.b16 %v2096, %v2064
        %v2705 = vpack.c.b16 %v2097, %v2065
        %v2706 = vpack.c.b16 %v2098, %v2066
        %v2707 = vpack.c.b16 %v2099, %v2067
        %v2708 = vpack.c.b16 %v2100, %v2068
        %v2709 = vpack.c.b16 %v2101, %v2069
        %v2710 = vpack.c.b16 %v2102, %v2070
        %v2711 = vpack.c.b16 %v2135, %v2103
        %v2712 = vpack.c.b16 %v2136, %v2104
        %v2713 = vpack.c.b16 %v2137, %v2105
        %v2714 = vpack.c.b16 %v2138, %v2106
        %v2715 = vpack.c.b16 %v2139, %v2107
        %v2716 = vpack.c.b16 %v2140, %v2108
        %v2717 = vpack.c.b16 %v2141, %v2109
        %v2718 = vpack.c.b16 %v2142, %v2110
        %v2719 = vpack.c.b16 %v2143, %v2111
        %v2720 = vpack.c.b16 %v2144, %v2112
        %v2721 = vpack.c.b16 %v2145, %v2113
        %v2722 = vpack.c.b16 %v2146, %v2114
        %v2723 = vpack.c.b16 %v2147, %v2115
        %v2724 = vpack.c.b16 %v2148, %v2116
        %v2725 = vpack.c.b16 %v2149, %v2117
        %v2726 = vpack.c.b16 %v2150, %v2118
        %v2727 = vpack.c.b16 %v2151, %v2119
        %v2728 = vpack.c.b16 %v2152, %v2120
        %v2729 = vpack.c.b16 %v2153, %v2121
        %v2730 = vpack.c.b16 %v2154, %v2122
        %v2731 = vpack.c.b16 %v2155, %v2123
        %v2732 = vpack.c.b16 %v2156, %v2124
        %v2733 = vpack.c.b16 %v2157, %v2125
        %v2734 = vpack.c.b16 %v2158, %v2126
        %v2735 = vpack.c.b16 %v2159, %v2127
        %v2736 = vpack.c.b16 %v2160, %v2128
        %v2737 = vpack.c.b16 %v2161, %v2129
        %v2738 = vpack.c.b16 %v2162, %v2130
        %v2739 = vpack.c.b16 %v2163, %v2131
        %v2740 = vpack.c.b16 %v2164, %v2132
        %v2741 = vpack.c.b16 %v2165, %v2133
        %v2742 = vpack.c.b16 %v2166, %v2134
        %v2743 = vpack.c.b16 %v2199, %v2167
        %v2744 = vpack.c.b16 %v2200, %v2168
        %v2745 = vpack.c.b16 %v2201, %v2169
        %v2746 = vpack.c.b16 %v2202, %v2170
        %v2747 = vpack.c.b16 %v2203, %v2171
        %v2748 = vpack.c.b16 %v2204, %v2172
        %v2749 = vpack.c.b16 %v2205, %v2173
        %v2750 = vpack.c.b16 %v2206, %v2174
        %v2751 = vpack.c.b16 %v2207, %v2175
        %v2752 = vpack.c.b16 %v2208, %v2176
        %v2753 = vpack.c.b16 %v2209, %v2177
        %v2754 = vpack.c.b16 %v2210, %v2178
        %v2755 = vpack.c.b16 %v2211, %v2179
        %v2756 = vpack.c.b16 %v2212, %v2180
        %v2757 = vpack.c.b16 %v2213, %v2181
        %v2758 = vpack.c.b16 %v2214, %v2182
        %v2759 = vpack.c.b16 %v2215, %v2183
        %v2760 = vpack.c.b16 %v2216, %v2184
        %v2761 = vpack.c.b16 %v2217, %v2185
        %v2762 = vpack.c.b16 %v2218, %v2186
        %v2763 = vpack.c.b16 %v2219, %v2187
        %v2764 = vpack.c.b16 %v2220, %v2188
        %v2765 = vpack.c.b16 %v2221, %v2189
        %v2766 = vpack.c.b16 %v2222, %v2190
        %v2767 = vpack.c.b16 %v2223, %v2191
        %v2768 = vpack.c.b16 %v2224, %v2192
        %v2769 = vpack.c.b16 %v2225, %v2193
        %v2770 = vpack.c.b16 %v2226, %v2194
        %v2771 = vpack.c.b16 %v2227, %v2195
        %v2772 = vpack.c.b16 %v2228, %v2196
        %v2773 = vpack.c.b16 %v2229, %v2197
        %v2774 = vpack.c.b16 %v2230, %v2198
        %v2775 = vpack.c.b16 %v2263, %v2231
        %v2776 = vpack.c.b16 %v2264, %v2232
        %v2777 = vpack.c.b16 %v2265, %v2233
        %v2778 = vpack.c.b16 %v2266, %v2234
        %v2779 = vpack.c.b16 %v2267, %v2235
        %v2780 = vpack.c.b16 %v2268, %v2236
        %v2781 = vpack.c.b16 %v2269, %v2237
        %v2782 = vpack.c.b16 %v2270, %v2238
        %v2783 = vpack.c.b16 %v2271, %v2239
        %v2784 = vpack.c.b16 %v2272, %v2240
        %v2785 = vpack.c.b16 %v2273, %v2241
        %v2786 = vpack.c.b16 %v2274, %v2242
        %v2787 = vpack.c.b16 %v2275, %v2243
        %v2788 = vpack.c.b16 %v2276, %v2244
        %v2789 = vpack.c.b16 %v2277, %v2245
        %v2790 = vpack.c.b16 %v2278, %v2246
        %v2791 = vpack.c.b16 %v2279, %v2247
        %v2792 = vpack.c.b16 %v2280, %v2248
        %v2793 = vpack.c.b16 %v2281, %v2249
        %v2794 = vpack.c.b16 %v2282, %v2250
        %v2795 = vpack.c.b16 %v2283, %v2251
        %v2796 = vpack.c.b16 %v2284, %v2252
        %v2797 = vpack.c.b16 %v2285, %v2253
        %v2798 = vpack.c.b16 %v2286, %v2254
        %v2799 = vpack.c.b16 %v2287, %v2255
        %v2800 = vpack.c.b16 %v2288, %v2256
        %v2801 = vpack.c.b16 %v2289, %v2257
        %v2802 = vpack.c.b16 %v2290, %v2258
        %v2803 = vpack.c.b16 %v2291, %v2259
        %v2804 = vpack.c.b16 %v2292, %v2260
        %v2805 = vpack.c.b16 %v2293, %v2261
        %v2806 = vpack.c.b16 %v2294, %v2262
        %3319 = vmatprep.subr.bf16.mxu0 %v2296
        %3320 = vmatpush1.bf16.msra.mxu0 %v2295
        %3321 = vmatprep.subr.bf16.mxu0 %v2328
        %3322 = vmatpush1.bf16.msra.mxu0 %v2327
        %3323 = vmatprep.subr.bf16.mxu0 %v2360
        %3324 = vmatpush1.bf16.msra.mxu0 %v2359
        %3325 = vmatprep.subr.bf16.mxu0 %v2392
        %3326 = vmatpush1.bf16.msra.mxu0 %v2391
        %3327 = vmatprep.subr.bf16.mxu0 %v2424
        %3328 = vmatpush1.bf16.msra.mxu0 %v2423
        %3329 = vmatprep.subr.bf16.mxu0 %v2456
        %3330 = vmatpush1.bf16.msra.mxu0 %v2455
        %3331 = vmatprep.subr.bf16.mxu0 %v2488
        %3332 = vmatpush1.bf16.msra.mxu0 %v2487
        %3333 = vmatprep.subr.bf16.mxu0 %v2520
        %3334 = vmatpush1.bf16.msra.mxu0 %v2519
        %3335 = vmatprep.subr.bf16.mxu0 %v2552
        %3336 = vmatpush1.bf16.msra.mxu0 %v2551
        %3337 = vmatprep.subr.bf16.mxu0 %v2584
        %3338 = vmatpush1.bf16.msra.mxu0 %v2583
        %3339 = vmatprep.subr.bf16.mxu0 %v2616
        %3340 = vmatpush1.bf16.msra.mxu0 %v2615
        %3341 = vmatprep.subr.bf16.mxu0 %v2648
        %3342 = vmatpush1.bf16.msra.mxu0 %v2647
        %3343 = vmatprep.subr.bf16.mxu0 %v2680
        %3344 = vmatpush1.bf16.msra.mxu0 %v2679
        %3345 = vmatprep.subr.bf16.mxu0 %v2712
        %3346 = vmatpush1.bf16.msra.mxu0 %v2711
        %3347 = vmatprep.subr.bf16.mxu0 %v2744
        %3348 = vmatpush1.bf16.msra.mxu0 %v2743
        %3349 = vmatprep.subr.bf16.mxu0 %v2776
        %3350 = vmatpush1.bf16.msra.mxu0 %v2775
        %3351 = vmatprep.mubr.bf16.mxu0 %v744
        %3352 = vmatmul.mubr.bf16.gmra.mrb[0].mxu0 %v743
        %v3353 = vpop.f32.mrb[0].mxu0
        %v3354 = vadd.f32 0.0, %v3353
        %v3355 = vpop.f32.mrb[0].mxu0
        %v3356 = vadd.f32 0.0, %v3355
        %v3357 = vpop.f32.mrb[0].mxu0
        %v3358 = vadd.f32 0.0, %v3357
        %v3359 = vpop.f32.mrb[0].mxu0
        %v3360 = vadd.f32 0.0, %v3359
        %3361 = vmatprep.mubr.bf16.mxu0 %v746
        %3362 = vmatmul.mubr.bf16.gmra.mrb[0].mxu0 %v745
        %v3363 = vpop.f32.mrb[0].mxu0
        %v3364 = vadd.f32 0.0, %v3363
        %v3365 = vpop.f32.mrb[0].mxu0
        %v3366 = vadd.f32 0.0, %v3365
        %v3367 = vpop.f32.mrb[0].mxu0
        %v3368 = vadd.f32 0.0, %v3367
        %v3369 = vpop.f32.mrb[0].mxu0
        %v3370 = vadd.f32 0.0, %v3369
        %3371 = vmatprep.mubr.bf16.mxu0 %v748
        %3372 = vmatmul.mubr.bf16.gmra.mrb[0].mxu0 %v747
        %v3373 = vpop.f32.mrb[0].mxu0
        %v3374 = vadd.f32 0.0, %v3373
        %v3375 = vpop.f32.mrb[0].mxu0
        %v3376 = vadd.f32 0.0, %v3375
        %v3377 = vpop.f32.mrb[0].mxu0
        %v3378 = vadd.f32 0.0, %v3377
        %v3379 = vpop.f32.mrb[0].mxu0
        %v3380 = vadd.f32 0.0, %v3379
        %3381 = vmatprep.mubr.bf16.mxu0 %v750
        %3382 = vmatmul.mubr.bf16.gmra.mrb[0].mxu0 %v749
        %v3383 = vpop.f32.mrb[0].mxu0
        %v3384 = vadd.f32 0.0, %v3383
        %v3385 = vpop.f32.mrb[0].mxu0
        %v3386 = vadd.f32 0.0, %v3385
        %v3387 = vpop.f32.mrb[0].mxu0
        %v3388 = vadd.f32 0.0, %v3387
        %v3389 = vpop.f32.mrb[0].mxu0
        %v3390 = vadd.f32 0.0, %v3389
        %3391 = vdwg.mxu0
        %3392 = vmatprep.subr.bf16.mxu0 %v2298
        %3393 = vmatpush1.bf16.msra.mxu0 %v2297
        %3394 = vmatprep.subr.bf16.mxu0 %v2330
        %3395 = vmatpush1.bf16.msra.mxu0 %v2329
        %3396 = vmatprep.subr.bf16.mxu0 %v2362
        %3397 = vmatpush1.bf16.msra.mxu0 %v2361
        %3398 = vmatprep.subr.bf16.mxu0 %v2394
        %3399 = vmatpush1.bf16.msra.mxu0 %v2393
        %3400 = vmatprep.subr.bf16.mxu0 %v2426
        %3401 = vmatpush1.bf16.msra.mxu0 %v2425
        %3402 = vmatprep.subr.bf16.mxu0 %v2458
        %3403 = vmatpush1.bf16.msra.mxu0 %v2457
        %3404 = vmatprep.subr.bf16.mxu0 %v2490
        %3405 = vmatpush1.bf16.msra.mxu0 %v2489
        %3406 = vmatprep.subr.bf16.mxu0 %v2522
        %3407 = vmatpush1.bf16.msra.mxu0 %v2521
        %3408 = vmatprep.subr.bf16.mxu0 %v2554
        %3409 = vmatpush1.bf16.msra.mxu0 %v2553
        %3410 = vmatprep.subr.bf16.mxu0 %v2586
        %3411 = vmatpush1.bf16.msra.mxu0 %v2585
        %3412 = vmatprep.subr.bf16.mxu0 %v2618
        %3413 = vmatpush1.bf16.msra.mxu0 %v2617
        %3414 = vmatprep.subr.bf16.mxu0 %v2650
        %3415 = vmatpush1.bf16.msra.mxu0 %v2649
        %3416 = vmatprep.subr.bf16.mxu0 %v2682
        %3417 = vmatpush1.bf16.msra.mxu0 %v2681
        %3418 = vmatprep.subr.bf16.mxu0 %v2714
        %3419 = vmatpush1.bf16.msra.mxu0 %v2713
        %3420 = vmatprep.subr.bf16.mxu0 %v2746
        %3421 = vmatpush1.bf16.msra.mxu0 %v2745
        %3422 = vmatprep.subr.bf16.mxu0 %v2778
        %3423 = vmatpush1.bf16.msra.mxu0 %v2777
        %3424 = vmatprep.mubr.bf16.mxu0 %v744
        %3425 = vmatmul.mubr.bf16.gmra.mrb[0].mxu0 %v743
        %v3426 = vpop.f32.mrb[0].mxu0
        %v3427 = vadd.f32 0.0, %v3426
        %v3428 = vpop.f32.mrb[0].mxu0
        %v3429 = vadd.f32 0.0, %v3428
        %v3430 = vpop.f32.mrb[0].mxu0
        %v3431 = vadd.f32 0.0, %v3430
        %v3432 = vpop.f32.mrb[0].mxu0
        %v3433 = vadd.f32 0.0, %v3432
        %3434 = vmatprep.mubr.bf16.mxu0 %v746
        %3435 = vmatmul.mubr.bf16.gmra.mrb[0].mxu0 %v745
        %v3436 = vpop.f32.mrb[0].mxu0
        %v3437 = vadd.f32 0.0, %v3436
        %v3438 = vpop.f32.mrb[0].mxu0
        %v3439 = vadd.f32 0.0, %v3438
        %v3440 = vpop.f32.mrb[0].mxu0
        %v3441 = vadd.f32 0.0, %v3440
        %v3442 = vpop.f32.mrb[0].mxu0
        %v3443 = vadd.f32 0.0, %v3442
        %3444 = vmatprep.mubr.bf16.mxu0 %v748
        %3445 = vmatmul.mubr.bf16.gmra.mrb[0].mxu0 %v747
        %v3446 = vpop.f32.mrb[0].mxu0
        %v3447 = vadd.f32 0.0, %v3446
        %v3448 = vpop.f32.mrb[0].mxu0
        %v3449 = vadd.f32 0.0, %v3448
        %v3450 = vpop.f32.mrb[0].mxu0
        %v3451 = vadd.f32 0.0, %v3450
        %v3452 = vpop.f32.mrb[0].mxu0
        %v3453 = vadd.f32 0.0, %v3452
        %3454 = vmatprep.mubr.bf16.mxu0 %v750
        %3455 = vmatmul.mubr.bf16.gmra.mrb[0].mxu0 %v749
        %v3456 = vpop.f32.mrb[0].mxu0
        %v3457 = vadd.f32 0.0, %v3456
        %v3458 = vpop.f32.mrb[0].mxu0
        %v3459 = vadd.f32 0.0, %v3458
        %v3460 = vpop.f32.mrb[0].mxu0
        %v3461 = vadd.f32 0.0, %v3460
        %v3462 = vpop.f32.mrb[0].mxu0
        %v3463 = vadd.f32 0.0, %v3462
        %3464 = vdwg.mxu0
        %3465 = vmatprep.subr.bf16.mxu0 %v2300
        %3466 = vmatpush1.bf16.msra.mxu0 %v2299
        %3467 = vmatprep.subr.bf16.mxu0 %v2332
        %3468 = vmatpush1.bf16.msra.mxu0 %v2331
        %3469 = vmatprep.subr.bf16.mxu0 %v2364
        %3470 = vmatpush1.bf16.msra.mxu0 %v2363
        %3471 = vmatprep.subr.bf16.mxu0 %v2396
        %3472 = vmatpush1.bf16.msra.mxu0 %v2395
        %3473 = vmatprep.subr.bf16.mxu0 %v2428
        %3474 = vmatpush1.bf16.msra.mxu0 %v2427
        %3475 = vmatprep.subr.bf16.mxu0 %v2460
        %3476 = vmatpush1.bf16.msra.mxu0 %v2459
        %3477 = vmatprep.subr.bf16.mxu0 %v2492
        %3478 = vmatpush1.bf16.msra.mxu0 %v2491
        %3479 = vmatprep.subr.bf16.mxu0 %v2524
        %3480 = vmatpush1.bf16.msra.mxu0 %v2523
        %3481 = vmatprep.subr.bf16.mxu0 %v2556
        %3482 = vmatpush1.bf16.msra.mxu0 %v2555
        %3483 = vmatprep.subr.bf16.mxu0 %v2588
        %3484 = vmatpush1.bf16.msra.mxu0 %v2587
        %3485 = vmatprep.subr.bf16.mxu0 %v2620
        %3486 = vmatpush1.bf16.msra.mxu0 %v2619
        %3487 = vmatprep.subr.bf16.mxu0 %v2652
        %3488 = vmatpush1.bf16.msra.mxu0 %v2651
        %3489 = vmatprep.subr.bf16.mxu0 %v2684
        %3490 = vmatpush1.bf16.msra.mxu0 %v2683
        %3491 = vmatprep.subr.bf16.mxu0 %v2716
        %3492 = vmatpush1.bf16.msra.mxu0 %v2715
        %3493 = vmatprep.subr.bf16.mxu0 %v2748
        %3494 = vmatpush1.bf16.msra.mxu0 %v2747
        %3495 = vmatprep.subr.bf16.mxu0 %v2780
        %3496 = vmatpush1.bf16.msra.mxu0 %v2779
        %3497 = vmatprep.mubr.bf16.mxu0 %v744
        %3498 = vmatmul.mubr.bf16.gmra.mrb[0].mxu0 %v743
        %v3499 = vpop.f32.mrb[0].mxu0
        %v3500 = vadd.f32 0.0, %v3499
        %v3501 = vpop.f32.mrb[0].mxu0
        %v3502 = vadd.f32 0.0, %v3501
        %v3503 = vpop.f32.mrb[0].mxu0
        %v3504 = vadd.f32 0.0, %v3503
        %v3505 = vpop.f32.mrb[0].mxu0
        %v3506 = vadd.f32 0.0, %v3505
        %3507 = vmatprep.mubr.bf16.mxu0 %v746
        %3508 = vmatmul.mubr.bf16.gmra.mrb[0].mxu0 %v745
        %v3509 = vpop.f32.mrb[0].mxu0
        %v3510 = vadd.f32 0.0, %v3509
        %v3511 = vpop.f32.mrb[0].mxu0
        %v3512 = vadd.f32 0.0, %v3511
        %v3513 = vpop.f32.mrb[0].mxu0
        %v3514 = vadd.f32 0.0, %v3513
        %v3515 = vpop.f32.mrb[0].mxu0
        %v3516 = vadd.f32 0.0, %v3515
        %3517 = vmatprep.mubr.bf16.mxu0 %v748
        %3518 = vmatmul.mubr.bf16.gmra.mrb[0].mxu0 %v747
        %v3519 = vpop.f32.mrb[0].mxu0
        %v3520 = vadd.f32 0.0, %v3519
        %v3521 = vpop.f32.mrb[0].mxu0
        %v3522 = vadd.f32 0.0, %v3521
        %v3523 = vpop.f32.mrb[0].mxu0
        %v3524 = vadd.f32 0.0, %v3523
        %v3525 = vpop.f32.mrb[0].mxu0
        %v3526 = vadd.f32 0.0, %v3525
        %3527 = vmatprep.mubr.bf16.mxu0 %v750
        %3528 = vmatmul.mubr.bf16.gmra.mrb[0].mxu0 %v749
        %v3529 = vpop.f32.mrb[0].mxu0
        %v3530 = vadd.f32 0.0, %v3529
        %v3531 = vpop.f32.mrb[0].mxu0
        %v3532 = vadd.f32 0.0, %v3531
        %v3533 = vpop.f32.mrb[0].mxu0
        %v3534 = vadd.f32 0.0, %v3533
        %v3535 = vpop.f32.mrb[0].mxu0
        %v3536 = vadd.f32 0.0, %v3535
        %3537 = vdwg.mxu0
        %3538 = vmatprep.subr.bf16.mxu0 %v2302
        %3539 = vmatpush1.bf16.msra.mxu0 %v2301
        %3540 = vmatprep.subr.bf16.mxu0 %v2334
        %3541 = vmatpush1.bf16.msra.mxu0 %v2333
        %3542 = vmatprep.subr.bf16.mxu0 %v2366
        %3543 = vmatpush1.bf16.msra.mxu0 %v2365
        %3544 = vmatprep.subr.bf16.mxu0 %v2398
        %3545 = vmatpush1.bf16.msra.mxu0 %v2397
        %3546 = vmatprep.subr.bf16.mxu0 %v2430
        %3547 = vmatpush1.bf16.msra.mxu0 %v2429
        %3548 = vmatprep.subr.bf16.mxu0 %v2462
        %3549 = vmatpush1.bf16.msra.mxu0 %v2461
        %3550 = vmatprep.subr.bf16.mxu0 %v2494
        %3551 = vmatpush1.bf16.msra.mxu0 %v2493
        %3552 = vmatprep.subr.bf16.mxu0 %v2526
        %3553 = vmatpush1.bf16.msra.mxu0 %v2525
        %3554 = vmatprep.subr.bf16.mxu0 %v2558
        %3555 = vmatpush1.bf16.msra.mxu0 %v2557
        %3556 = vmatprep.subr.bf16.mxu0 %v2590
        %3557 = vmatpush1.bf16.msra.mxu0 %v2589
        %3558 = vmatprep.subr.bf16.mxu0 %v2622
        %3559 = vmatpush1.bf16.msra.mxu0 %v2621
        %3560 = vmatprep.subr.bf16.mxu0 %v2654
        %3561 = vmatpush1.bf16.msra.mxu0 %v2653
        %3562 = vmatprep.subr.bf16.mxu0 %v2686
        %3563 = vmatpush1.bf16.msra.mxu0 %v2685
        %3564 = vmatprep.subr.bf16.mxu0 %v2718
        %3565 = vmatpush1.bf16.msra.mxu0 %v2717
        %3566 = vmatprep.subr.bf16.mxu0 %v2750
        %3567 = vmatpush1.bf16.msra.mxu0 %v2749
        %3568 = vmatprep.subr.bf16.mxu0 %v2782
        %3569 = vmatpush1.bf16.msra.mxu0 %v2781
        %3570 = vmatprep.mubr.bf16.mxu0 %v744
        %3571 = vmatmul.mubr.bf16.gmra.mrb[0].mxu0 %v743
        %v3572 = vpop.f32.mrb[0].mxu0
        %v3573 = vadd.f32 0.0, %v3572
        %v3574 = vpop.f32.mrb[0].mxu0
        %v3575 = vadd.f32 0.0, %v3574
        %v3576 = vpop.f32.mrb[0].mxu0
        %v3577 = vadd.f32 0.0, %v3576
        %v3578 = vpop.f32.mrb[0].mxu0
        %v3579 = vadd.f32 0.0, %v3578
        %3580 = vmatprep.mubr.bf16.mxu0 %v746
        %3581 = vmatmul.mubr.bf16.gmra.mrb[0].mxu0 %v745
        %v3582 = vpop.f32.mrb[0].mxu0
        %v3583 = vadd.f32 0.0, %v3582
        %v3584 = vpop.f32.mrb[0].mxu0
        %v3585 = vadd.f32 0.0, %v3584
        %v3586 = vpop.f32.mrb[0].mxu0
        %v3587 = vadd.f32 0.0, %v3586
        %v3588 = vpop.f32.mrb[0].mxu0
        %v3589 = vadd.f32 0.0, %v3588
        %3590 = vmatprep.mubr.bf16.mxu0 %v748
        %3591 = vmatmul.mubr.bf16.gmra.mrb[0].mxu0 %v747
        %v3592 = vpop.f32.mrb[0].mxu0
        %v3593 = vadd.f32 0.0, %v3592
        %v3594 = vpop.f32.mrb[0].mxu0
        %v3595 = vadd.f32 0.0, %v3594
        %v3596 = vpop.f32.mrb[0].mxu0
        %v3597 = vadd.f32 0.0, %v3596
        %v3598 = vpop.f32.mrb[0].mxu0
        %v3599 = vadd.f32 0.0, %v3598
        %3600 = vmatprep.mubr.bf16.mxu0 %v750
        %3601 = vmatmul.mubr.bf16.gmra.mrb[0].mxu0 %v749
        %v3602 = vpop.f32.mrb[0].mxu0
        %v3603 = vadd.f32 0.0, %v3602
        %v3604 = vpop.f32.mrb[0].mxu0
        %v3605 = vadd.f32 0.0, %v3604
        %v3606 = vpop.f32.mrb[0].mxu0
        %v3607 = vadd.f32 0.0, %v3606
        %v3608 = vpop.f32.mrb[0].mxu0
        %v3609 = vadd.f32 0.0, %v3608
        %3610 = vdwg.mxu0
        %3611 = vmatprep.subr.bf16.mxu0 %v2304
        %3612 = vmatpush1.bf16.msra.mxu0 %v2303
        %3613 = vmatprep.subr.bf16.mxu0 %v2336
        %3614 = vmatpush1.bf16.msra.mxu0 %v2335
        %3615 = vmatprep.subr.bf16.mxu0 %v2368
        %3616 = vmatpush1.bf16.msra.mxu0 %v2367
        %3617 = vmatprep.subr.bf16.mxu0 %v2400
        %3618 = vmatpush1.bf16.msra.mxu0 %v2399
        %3619 = vmatprep.subr.bf16.mxu0 %v2432
        %3620 = vmatpush1.bf16.msra.mxu0 %v2431
        %3621 = vmatprep.subr.bf16.mxu0 %v2464
        %3622 = vmatpush1.bf16.msra.mxu0 %v2463
        %3623 = vmatprep.subr.bf16.mxu0 %v2496
        %3624 = vmatpush1.bf16.msra.mxu0 %v2495
        %3625 = vmatprep.subr.bf16.mxu0 %v2528
        %3626 = vmatpush1.bf16.msra.mxu0 %v2527
        %3627 = vmatprep.subr.bf16.mxu0 %v2560
        %3628 = vmatpush1.bf16.msra.mxu0 %v2559
        %3629 = vmatprep.subr.bf16.mxu0 %v2592
        %3630 = vmatpush1.bf16.msra.mxu0 %v2591
        %3631 = vmatprep.subr.bf16.mxu0 %v2624
        %3632 = vmatpush1.bf16.msra.mxu0 %v2623
        %3633 = vmatprep.subr.bf16.mxu0 %v2656
        %3634 = vmatpush1.bf16.msra.mxu0 %v2655
        %3635 = vmatprep.subr.bf16.mxu0 %v2688
        %3636 = vmatpush1.bf16.msra.mxu0 %v2687
        %3637 = vmatprep.subr.bf16.mxu0 %v2720
        %3638 = vmatpush1.bf16.msra.mxu0 %v2719
        %3639 = vmatprep.subr.bf16.mxu0 %v2752
        %3640 = vmatpush1.bf16.msra.mxu0 %v2751
        %3641 = vmatprep.subr.bf16.mxu0 %v2784
        %3642 = vmatpush1.bf16.msra.mxu0 %v2783
        %3643 = vmatprep.mubr.bf16.mxu0 %v744
        %3644 = vmatmul.mubr.bf16.gmra.mrb[0].mxu0 %v743
        %v3645 = vpop.f32.mrb[0].mxu0
        %v3646 = vadd.f32 0.0, %v3645
        %v3647 = vpop.f32.mrb[0].mxu0
        %v3648 = vadd.f32 0.0, %v3647
        %v3649 = vpop.f32.mrb[0].mxu0
        %v3650 = vadd.f32 0.0, %v3649
        %v3651 = vpop.f32.mrb[0].mxu0
        %v3652 = vadd.f32 0.0, %v3651
        %3653 = vmatprep.mubr.bf16.mxu0 %v746
        %3654 = vmatmul.mubr.bf16.gmra.mrb[0].mxu0 %v745
        %v3655 = vpop.f32.mrb[0].mxu0
        %v3656 = vadd.f32 0.0, %v3655
        %v3657 = vpop.f32.mrb[0].mxu0
        %v3658 = vadd.f32 0.0, %v3657
        %v3659 = vpop.f32.mrb[0].mxu0
        %v3660 = vadd.f32 0.0, %v3659
        %v3661 = vpop.f32.mrb[0].mxu0
        %v3662 = vadd.f32 0.0, %v3661
        %3663 = vmatprep.mubr.bf16.mxu0 %v748
        %3664 = vmatmul.mubr.bf16.gmra.mrb[0].mxu0 %v747
        %v3665 = vpop.f32.mrb[0].mxu0
        %v3666 = vadd.f32 0.0, %v3665
        %v3667 = vpop.f32.mrb[0].mxu0
        %v3668 = vadd.f32 0.0, %v3667
        %v3669 = vpop.f32.mrb[0].mxu0
        %v3670 = vadd.f32 0.0, %v3669
        %v3671 = vpop.f32.mrb[0].mxu0
        %v3672 = vadd.f32 0.0, %v3671
        %3673 = vmatprep.mubr.bf16.mxu0 %v750
        %3674 = vmatmul.mubr.bf16.gmra.mrb[0].mxu0 %v749
        %v3675 = vpop.f32.mrb[0].mxu0
        %v3676 = vadd.f32 0.0, %v3675
        %v3677 = vpop.f32.mrb[0].mxu0
        %v3678 = vadd.f32 0.0, %v3677
        %v3679 = vpop.f32.mrb[0].mxu0
        %v3680 = vadd.f32 0.0, %v3679
        %v3681 = vpop.f32.mrb[0].mxu0
        %v3682 = vadd.f32 0.0, %v3681
        %3683 = vdwg.mxu0
        %3684 = vmatprep.subr.bf16.mxu0 %v2306
        %3685 = vmatpush1.bf16.msra.mxu0 %v2305
        %3686 = vmatprep.subr.bf16.mxu0 %v2338
        %3687 = vmatpush1.bf16.msra.mxu0 %v2337
        %3688 = vmatprep.subr.bf16.mxu0 %v2370
        %3689 = vmatpush1.bf16.msra.mxu0 %v2369
        %3690 = vmatprep.subr.bf16.mxu0 %v2402
        %3691 = vmatpush1.bf16.msra.mxu0 %v2401
        %3692 = vmatprep.subr.bf16.mxu0 %v2434
        %3693 = vmatpush1.bf16.msra.mxu0 %v2433
        %3694 = vmatprep.subr.bf16.mxu0 %v2466
        %3695 = vmatpush1.bf16.msra.mxu0 %v2465
        %3696 = vmatprep.subr.bf16.mxu0 %v2498
        %3697 = vmatpush1.bf16.msra.mxu0 %v2497
        %3698 = vmatprep.subr.bf16.mxu0 %v2530
        %3699 = vmatpush1.bf16.msra.mxu0 %v2529
        %3700 = vmatprep.subr.bf16.mxu0 %v2562
        %3701 = vmatpush1.bf16.msra.mxu0 %v2561
        %3702 = vmatprep.subr.bf16.mxu0 %v2594
        %3703 = vmatpush1.bf16.msra.mxu0 %v2593
        %3704 = vmatprep.subr.bf16.mxu0 %v2626
        %3705 = vmatpush1.bf16.msra.mxu0 %v2625
        %3706 = vmatprep.subr.bf16.mxu0 %v2658
        %3707 = vmatpush1.bf16.msra.mxu0 %v2657
        %3708 = vmatprep.subr.bf16.mxu0 %v2690
        %3709 = vmatpush1.bf16.msra.mxu0 %v2689
        %3710 = vmatprep.subr.bf16.mxu0 %v2722
        %3711 = vmatpush1.bf16.msra.mxu0 %v2721
        %3712 = vmatprep.subr.bf16.mxu0 %v2754
        %3713 = vmatpush1.bf16.msra.mxu0 %v2753
        %3714 = vmatprep.subr.bf16.mxu0 %v2786
        %3715 = vmatpush1.bf16.msra.mxu0 %v2785
        %3716 = vmatprep.mubr.bf16.mxu0 %v744
        %3717 = vmatmul.mubr.bf16.gmra.mrb[0].mxu0 %v743
        %v3718 = vpop.f32.mrb[0].mxu0
        %v3719 = vadd.f32 0.0, %v3718
        %v3720 = vpop.f32.mrb[0].mxu0
        %v3721 = vadd.f32 0.0, %v3720
        %v3722 = vpop.f32.mrb[0].mxu0
        %v3723 = vadd.f32 0.0, %v3722
        %v3724 = vpop.f32.mrb[0].mxu0
        %v3725 = vadd.f32 0.0, %v3724
        %3726 = vmatprep.mubr.bf16.mxu0 %v746
        %3727 = vmatmul.mubr.bf16.gmra.mrb[0].mxu0 %v745
        %v3728 = vpop.f32.mrb[0].mxu0
        %v3729 = vadd.f32 0.0, %v3728
        %v3730 = vpop.f32.mrb[0].mxu0
        %v3731 = vadd.f32 0.0, %v3730
        %v3732 = vpop.f32.mrb[0].mxu0
        %v3733 = vadd.f32 0.0, %v3732
        %v3734 = vpop.f32.mrb[0].mxu0
        %v3735 = vadd.f32 0.0, %v3734
        %3736 = vmatprep.mubr.bf16.mxu0 %v748
        %3737 = vmatmul.mubr.bf16.gmra.mrb[0].mxu0 %v747
        %v3738 = vpop.f32.mrb[0].mxu0
        %v3739 = vadd.f32 0.0, %v3738
        %v3740 = vpop.f32.mrb[0].mxu0
        %v3741 = vadd.f32 0.0, %v3740
        %v3742 = vpop.f32.mrb[0].mxu0
        %v3743 = vadd.f32 0.0, %v3742
        %v3744 = vpop.f32.mrb[0].mxu0
        %v3745 = vadd.f32 0.0, %v3744
        %3746 = vmatprep.mubr.bf16.mxu0 %v750
        %3747 = vmatmul.mubr.bf16.gmra.mrb[0].mxu0 %v749
        %v3748 = vpop.f32.mrb[0].mxu0
        %v3749 = vadd.f32 0.0, %v3748
        %v3750 = vpop.f32.mrb[0].mxu0
        %v3751 = vadd.f32 0.0, %v3750
        %v3752 = vpop.f32.mrb[0].mxu0
        %v3753 = vadd.f32 0.0, %v3752
        %v3754 = vpop.f32.mrb[0].mxu0
        %v3755 = vadd.f32 0.0, %v3754
        %3756 = vdwg.mxu0
        %3757 = vmatprep.subr.bf16.mxu0 %v2308
        %3758 = vmatpush1.bf16.msra.mxu0 %v2307
        %3759 = vmatprep.subr.bf16.mxu0 %v2340
        %3760 = vmatpush1.bf16.msra.mxu0 %v2339
        %3761 = vmatprep.subr.bf16.mxu0 %v2372
        %3762 = vmatpush1.bf16.msra.mxu0 %v2371
        %3763 = vmatprep.subr.bf16.mxu0 %v2404
        %3764 = vmatpush1.bf16.msra.mxu0 %v2403
        %3765 = vmatprep.subr.bf16.mxu0 %v2436
        %3766 = vmatpush1.bf16.msra.mxu0 %v2435
        %3767 = vmatprep.subr.bf16.mxu0 %v2468
        %3768 = vmatpush1.bf16.msra.mxu0 %v2467
        %3769 = vmatprep.subr.bf16.mxu0 %v2500
        %3770 = vmatpush1.bf16.msra.mxu0 %v2499
        %3771 = vmatprep.subr.bf16.mxu0 %v2532
        %3772 = vmatpush1.bf16.msra.mxu0 %v2531
        %3773 = vmatprep.subr.bf16.mxu0 %v2564
        %3774 = vmatpush1.bf16.msra.mxu0 %v2563
        %3775 = vmatprep.subr.bf16.mxu0 %v2596
        %3776 = vmatpush1.bf16.msra.mxu0 %v2595
        %3777 = vmatprep.subr.bf16.mxu0 %v2628
        %3778 = vmatpush1.bf16.msra.mxu0 %v2627
        %3779 = vmatprep.subr.bf16.mxu0 %v2660
        %3780 = vmatpush1.bf16.msra.mxu0 %v2659
        %3781 = vmatprep.subr.bf16.mxu0 %v2692
        %3782 = vmatpush1.bf16.msra.mxu0 %v2691
        %3783 = vmatprep.subr.bf16.mxu0 %v2724
        %3784 = vmatpush1.bf16.msra.mxu0 %v2723
        %3785 = vmatprep.subr.bf16.mxu0 %v2756
        %3786 = vmatpush1.bf16.msra.mxu0 %v2755
        %3787 = vmatprep.subr.bf16.mxu0 %v2788
        %3788 = vmatpush1.bf16.msra.mxu0 %v2787
        %3789 = vmatprep.mubr.bf16.mxu0 %v744
        %3790 = vmatmul.mubr.bf16.gmra.mrb[0].mxu0 %v743
        %v3791 = vpop.f32.mrb[0].mxu0
        %v3792 = vadd.f32 0.0, %v3791
        %v3793 = vpop.f32.mrb[0].mxu0
        %v3794 = vadd.f32 0.0, %v3793
        %v3795 = vpop.f32.mrb[0].mxu0
        %v3796 = vadd.f32 0.0, %v3795
        %v3797 = vpop.f32.mrb[0].mxu0
        %v3798 = vadd.f32 0.0, %v3797
        %3799 = vmatprep.mubr.bf16.mxu0 %v746
        %3800 = vmatmul.mubr.bf16.gmra.mrb[0].mxu0 %v745
        %v3801 = vpop.f32.mrb[0].mxu0
        %v3802 = vadd.f32 0.0, %v3801
        %v3803 = vpop.f32.mrb[0].mxu0
        %v3804 = vadd.f32 0.0, %v3803
        %v3805 = vpop.f32.mrb[0].mxu0
        %v3806 = vadd.f32 0.0, %v3805
        %v3807 = vpop.f32.mrb[0].mxu0
        %v3808 = vadd.f32 0.0, %v3807
        %3809 = vmatprep.mubr.bf16.mxu0 %v748
        %3810 = vmatmul.mubr.bf16.gmra.mrb[0].mxu0 %v747
        %v3811 = vpop.f32.mrb[0].mxu0
        %v3812 = vadd.f32 0.0, %v3811
        %v3813 = vpop.f32.mrb[0].mxu0
        %v3814 = vadd.f32 0.0, %v3813
        %v3815 = vpop.f32.mrb[0].mxu0
        %v3816 = vadd.f32 0.0, %v3815
        %v3817 = vpop.f32.mrb[0].mxu0
        %v3818 = vadd.f32 0.0, %v3817
        %3819 = vmatprep.mubr.bf16.mxu0 %v750
        %3820 = vmatmul.mubr.bf16.gmra.mrb[0].mxu0 %v749
        %v3821 = vpop.f32.mrb[0].mxu0
        %v3822 = vadd.f32 0.0, %v3821
        %v3823 = vpop.f32.mrb[0].mxu0
        %v3824 = vadd.f32 0.0, %v3823
        %v3825 = vpop.f32.mrb[0].mxu0
        %v3826 = vadd.f32 0.0, %v3825
        %v3827 = vpop.f32.mrb[0].mxu0
        %v3828 = vadd.f32 0.0, %v3827
        %3829 = vdwg.mxu0
        %3830 = vmatprep.subr.bf16.mxu0 %v2310
        %3831 = vmatpush1.bf16.msra.mxu0 %v2309
        %3832 = vmatprep.subr.bf16.mxu0 %v2342
        %3833 = vmatpush1.bf16.msra.mxu0 %v2341
        %3834 = vmatprep.subr.bf16.mxu0 %v2374
        %3835 = vmatpush1.bf16.msra.mxu0 %v2373
        %3836 = vmatprep.subr.bf16.mxu0 %v2406
        %3837 = vmatpush1.bf16.msra.mxu0 %v2405
        %3838 = vmatprep.subr.bf16.mxu0 %v2438
        %3839 = vmatpush1.bf16.msra.mxu0 %v2437
        %3840 = vmatprep.subr.bf16.mxu0 %v2470
        %3841 = vmatpush1.bf16.msra.mxu0 %v2469
        %3842 = vmatprep.subr.bf16.mxu0 %v2502
        %3843 = vmatpush1.bf16.msra.mxu0 %v2501
        %3844 = vmatprep.subr.bf16.mxu0 %v2534
        %3845 = vmatpush1.bf16.msra.mxu0 %v2533
        %3846 = vmatprep.subr.bf16.mxu0 %v2566
        %3847 = vmatpush1.bf16.msra.mxu0 %v2565
        %3848 = vmatprep.subr.bf16.mxu0 %v2598
        %3849 = vmatpush1.bf16.msra.mxu0 %v2597
        %3850 = vmatprep.subr.bf16.mxu0 %v2630
        %3851 = vmatpush1.bf16.msra.mxu0 %v2629
        %3852 = vmatprep.subr.bf16.mxu0 %v2662
        %3853 = vmatpush1.bf16.msra.mxu0 %v2661
        %3854 = vmatprep.subr.bf16.mxu0 %v2694
        %3855 = vmatpush1.bf16.msra.mxu0 %v2693
        %3856 = vmatprep.subr.bf16.mxu0 %v2726
        %3857 = vmatpush1.bf16.msra.mxu0 %v2725
        %3858 = vmatprep.subr.bf16.mxu0 %v2758
        %3859 = vmatpush1.bf16.msra.mxu0 %v2757
        %3860 = vmatprep.subr.bf16.mxu0 %v2790
        %3861 = vmatpush1.bf16.msra.mxu0 %v2789
        %3862 = vmatprep.mubr.bf16.mxu0 %v744
        %3863 = vmatmul.mubr.bf16.gmra.mrb[0].mxu0 %v743
        %v3864 = vpop.f32.mrb[0].mxu0
        %v3865 = vadd.f32 0.0, %v3864
        %v3866 = vpop.f32.mrb[0].mxu0
        %v3867 = vadd.f32 0.0, %v3866
        %v3868 = vpop.f32.mrb[0].mxu0
        %v3869 = vadd.f32 0.0, %v3868
        %v3870 = vpop.f32.mrb[0].mxu0
        %v3871 = vadd.f32 0.0, %v3870
        %3872 = vmatprep.mubr.bf16.mxu0 %v746
        %3873 = vmatmul.mubr.bf16.gmra.mrb[0].mxu0 %v745
        %v3874 = vpop.f32.mrb[0].mxu0
        %v3875 = vadd.f32 0.0, %v3874
        %v3876 = vpop.f32.mrb[0].mxu0
        %v3877 = vadd.f32 0.0, %v3876
        %v3878 = vpop.f32.mrb[0].mxu0
        %v3879 = vadd.f32 0.0, %v3878
        %v3880 = vpop.f32.mrb[0].mxu0
        %v3881 = vadd.f32 0.0, %v3880
        %3882 = vmatprep.mubr.bf16.mxu0 %v748
        %3883 = vmatmul.mubr.bf16.gmra.mrb[0].mxu0 %v747
        %v3884 = vpop.f32.mrb[0].mxu0
        %v3885 = vadd.f32 0.0, %v3884
        %v3886 = vpop.f32.mrb[0].mxu0
        %v3887 = vadd.f32 0.0, %v3886
        %v3888 = vpop.f32.mrb[0].mxu0
        %v3889 = vadd.f32 0.0, %v3888
        %v3890 = vpop.f32.mrb[0].mxu0
        %v3891 = vadd.f32 0.0, %v3890
        %3892 = vmatprep.mubr.bf16.mxu0 %v750
        %3893 = vmatmul.mubr.bf16.gmra.mrb[0].mxu0 %v749
        %v3894 = vpop.f32.mrb[0].mxu0
        %v3895 = vadd.f32 0.0, %v3894
        %v3896 = vpop.f32.mrb[0].mxu0
        %v3897 = vadd.f32 0.0, %v3896
        %v3898 = vpop.f32.mrb[0].mxu0
        %v3899 = vadd.f32 0.0, %v3898
        %v3900 = vpop.f32.mrb[0].mxu0
        %v3901 = vadd.f32 0.0, %v3900
        %3902 = vdwg.mxu0
        %3903 = vmatprep.subr.bf16.mxu0 %v2312
        %3904 = vmatpush1.bf16.msra.mxu0 %v2311
        %3905 = vmatprep.subr.bf16.mxu0 %v2344
        %3906 = vmatpush1.bf16.msra.mxu0 %v2343
        %3907 = vmatprep.subr.bf16.mxu0 %v2376
        %3908 = vmatpush1.bf16.msra.mxu0 %v2375
        %3909 = vmatprep.subr.bf16.mxu0 %v2408
        %3910 = vmatpush1.bf16.msra.mxu0 %v2407
        %3911 = vmatprep.subr.bf16.mxu0 %v2440
        %3912 = vmatpush1.bf16.msra.mxu0 %v2439
        %3913 = vmatprep.subr.bf16.mxu0 %v2472
        %3914 = vmatpush1.bf16.msra.mxu0 %v2471
        %3915 = vmatprep.subr.bf16.mxu0 %v2504
        %3916 = vmatpush1.bf16.msra.mxu0 %v2503
        %3917 = vmatprep.subr.bf16.mxu0 %v2536
        %3918 = vmatpush1.bf16.msra.mxu0 %v2535
        %3919 = vmatprep.subr.bf16.mxu0 %v2568
        %3920 = vmatpush1.bf16.msra.mxu0 %v2567
        %3921 = vmatprep.subr.bf16.mxu0 %v2600
        %3922 = vmatpush1.bf16.msra.mxu0 %v2599
        %3923 = vmatprep.subr.bf16.mxu0 %v2632
        %3924 = vmatpush1.bf16.msra.mxu0 %v2631
        %3925 = vmatprep.subr.bf16.mxu0 %v2664
        %3926 = vmatpush1.bf16.msra.mxu0 %v2663
        %3927 = vmatprep.subr.bf16.mxu0 %v2696
        %3928 = vmatpush1.bf16.msra.mxu0 %v2695
        %3929 = vmatprep.subr.bf16.mxu0 %v2728
        %3930 = vmatpush1.bf16.msra.mxu0 %v2727
        %3931 = vmatprep.subr.bf16.mxu0 %v2760
        %3932 = vmatpush1.bf16.msra.mxu0 %v2759
        %3933 = vmatprep.subr.bf16.mxu0 %v2792
        %3934 = vmatpush1.bf16.msra.mxu0 %v2791
        %3935 = vmatprep.mubr.bf16.mxu0 %v744
        %3936 = vmatmul.mubr.bf16.gmra.mrb[0].mxu0 %v743
        %v3937 = vpop.f32.mrb[0].mxu0
        %v3938 = vadd.f32 0.0, %v3937
        %v3939 = vpop.f32.mrb[0].mxu0
        %v3940 = vadd.f32 0.0, %v3939
        %v3941 = vpop.f32.mrb[0].mxu0
        %v3942 = vadd.f32 0.0, %v3941
        %v3943 = vpop.f32.mrb[0].mxu0
        %v3944 = vadd.f32 0.0, %v3943
        %3945 = vmatprep.mubr.bf16.mxu0 %v746
        %3946 = vmatmul.mubr.bf16.gmra.mrb[0].mxu0 %v745
        %v3947 = vpop.f32.mrb[0].mxu0
        %v3948 = vadd.f32 0.0, %v3947
        %v3949 = vpop.f32.mrb[0].mxu0
        %v3950 = vadd.f32 0.0, %v3949
        %v3951 = vpop.f32.mrb[0].mxu0
        %v3952 = vadd.f32 0.0, %v3951
        %v3953 = vpop.f32.mrb[0].mxu0
        %v3954 = vadd.f32 0.0, %v3953
        %3955 = vmatprep.mubr.bf16.mxu0 %v748
        %3956 = vmatmul.mubr.bf16.gmra.mrb[0].mxu0 %v747
        %v3957 = vpop.f32.mrb[0].mxu0
        %v3958 = vadd.f32 0.0, %v3957
        %v3959 = vpop.f32.mrb[0].mxu0
        %v3960 = vadd.f32 0.0, %v3959
        %v3961 = vpop.f32.mrb[0].mxu0
        %v3962 = vadd.f32 0.0, %v3961
        %v3963 = vpop.f32.mrb[0].mxu0
        %v3964 = vadd.f32 0.0, %v3963
        %3965 = vmatprep.mubr.bf16.mxu0 %v750
        %3966 = vmatmul.mubr.bf16.gmra.mrb[0].mxu0 %v749
        %v3967 = vpop.f32.mrb[0].mxu0
        %v3968 = vadd.f32 0.0, %v3967
        %v3969 = vpop.f32.mrb[0].mxu0
        %v3970 = vadd.f32 0.0, %v3969
        %v3971 = vpop.f32.mrb[0].mxu0
        %v3972 = vadd.f32 0.0, %v3971
        %v3973 = vpop.f32.mrb[0].mxu0
        %v3974 = vadd.f32 0.0, %v3973
        %3975 = vdwg.mxu0
        %3976 = vmatprep.subr.bf16.mxu0 %v2314
        %3977 = vmatpush1.bf16.msra.mxu0 %v2313
        %3978 = vmatprep.subr.bf16.mxu0 %v2346
        %3979 = vmatpush1.bf16.msra.mxu0 %v2345
        %3980 = vmatprep.subr.bf16.mxu0 %v2378
        %3981 = vmatpush1.bf16.msra.mxu0 %v2377
        %3982 = vmatprep.subr.bf16.mxu0 %v2410
        %3983 = vmatpush1.bf16.msra.mxu0 %v2409
        %3984 = vmatprep.subr.bf16.mxu0 %v2442
        %3985 = vmatpush1.bf16.msra.mxu0 %v2441
        %3986 = vmatprep.subr.bf16.mxu0 %v2474
        %3987 = vmatpush1.bf16.msra.mxu0 %v2473
        %3988 = vmatprep.subr.bf16.mxu0 %v2506
        %3989 = vmatpush1.bf16.msra.mxu0 %v2505
        %3990 = vmatprep.subr.bf16.mxu0 %v2538
        %3991 = vmatpush1.bf16.msra.mxu0 %v2537
        %3992 = vmatprep.subr.bf16.mxu0 %v2570
        %3993 = vmatpush1.bf16.msra.mxu0 %v2569
        %3994 = vmatprep.subr.bf16.mxu0 %v2602
        %3995 = vmatpush1.bf16.msra.mxu0 %v2601
        %3996 = vmatprep.subr.bf16.mxu0 %v2634
        %3997 = vmatpush1.bf16.msra.mxu0 %v2633
        %3998 = vmatprep.subr.bf16.mxu0 %v2666
        %3999 = vmatpush1.bf16.msra.mxu0 %v2665
        %4000 = vmatprep.subr.bf16.mxu0 %v2698
        %4001 = vmatpush1.bf16.msra.mxu0 %v2697
        %4002 = vmatprep.subr.bf16.mxu0 %v2730
        %4003 = vmatpush1.bf16.msra.mxu0 %v2729
        %4004 = vmatprep.subr.bf16.mxu0 %v2762
        %4005 = vmatpush1.bf16.msra.mxu0 %v2761
        %4006 = vmatprep.subr.bf16.mxu0 %v2794
        %4007 = vmatpush1.bf16.msra.mxu0 %v2793
        %4008 = vmatprep.mubr.bf16.mxu0 %v744
        %4009 = vmatmul.mubr.bf16.gmra.mrb[0].mxu0 %v743
        %v4010 = vpop.f32.mrb[0].mxu0
        %v4011 = vadd.f32 0.0, %v4010
        %v4012 = vpop.f32.mrb[0].mxu0
        %v4013 = vadd.f32 0.0, %v4012
        %v4014 = vpop.f32.mrb[0].mxu0
        %v4015 = vadd.f32 0.0, %v4014
        %v4016 = vpop.f32.mrb[0].mxu0
        %v4017 = vadd.f32 0.0, %v4016
        %4018 = vmatprep.mubr.bf16.mxu0 %v746
        %4019 = vmatmul.mubr.bf16.gmra.mrb[0].mxu0 %v745
        %v4020 = vpop.f32.mrb[0].mxu0
        %v4021 = vadd.f32 0.0, %v4020
        %v4022 = vpop.f32.mrb[0].mxu0
        %v4023 = vadd.f32 0.0, %v4022
        %v4024 = vpop.f32.mrb[0].mxu0
        %v4025 = vadd.f32 0.0, %v4024
        %v4026 = vpop.f32.mrb[0].mxu0
        %v4027 = vadd.f32 0.0, %v4026
        %4028 = vmatprep.mubr.bf16.mxu0 %v748
        %4029 = vmatmul.mubr.bf16.gmra.mrb[0].mxu0 %v747
        %v4030 = vpop.f32.mrb[0].mxu0
        %v4031 = vadd.f32 0.0, %v4030
        %v4032 = vpop.f32.mrb[0].mxu0
        %v4033 = vadd.f32 0.0, %v4032
        %v4034 = vpop.f32.mrb[0].mxu0
        %v4035 = vadd.f32 0.0, %v4034
        %v4036 = vpop.f32.mrb[0].mxu0
        %v4037 = vadd.f32 0.0, %v4036
        %4038 = vmatprep.mubr.bf16.mxu0 %v750
        %4039 = vmatmul.mubr.bf16.gmra.mrb[0].mxu0 %v749
        %v4040 = vpop.f32.mrb[0].mxu0
        %v4041 = vadd.f32 0.0, %v4040
        %v4042 = vpop.f32.mrb[0].mxu0
        %v4043 = vadd.f32 0.0, %v4042
        %v4044 = vpop.f32.mrb[0].mxu0
        %v4045 = vadd.f32 0.0, %v4044
        %v4046 = vpop.f32.mrb[0].mxu0
        %v4047 = vadd.f32 0.0, %v4046
        %4048 = vdwg.mxu0
        %4049 = vmatprep.subr.bf16.mxu0 %v2316
        %4050 = vmatpush1.bf16.msra.mxu0 %v2315
        %4051 = vmatprep.subr.bf16.mxu0 %v2348
        %4052 = vmatpush1.bf16.msra.mxu0 %v2347
        %4053 = vmatprep.subr.bf16.mxu0 %v2380
        %4054 = vmatpush1.bf16.msra.mxu0 %v2379
        %4055 = vmatprep.subr.bf16.mxu0 %v2412
        %4056 = vmatpush1.bf16.msra.mxu0 %v2411
        %4057 = vmatprep.subr.bf16.mxu0 %v2444
        %4058 = vmatpush1.bf16.msra.mxu0 %v2443
        %4059 = vmatprep.subr.bf16.mxu0 %v2476
        %4060 = vmatpush1.bf16.msra.mxu0 %v2475
        %4061 = vmatprep.subr.bf16.mxu0 %v2508
        %4062 = vmatpush1.bf16.msra.mxu0 %v2507
        %4063 = vmatprep.subr.bf16.mxu0 %v2540
        %4064 = vmatpush1.bf16.msra.mxu0 %v2539
        %4065 = vmatprep.subr.bf16.mxu0 %v2572
        %4066 = vmatpush1.bf16.msra.mxu0 %v2571
        %4067 = vmatprep.subr.bf16.mxu0 %v2604
        %4068 = vmatpush1.bf16.msra.mxu0 %v2603
        %4069 = vmatprep.subr.bf16.mxu0 %v2636
        %4070 = vmatpush1.bf16.msra.mxu0 %v2635
        %4071 = vmatprep.subr.bf16.mxu0 %v2668
        %4072 = vmatpush1.bf16.msra.mxu0 %v2667
        %4073 = vmatprep.subr.bf16.mxu0 %v2700
        %4074 = vmatpush1.bf16.msra.mxu0 %v2699
        %4075 = vmatprep.subr.bf16.mxu0 %v2732
        %4076 = vmatpush1.bf16.msra.mxu0 %v2731
        %4077 = vmatprep.subr.bf16.mxu0 %v2764
        %4078 = vmatpush1.bf16.msra.mxu0 %v2763
        %4079 = vmatprep.subr.bf16.mxu0 %v2796
        %4080 = vmatpush1.bf16.msra.mxu0 %v2795
        %4081 = vmatprep.mubr.bf16.mxu0 %v744
        %4082 = vmatmul.mubr.bf16.gmra.mrb[0].mxu0 %v743
        %v4083 = vpop.f32.mrb[0].mxu0
        %v4084 = vadd.f32 0.0, %v4083
        %v4085 = vpop.f32.mrb[0].mxu0
        %v4086 = vadd.f32 0.0, %v4085
        %v4087 = vpop.f32.mrb[0].mxu0
        %v4088 = vadd.f32 0.0, %v4087
        %v4089 = vpop.f32.mrb[0].mxu0
        %v4090 = vadd.f32 0.0, %v4089
        %4091 = vmatprep.mubr.bf16.mxu0 %v746
        %4092 = vmatmul.mubr.bf16.gmra.mrb[0].mxu0 %v745
        %v4093 = vpop.f32.mrb[0].mxu0
        %v4094 = vadd.f32 0.0, %v4093
        %v4095 = vpop.f32.mrb[0].mxu0
        %v4096 = vadd.f32 0.0, %v4095
        %v4097 = vpop.f32.mrb[0].mxu0
        %v4098 = vadd.f32 0.0, %v4097
        %v4099 = vpop.f32.mrb[0].mxu0
        %v4100 = vadd.f32 0.0, %v4099
        %4101 = vmatprep.mubr.bf16.mxu0 %v748
        %4102 = vmatmul.mubr.bf16.gmra.mrb[0].mxu0 %v747
        %v4103 = vpop.f32.mrb[0].mxu0
        %v4104 = vadd.f32 0.0, %v4103
        %v4105 = vpop.f32.mrb[0].mxu0
        %v4106 = vadd.f32 0.0, %v4105
        %v4107 = vpop.f32.mrb[0].mxu0
        %v4108 = vadd.f32 0.0, %v4107
        %v4109 = vpop.f32.mrb[0].mxu0
        %v4110 = vadd.f32 0.0, %v4109
        %4111 = vmatprep.mubr.bf16.mxu0 %v750
        %4112 = vmatmul.mubr.bf16.gmra.mrb[0].mxu0 %v749
        %v4113 = vpop.f32.mrb[0].mxu0
        %v4114 = vadd.f32 0.0, %v4113
        %v4115 = vpop.f32.mrb[0].mxu0
        %v4116 = vadd.f32 0.0, %v4115
        %v4117 = vpop.f32.mrb[0].mxu0
        %v4118 = vadd.f32 0.0, %v4117
        %v4119 = vpop.f32.mrb[0].mxu0
        %v4120 = vadd.f32 0.0, %v4119
        %4121 = vdwg.mxu0
        %4122 = vmatprep.subr.bf16.mxu0 %v2318
        %4123 = vmatpush1.bf16.msra.mxu0 %v2317
        %4124 = vmatprep.subr.bf16.mxu0 %v2350
        %4125 = vmatpush1.bf16.msra.mxu0 %v2349
        %4126 = vmatprep.subr.bf16.mxu0 %v2382
        %4127 = vmatpush1.bf16.msra.mxu0 %v2381
        %4128 = vmatprep.subr.bf16.mxu0 %v2414
        %4129 = vmatpush1.bf16.msra.mxu0 %v2413
        %4130 = vmatprep.subr.bf16.mxu0 %v2446
        %4131 = vmatpush1.bf16.msra.mxu0 %v2445
        %4132 = vmatprep.subr.bf16.mxu0 %v2478
        %4133 = vmatpush1.bf16.msra.mxu0 %v2477
        %4134 = vmatprep.subr.bf16.mxu0 %v2510
        %4135 = vmatpush1.bf16.msra.mxu0 %v2509
        %4136 = vmatprep.subr.bf16.mxu0 %v2542
        %4137 = vmatpush1.bf16.msra.mxu0 %v2541
        %4138 = vmatprep.subr.bf16.mxu0 %v2574
        %4139 = vmatpush1.bf16.msra.mxu0 %v2573
        %4140 = vmatprep.subr.bf16.mxu0 %v2606
        %4141 = vmatpush1.bf16.msra.mxu0 %v2605
        %4142 = vmatprep.subr.bf16.mxu0 %v2638
        %4143 = vmatpush1.bf16.msra.mxu0 %v2637
        %4144 = vmatprep.subr.bf16.mxu0 %v2670
        %4145 = vmatpush1.bf16.msra.mxu0 %v2669
        %4146 = vmatprep.subr.bf16.mxu0 %v2702
        %4147 = vmatpush1.bf16.msra.mxu0 %v2701
        %4148 = vmatprep.subr.bf16.mxu0 %v2734
        %4149 = vmatpush1.bf16.msra.mxu0 %v2733
        %4150 = vmatprep.subr.bf16.mxu0 %v2766
        %4151 = vmatpush1.bf16.msra.mxu0 %v2765
        %4152 = vmatprep.subr.bf16.mxu0 %v2798
        %4153 = vmatpush1.bf16.msra.mxu0 %v2797
        %4154 = vmatprep.mubr.bf16.mxu0 %v744
        %4155 = vmatmul.mubr.bf16.gmra.mrb[0].mxu0 %v743
        %v4156 = vpop.f32.mrb[0].mxu0
        %v4157 = vadd.f32 0.0, %v4156
        %v4158 = vpop.f32.mrb[0].mxu0
        %v4159 = vadd.f32 0.0, %v4158
        %v4160 = vpop.f32.mrb[0].mxu0
        %v4161 = vadd.f32 0.0, %v4160
        %v4162 = vpop.f32.mrb[0].mxu0
        %v4163 = vadd.f32 0.0, %v4162
        %4164 = vmatprep.mubr.bf16.mxu0 %v746
        %4165 = vmatmul.mubr.bf16.gmra.mrb[0].mxu0 %v745
        %v4166 = vpop.f32.mrb[0].mxu0
        %v4167 = vadd.f32 0.0, %v4166
        %v4168 = vpop.f32.mrb[0].mxu0
        %v4169 = vadd.f32 0.0, %v4168
        %v4170 = vpop.f32.mrb[0].mxu0
        %v4171 = vadd.f32 0.0, %v4170
        %v4172 = vpop.f32.mrb[0].mxu0
        %v4173 = vadd.f32 0.0, %v4172
        %4174 = vmatprep.mubr.bf16.mxu0 %v748
        %4175 = vmatmul.mubr.bf16.gmra.mrb[0].mxu0 %v747
        %v4176 = vpop.f32.mrb[0].mxu0
        %v4177 = vadd.f32 0.0, %v4176
        %v4178 = vpop.f32.mrb[0].mxu0
        %v4179 = vadd.f32 0.0, %v4178
        %v4180 = vpop.f32.mrb[0].mxu0
        %v4181 = vadd.f32 0.0, %v4180
        %v4182 = vpop.f32.mrb[0].mxu0
        %v4183 = vadd.f32 0.0, %v4182
        %4184 = vmatprep.mubr.bf16.mxu0 %v750
        %4185 = vmatmul.mubr.bf16.gmra.mrb[0].mxu0 %v749
        %v4186 = vpop.f32.mrb[0].mxu0
        %v4187 = vadd.f32 0.0, %v4186
        %v4188 = vpop.f32.mrb[0].mxu0
        %v4189 = vadd.f32 0.0, %v4188
        %v4190 = vpop.f32.mrb[0].mxu0
        %v4191 = vadd.f32 0.0, %v4190
        %v4192 = vpop.f32.mrb[0].mxu0
        %v4193 = vadd.f32 0.0, %v4192
        %4194 = vdwg.mxu0
        %4195 = vmatprep.subr.bf16.mxu0 %v2320
        %4196 = vmatpush1.bf16.msra.mxu0 %v2319
        %4197 = vmatprep.subr.bf16.mxu0 %v2352
        %4198 = vmatpush1.bf16.msra.mxu0 %v2351
        %4199 = vmatprep.subr.bf16.mxu0 %v2384
        %4200 = vmatpush1.bf16.msra.mxu0 %v2383
        %4201 = vmatprep.subr.bf16.mxu0 %v2416
        %4202 = vmatpush1.bf16.msra.mxu0 %v2415
        %4203 = vmatprep.subr.bf16.mxu0 %v2448
        %4204 = vmatpush1.bf16.msra.mxu0 %v2447
        %4205 = vmatprep.subr.bf16.mxu0 %v2480
        %4206 = vmatpush1.bf16.msra.mxu0 %v2479
        %4207 = vmatprep.subr.bf16.mxu0 %v2512
        %4208 = vmatpush1.bf16.msra.mxu0 %v2511
        %4209 = vmatprep.subr.bf16.mxu0 %v2544
        %4210 = vmatpush1.bf16.msra.mxu0 %v2543
        %4211 = vmatprep.subr.bf16.mxu0 %v2576
        %4212 = vmatpush1.bf16.msra.mxu0 %v2575
        %4213 = vmatprep.subr.bf16.mxu0 %v2608
        %4214 = vmatpush1.bf16.msra.mxu0 %v2607
        %4215 = vmatprep.subr.bf16.mxu0 %v2640
        %4216 = vmatpush1.bf16.msra.mxu0 %v2639
        %4217 = vmatprep.subr.bf16.mxu0 %v2672
        %4218 = vmatpush1.bf16.msra.mxu0 %v2671
        %4219 = vmatprep.subr.bf16.mxu0 %v2704
        %4220 = vmatpush1.bf16.msra.mxu0 %v2703
        %4221 = vmatprep.subr.bf16.mxu0 %v2736
        %4222 = vmatpush1.bf16.msra.mxu0 %v2735
        %4223 = vmatprep.subr.bf16.mxu0 %v2768
        %4224 = vmatpush1.bf16.msra.mxu0 %v2767
        %4225 = vmatprep.subr.bf16.mxu0 %v2800
        %4226 = vmatpush1.bf16.msra.mxu0 %v2799
        %4227 = vmatprep.mubr.bf16.mxu0 %v744
        %4228 = vmatmul.mubr.bf16.gmra.mrb[0].mxu0 %v743
        %v4229 = vpop.f32.mrb[0].mxu0
        %v4230 = vadd.f32 0.0, %v4229
        %v4231 = vpop.f32.mrb[0].mxu0
        %v4232 = vadd.f32 0.0, %v4231
        %v4233 = vpop.f32.mrb[0].mxu0
        %v4234 = vadd.f32 0.0, %v4233
        %v4235 = vpop.f32.mrb[0].mxu0
        %v4236 = vadd.f32 0.0, %v4235
        %4237 = vmatprep.mubr.bf16.mxu0 %v746
        %4238 = vmatmul.mubr.bf16.gmra.mrb[0].mxu0 %v745
        %v4239 = vpop.f32.mrb[0].mxu0
        %v4240 = vadd.f32 0.0, %v4239
        %v4241 = vpop.f32.mrb[0].mxu0
        %v4242 = vadd.f32 0.0, %v4241
        %v4243 = vpop.f32.mrb[0].mxu0
        %v4244 = vadd.f32 0.0, %v4243
        %v4245 = vpop.f32.mrb[0].mxu0
        %v4246 = vadd.f32 0.0, %v4245
        %4247 = vmatprep.mubr.bf16.mxu0 %v748
        %4248 = vmatmul.mubr.bf16.gmra.mrb[0].mxu0 %v747
        %v4249 = vpop.f32.mrb[0].mxu0
        %v4250 = vadd.f32 0.0, %v4249
        %v4251 = vpop.f32.mrb[0].mxu0
        %v4252 = vadd.f32 0.0, %v4251
        %v4253 = vpop.f32.mrb[0].mxu0
        %v4254 = vadd.f32 0.0, %v4253
        %v4255 = vpop.f32.mrb[0].mxu0
        %v4256 = vadd.f32 0.0, %v4255
        %4257 = vmatprep.mubr.bf16.mxu0 %v750
        %4258 = vmatmul.mubr.bf16.gmra.mrb[0].mxu0 %v749
        %v4259 = vpop.f32.mrb[0].mxu0
        %v4260 = vadd.f32 0.0, %v4259
        %v4261 = vpop.f32.mrb[0].mxu0
        %v4262 = vadd.f32 0.0, %v4261
        %v4263 = vpop.f32.mrb[0].mxu0
        %v4264 = vadd.f32 0.0, %v4263
        %v4265 = vpop.f32.mrb[0].mxu0
        %v4266 = vadd.f32 0.0, %v4265
        %4267 = vdwg.mxu0
        %4268 = vmatprep.subr.bf16.mxu0 %v2322
        %4269 = vmatpush1.bf16.msra.mxu0 %v2321
        %4270 = vmatprep.subr.bf16.mxu0 %v2354
        %4271 = vmatpush1.bf16.msra.mxu0 %v2353
        %4272 = vmatprep.subr.bf16.mxu0 %v2386
        %4273 = vmatpush1.bf16.msra.mxu0 %v2385
        %4274 = vmatprep.subr.bf16.mxu0 %v2418
        %4275 = vmatpush1.bf16.msra.mxu0 %v2417
        %4276 = vmatprep.subr.bf16.mxu0 %v2450
        %4277 = vmatpush1.bf16.msra.mxu0 %v2449
        %4278 = vmatprep.subr.bf16.mxu0 %v2482
        %4279 = vmatpush1.bf16.msra.mxu0 %v2481
        %4280 = vmatprep.subr.bf16.mxu0 %v2514
        %4281 = vmatpush1.bf16.msra.mxu0 %v2513
        %4282 = vmatprep.subr.bf16.mxu0 %v2546
        %4283 = vmatpush1.bf16.msra.mxu0 %v2545
        %4284 = vmatprep.subr.bf16.mxu0 %v2578
        %4285 = vmatpush1.bf16.msra.mxu0 %v2577
        %4286 = vmatprep.subr.bf16.mxu0 %v2610
        %4287 = vmatpush1.bf16.msra.mxu0 %v2609
        %4288 = vmatprep.subr.bf16.mxu0 %v2642
        %4289 = vmatpush1.bf16.msra.mxu0 %v2641
        %4290 = vmatprep.subr.bf16.mxu0 %v2674
        %4291 = vmatpush1.bf16.msra.mxu0 %v2673
        %4292 = vmatprep.subr.bf16.mxu0 %v2706
        %4293 = vmatpush1.bf16.msra.mxu0 %v2705
        %4294 = vmatprep.subr.bf16.mxu0 %v2738
        %4295 = vmatpush1.bf16.msra.mxu0 %v2737
        %4296 = vmatprep.subr.bf16.mxu0 %v2770
        %4297 = vmatpush1.bf16.msra.mxu0 %v2769
        %4298 = vmatprep.subr.bf16.mxu0 %v2802
        %4299 = vmatpush1.bf16.msra.mxu0 %v2801
        %4300 = vmatprep.mubr.bf16.mxu0 %v744
        %4301 = vmatmul.mubr.bf16.gmra.mrb[0].mxu0 %v743
        %v4302 = vpop.f32.mrb[0].mxu0
        %v4303 = vadd.f32 0.0, %v4302
        %v4304 = vpop.f32.mrb[0].mxu0
        %v4305 = vadd.f32 0.0, %v4304
        %v4306 = vpop.f32.mrb[0].mxu0
        %v4307 = vadd.f32 0.0, %v4306
        %v4308 = vpop.f32.mrb[0].mxu0
        %v4309 = vadd.f32 0.0, %v4308
        %4310 = vmatprep.mubr.bf16.mxu0 %v746
        %4311 = vmatmul.mubr.bf16.gmra.mrb[0].mxu0 %v745
        %v4312 = vpop.f32.mrb[0].mxu0
        %v4313 = vadd.f32 0.0, %v4312
        %v4314 = vpop.f32.mrb[0].mxu0
        %v4315 = vadd.f32 0.0, %v4314
        %v4316 = vpop.f32.mrb[0].mxu0
        %v4317 = vadd.f32 0.0, %v4316
        %v4318 = vpop.f32.mrb[0].mxu0
        %v4319 = vadd.f32 0.0, %v4318
        %4320 = vmatprep.mubr.bf16.mxu0 %v748
        %4321 = vmatmul.mubr.bf16.gmra.mrb[0].mxu0 %v747
        %v4322 = vpop.f32.mrb[0].mxu0
        %v4323 = vadd.f32 0.0, %v4322
        %v4324 = vpop.f32.mrb[0].mxu0
        %v4325 = vadd.f32 0.0, %v4324
        %v4326 = vpop.f32.mrb[0].mxu0
        %v4327 = vadd.f32 0.0, %v4326
        %v4328 = vpop.f32.mrb[0].mxu0
        %v4329 = vadd.f32 0.0, %v4328
        %4330 = vmatprep.mubr.bf16.mxu0 %v750
        %4331 = vmatmul.mubr.bf16.gmra.mrb[0].mxu0 %v749
        %v4332 = vpop.f32.mrb[0].mxu0
        %v4333 = vadd.f32 0.0, %v4332
        %v4334 = vpop.f32.mrb[0].mxu0
        %v4335 = vadd.f32 0.0, %v4334
        %v4336 = vpop.f32.mrb[0].mxu0
        %v4337 = vadd.f32 0.0, %v4336
        %v4338 = vpop.f32.mrb[0].mxu0
        %v4339 = vadd.f32 0.0, %v4338
        %4340 = vdwg.mxu0
        %4341 = vmatprep.subr.bf16.mxu0 %v2324
        %4342 = vmatpush1.bf16.msra.mxu0 %v2323
        %4343 = vmatprep.subr.bf16.mxu0 %v2356
        %4344 = vmatpush1.bf16.msra.mxu0 %v2355
        %4345 = vmatprep.subr.bf16.mxu0 %v2388
        %4346 = vmatpush1.bf16.msra.mxu0 %v2387
        %4347 = vmatprep.subr.bf16.mxu0 %v2420
        %4348 = vmatpush1.bf16.msra.mxu0 %v2419
        %4349 = vmatprep.subr.bf16.mxu0 %v2452
        %4350 = vmatpush1.bf16.msra.mxu0 %v2451
        %4351 = vmatprep.subr.bf16.mxu0 %v2484
        %4352 = vmatpush1.bf16.msra.mxu0 %v2483
        %4353 = vmatprep.subr.bf16.mxu0 %v2516
        %4354 = vmatpush1.bf16.msra.mxu0 %v2515
        %4355 = vmatprep.subr.bf16.mxu0 %v2548
        %4356 = vmatpush1.bf16.msra.mxu0 %v2547
        %4357 = vmatprep.subr.bf16.mxu0 %v2580
        %4358 = vmatpush1.bf16.msra.mxu0 %v2579
        %4359 = vmatprep.subr.bf16.mxu0 %v2612
        %4360 = vmatpush1.bf16.msra.mxu0 %v2611
        %4361 = vmatprep.subr.bf16.mxu0 %v2644
        %4362 = vmatpush1.bf16.msra.mxu0 %v2643
        %4363 = vmatprep.subr.bf16.mxu0 %v2676
        %4364 = vmatpush1.bf16.msra.mxu0 %v2675
        %4365 = vmatprep.subr.bf16.mxu0 %v2708
        %4366 = vmatpush1.bf16.msra.mxu0 %v2707
        %4367 = vmatprep.subr.bf16.mxu0 %v2740
        %4368 = vmatpush1.bf16.msra.mxu0 %v2739
        %4369 = vmatprep.subr.bf16.mxu0 %v2772
        %4370 = vmatpush1.bf16.msra.mxu0 %v2771
        %4371 = vmatprep.subr.bf16.mxu0 %v2804
        %4372 = vmatpush1.bf16.msra.mxu0 %v2803
        %4373 = vmatprep.mubr.bf16.mxu0 %v744
        %4374 = vmatmul.mubr.bf16.gmra.mrb[0].mxu0 %v743
        %v4375 = vpop.f32.mrb[0].mxu0
        %v4376 = vadd.f32 0.0, %v4375
        %v4377 = vpop.f32.mrb[0].mxu0
        %v4378 = vadd.f32 0.0, %v4377
        %v4379 = vpop.f32.mrb[0].mxu0
        %v4380 = vadd.f32 0.0, %v4379
        %v4381 = vpop.f32.mrb[0].mxu0
        %v4382 = vadd.f32 0.0, %v4381
        %4383 = vmatprep.mubr.bf16.mxu0 %v746
        %4384 = vmatmul.mubr.bf16.gmra.mrb[0].mxu0 %v745
        %v4385 = vpop.f32.mrb[0].mxu0
        %v4386 = vadd.f32 0.0, %v4385
        %v4387 = vpop.f32.mrb[0].mxu0
        %v4388 = vadd.f32 0.0, %v4387
        %v4389 = vpop.f32.mrb[0].mxu0
        %v4390 = vadd.f32 0.0, %v4389
        %v4391 = vpop.f32.mrb[0].mxu0
        %v4392 = vadd.f32 0.0, %v4391
        %4393 = vmatprep.mubr.bf16.mxu0 %v748
        %4394 = vmatmul.mubr.bf16.gmra.mrb[0].mxu0 %v747
        %v4395 = vpop.f32.mrb[0].mxu0
        %v4396 = vadd.f32 0.0, %v4395
        %v4397 = vpop.f32.mrb[0].mxu0
        %v4398 = vadd.f32 0.0, %v4397
        %v4399 = vpop.f32.mrb[0].mxu0
        %v4400 = vadd.f32 0.0, %v4399
        %v4401 = vpop.f32.mrb[0].mxu0
        %v4402 = vadd.f32 0.0, %v4401
        %4403 = vmatprep.mubr.bf16.mxu0 %v750
        %4404 = vmatmul.mubr.bf16.gmra.mrb[0].mxu0 %v749
        %v4405 = vpop.f32.mrb[0].mxu0
        %v4406 = vadd.f32 0.0, %v4405
        %v4407 = vpop.f32.mrb[0].mxu0
        %v4408 = vadd.f32 0.0, %v4407
        %v4409 = vpop.f32.mrb[0].mxu0
        %v4410 = vadd.f32 0.0, %v4409
        %v4411 = vpop.f32.mrb[0].mxu0
        %v4412 = vadd.f32 0.0, %v4411
        %4413 = vdwg.mxu0
        %4414 = vmatprep.subr.bf16.mxu0 %v2326
        %4415 = vmatpush1.bf16.msra.mxu0 %v2325
        %4416 = vmatprep.subr.bf16.mxu0 %v2358
        %4417 = vmatpush1.bf16.msra.mxu0 %v2357
        %4418 = vmatprep.subr.bf16.mxu0 %v2390
        %4419 = vmatpush1.bf16.msra.mxu0 %v2389
        %4420 = vmatprep.subr.bf16.mxu0 %v2422
        %4421 = vmatpush1.bf16.msra.mxu0 %v2421
        %4422 = vmatprep.subr.bf16.mxu0 %v2454
        %4423 = vmatpush1.bf16.msra.mxu0 %v2453
        %4424 = vmatprep.subr.bf16.mxu0 %v2486
        %4425 = vmatpush1.bf16.msra.mxu0 %v2485
        %4426 = vmatprep.subr.bf16.mxu0 %v2518
        %4427 = vmatpush1.bf16.msra.mxu0 %v2517
        %4428 = vmatprep.subr.bf16.mxu0 %v2550
        %4429 = vmatpush1.bf16.msra.mxu0 %v2549
        %4430 = vmatprep.subr.bf16.mxu0 %v2582
        %4431 = vmatpush1.bf16.msra.mxu0 %v2581
        %4432 = vmatprep.subr.bf16.mxu0 %v2614
        %4433 = vmatpush1.bf16.msra.mxu0 %v2613
        %4434 = vmatprep.subr.bf16.mxu0 %v2646
        %4435 = vmatpush1.bf16.msra.mxu0 %v2645
        %4436 = vmatprep.subr.bf16.mxu0 %v2678
        %4437 = vmatpush1.bf16.msra.mxu0 %v2677
        %4438 = vmatprep.subr.bf16.mxu0 %v2710
        %4439 = vmatpush1.bf16.msra.mxu0 %v2709
        %4440 = vmatprep.subr.bf16.mxu0 %v2742
        %4441 = vmatpush1.bf16.msra.mxu0 %v2741
        %4442 = vmatprep.subr.bf16.mxu0 %v2774
        %4443 = vmatpush1.bf16.msra.mxu0 %v2773
        %4444 = vmatprep.subr.bf16.mxu0 %v2806
        %4445 = vmatpush1.bf16.msra.mxu0 %v2805
        %4446 = vmatprep.mubr.bf16.mxu0 %v744
        %4447 = vmatmul.mubr.bf16.gmra.mrb[0].mxu0 %v743
        %v4448 = vpop.f32.mrb[0].mxu0
        %v4449 = vadd.f32 0.0, %v4448
        %v4450 = vpop.f32.mrb[0].mxu0
        %v4451 = vadd.f32 0.0, %v4450
        %v4452 = vpop.f32.mrb[0].mxu0
        %v4453 = vadd.f32 0.0, %v4452
        %v4454 = vpop.f32.mrb[0].mxu0
        %v4455 = vadd.f32 0.0, %v4454
        %4456 = vmatprep.mubr.bf16.mxu0 %v746
        %4457 = vmatmul.mubr.bf16.gmra.mrb[0].mxu0 %v745
        %v4458 = vpop.f32.mrb[0].mxu0
        %v4459 = vadd.f32 0.0, %v4458
        %v4460 = vpop.f32.mrb[0].mxu0
        %v4461 = vadd.f32 0.0, %v4460
        %v4462 = vpop.f32.mrb[0].mxu0
        %v4463 = vadd.f32 0.0, %v4462
        %v4464 = vpop.f32.mrb[0].mxu0
        %v4465 = vadd.f32 0.0, %v4464
        %4466 = vmatprep.mubr.bf16.mxu0 %v748
        %4467 = vmatmul.mubr.bf16.gmra.mrb[0].mxu0 %v747
        %v4468 = vpop.f32.mrb[0].mxu0
        %v4469 = vadd.f32 0.0, %v4468
        %v4470 = vpop.f32.mrb[0].mxu0
        %v4471 = vadd.f32 0.0, %v4470
        %v4472 = vpop.f32.mrb[0].mxu0
        %v4473 = vadd.f32 0.0, %v4472
        %v4474 = vpop.f32.mrb[0].mxu0
        %v4475 = vadd.f32 0.0, %v4474
        %4476 = vmatprep.mubr.bf16.mxu0 %v750
        %4477 = vmatmul.mubr.bf16.gmra.mrb[0].mxu0 %v749
        %v4478 = vpop.f32.mrb[0].mxu0
        %v4479 = vadd.f32 0.0, %v4478
        %v4480 = vpop.f32.mrb[0].mxu0
        %v4481 = vadd.f32 0.0, %v4480
        %v4482 = vpop.f32.mrb[0].mxu0
        %v4483 = vadd.f32 0.0, %v4482
        %v4484 = vpop.f32.mrb[0].mxu0
        %v4485 = vadd.f32 0.0, %v4484
        %4486 = vdwg.mxu0
        %vm4487 = vcmp.gt.f32.partialorder %v3354, 0.0
        %vm4488 = vcmp.gt.f32.partialorder %v3356, 0.0
        %vm4489 = vcmp.gt.f32.partialorder %v3427, 0.0
        %vm4490 = vcmp.gt.f32.partialorder %v3429, 0.0
        %vm4491 = vcmp.gt.f32.partialorder %v3500, 0.0
        %vm4492 = vcmp.gt.f32.partialorder %v3502, 0.0
        %vm4493 = vcmp.gt.f32.partialorder %v3573, 0.0
        %vm4494 = vcmp.gt.f32.partialorder %v3575, 0.0
        %vm4495 = vcmp.gt.f32.partialorder %v3646, 0.0
        %vm4496 = vcmp.gt.f32.partialorder %v3648, 0.0
        %vm4497 = vcmp.gt.f32.partialorder %v3719, 0.0
        %vm4498 = vcmp.gt.f32.partialorder %v3721, 0.0
        %vm4499 = vcmp.gt.f32.partialorder %v3792, 0.0
        %vm4500 = vcmp.gt.f32.partialorder %v3794, 0.0
        %vm4501 = vcmp.gt.f32.partialorder %v3865, 0.0
        %vm4502 = vcmp.gt.f32.partialorder %v3867, 0.0
        %vm4503 = vcmp.gt.f32.partialorder %v3938, 0.0
        %vm4504 = vcmp.gt.f32.partialorder %v3940, 0.0
        %vm4505 = vcmp.gt.f32.partialorder %v4011, 0.0
        %vm4506 = vcmp.gt.f32.partialorder %v4013, 0.0
        %vm4507 = vcmp.gt.f32.partialorder %v4084, 0.0
        %vm4508 = vcmp.gt.f32.partialorder %v4086, 0.0
        %vm4509 = vcmp.gt.f32.partialorder %v4157, 0.0
        %vm4510 = vcmp.gt.f32.partialorder %v4159, 0.0
        %vm4511 = vcmp.gt.f32.partialorder %v4230, 0.0
        %vm4512 = vcmp.gt.f32.partialorder %v4232, 0.0
        %vm4513 = vcmp.gt.f32.partialorder %v4303, 0.0
        %vm4514 = vcmp.gt.f32.partialorder %v4305, 0.0
        %vm4515 = vcmp.gt.f32.partialorder %v4376, 0.0
        %vm4516 = vcmp.gt.f32.partialorder %v4378, 0.0
        %vm4517 = vcmp.gt.f32.partialorder %v4449, 0.0
        %vm4518 = vcmp.gt.f32.partialorder %v4451, 0.0
        %vm4519 = vcmp.gt.f32.partialorder %v3358, 0.0
        %vm4520 = vcmp.gt.f32.partialorder %v3360, 0.0
        %vm4521 = vcmp.gt.f32.partialorder %v3431, 0.0
        %vm4522 = vcmp.gt.f32.partialorder %v3433, 0.0
        %vm4523 = vcmp.gt.f32.partialorder %v3504, 0.0
        %vm4524 = vcmp.gt.f32.partialorder %v3506, 0.0
        %vm4525 = vcmp.gt.f32.partialorder %v3577, 0.0
        %vm4526 = vcmp.gt.f32.partialorder %v3579, 0.0
        %vm4527 = vcmp.gt.f32.partialorder %v3650, 0.0
        %vm4528 = vcmp.gt.f32.partialorder %v3652, 0.0
        %vm4529 = vcmp.gt.f32.partialorder %v3723, 0.0
        %vm4530 = vcmp.gt.f32.partialorder %v3725, 0.0
        %vm4531 = vcmp.gt.f32.partialorder %v3796, 0.0
        %vm4532 = vcmp.gt.f32.partialorder %v3798, 0.0
        %vm4533 = vcmp.gt.f32.partialorder %v3869, 0.0
        %vm4534 = vcmp.gt.f32.partialorder %v3871, 0.0
        %vm4535 = vcmp.gt.f32.partialorder %v3942, 0.0
        %vm4536 = vcmp.gt.f32.partialorder %v3944, 0.0
        %vm4537 = vcmp.gt.f32.partialorder %v4015, 0.0
        %vm4538 = vcmp.gt.f32.partialorder %v4017, 0.0
        %vm4539 = vcmp.gt.f32.partialorder %v4088, 0.0
        %vm4540 = vcmp.gt.f32.partialorder %v4090, 0.0
        %vm4541 = vcmp.gt.f32.partialorder %v4161, 0.0
        %vm4542 = vcmp.gt.f32.partialorder %v4163, 0.0
        %vm4543 = vcmp.gt.f32.partialorder %v4234, 0.0
        %vm4544 = vcmp.gt.f32.partialorder %v4236, 0.0
        %vm4545 = vcmp.gt.f32.partialorder %v4307, 0.0
        %vm4546 = vcmp.gt.f32.partialorder %v4309, 0.0
        %vm4547 = vcmp.gt.f32.partialorder %v4380, 0.0
        %vm4548 = vcmp.gt.f32.partialorder %v4382, 0.0
        %vm4549 = vcmp.gt.f32.partialorder %v4453, 0.0
        %vm4550 = vcmp.gt.f32.partialorder %v4455, 0.0
        %vm4551 = vcmp.gt.f32.partialorder %v3364, 0.0
        %vm4552 = vcmp.gt.f32.partialorder %v3366, 0.0
        %vm4553 = vcmp.gt.f32.partialorder %v3437, 0.0
        %vm4554 = vcmp.gt.f32.partialorder %v3439, 0.0
        %vm4555 = vcmp.gt.f32.partialorder %v3510, 0.0
        %vm4556 = vcmp.gt.f32.partialorder %v3512, 0.0
        %vm4557 = vcmp.gt.f32.partialorder %v3583, 0.0
        %vm4558 = vcmp.gt.f32.partialorder %v3585, 0.0
        %vm4559 = vcmp.gt.f32.partialorder %v3656, 0.0
        %vm4560 = vcmp.gt.f32.partialorder %v3658, 0.0
        %vm4561 = vcmp.gt.f32.partialorder %v3729, 0.0
        %vm4562 = vcmp.gt.f32.partialorder %v3731, 0.0
        %vm4563 = vcmp.gt.f32.partialorder %v3802, 0.0
        %vm4564 = vcmp.gt.f32.partialorder %v3804, 0.0
        %vm4565 = vcmp.gt.f32.partialorder %v3875, 0.0
        %vm4566 = vcmp.gt.f32.partialorder %v3877, 0.0
        %vm4567 = vcmp.gt.f32.partialorder %v3948, 0.0
        %vm4568 = vcmp.gt.f32.partialorder %v3950, 0.0
        %vm4569 = vcmp.gt.f32.partialorder %v4021, 0.0
        %vm4570 = vcmp.gt.f32.partialorder %v4023, 0.0
        %vm4571 = vcmp.gt.f32.partialorder %v4094, 0.0
        %vm4572 = vcmp.gt.f32.partialorder %v4096, 0.0
        %vm4573 = vcmp.gt.f32.partialorder %v4167, 0.0
        %vm4574 = vcmp.gt.f32.partialorder %v4169, 0.0
        %vm4575 = vcmp.gt.f32.partialorder %v4240, 0.0
        %vm4576 = vcmp.gt.f32.partialorder %v4242, 0.0
        %vm4577 = vcmp.gt.f32.partialorder %v4313, 0.0
        %vm4578 = vcmp.gt.f32.partialorder %v4315, 0.0
        %vm4579 = vcmp.gt.f32.partialorder %v4386, 0.0
        %vm4580 = vcmp.gt.f32.partialorder %v4388, 0.0
        %vm4581 = vcmp.gt.f32.partialorder %v4459, 0.0
        %vm4582 = vcmp.gt.f32.partialorder %v4461, 0.0
        %vm4583 = vcmp.gt.f32.partialorder %v3368, 0.0
        %vm4584 = vcmp.gt.f32.partialorder %v3370, 0.0
        %vm4585 = vcmp.gt.f32.partialorder %v3441, 0.0
        %vm4586 = vcmp.gt.f32.partialorder %v3443, 0.0
        %vm4587 = vcmp.gt.f32.partialorder %v3514, 0.0
        %vm4588 = vcmp.gt.f32.partialorder %v3516, 0.0
        %vm4589 = vcmp.gt.f32.partialorder %v3587, 0.0
        %vm4590 = vcmp.gt.f32.partialorder %v3589, 0.0
        %vm4591 = vcmp.gt.f32.partialorder %v3660, 0.0
        %vm4592 = vcmp.gt.f32.partialorder %v3662, 0.0
        %vm4593 = vcmp.gt.f32.partialorder %v3733, 0.0
        %vm4594 = vcmp.gt.f32.partialorder %v3735, 0.0
        %vm4595 = vcmp.gt.f32.partialorder %v3806, 0.0
        %vm4596 = vcmp.gt.f32.partialorder %v3808, 0.0
        %vm4597 = vcmp.gt.f32.partialorder %v3879, 0.0
        %vm4598 = vcmp.gt.f32.partialorder %v3881, 0.0
        %vm4599 = vcmp.gt.f32.partialorder %v3952, 0.0
        %vm4600 = vcmp.gt.f32.partialorder %v3954, 0.0
        %vm4601 = vcmp.gt.f32.partialorder %v4025, 0.0
        %vm4602 = vcmp.gt.f32.partialorder %v4027, 0.0
        %vm4603 = vcmp.gt.f32.partialorder %v4098, 0.0
        %vm4604 = vcmp.gt.f32.partialorder %v4100, 0.0
        %vm4605 = vcmp.gt.f32.partialorder %v4171, 0.0
        %vm4606 = vcmp.gt.f32.partialorder %v4173, 0.0
        %vm4607 = vcmp.gt.f32.partialorder %v4244, 0.0
        %vm4608 = vcmp.gt.f32.partialorder %v4246, 0.0
        %vm4609 = vcmp.gt.f32.partialorder %v4317, 0.0
        %vm4610 = vcmp.gt.f32.partialorder %v4319, 0.0
        %vm4611 = vcmp.gt.f32.partialorder %v4390, 0.0
        %vm4612 = vcmp.gt.f32.partialorder %v4392, 0.0
        %vm4613 = vcmp.gt.f32.partialorder %v4463, 0.0
        %vm4614 = vcmp.gt.f32.partialorder %v4465, 0.0
        %vm4615 = vcmp.gt.f32.partialorder %v3374, 0.0
        %vm4616 = vcmp.gt.f32.partialorder %v3376, 0.0
        %vm4617 = vcmp.gt.f32.partialorder %v3447, 0.0
        %vm4618 = vcmp.gt.f32.partialorder %v3449, 0.0
        %vm4619 = vcmp.gt.f32.partialorder %v3520, 0.0
        %vm4620 = vcmp.gt.f32.partialorder %v3522, 0.0
        %vm4621 = vcmp.gt.f32.partialorder %v3593, 0.0
        %vm4622 = vcmp.gt.f32.partialorder %v3595, 0.0
        %vm4623 = vcmp.gt.f32.partialorder %v3666, 0.0
        %vm4624 = vcmp.gt.f32.partialorder %v3668, 0.0
        %vm4625 = vcmp.gt.f32.partialorder %v3739, 0.0
        %vm4626 = vcmp.gt.f32.partialorder %v3741, 0.0
        %vm4627 = vcmp.gt.f32.partialorder %v3812, 0.0
        %vm4628 = vcmp.gt.f32.partialorder %v3814, 0.0
        %vm4629 = vcmp.gt.f32.partialorder %v3885, 0.0
        %vm4630 = vcmp.gt.f32.partialorder %v3887, 0.0
        %vm4631 = vcmp.gt.f32.partialorder %v3958, 0.0
        %vm4632 = vcmp.gt.f32.partialorder %v3960, 0.0
        %vm4633 = vcmp.gt.f32.partialorder %v4031, 0.0
        %vm4634 = vcmp.gt.f32.partialorder %v4033, 0.0
        %vm4635 = vcmp.gt.f32.partialorder %v4104, 0.0
        %vm4636 = vcmp.gt.f32.partialorder %v4106, 0.0
        %vm4637 = vcmp.gt.f32.partialorder %v4177, 0.0
        %vm4638 = vcmp.gt.f32.partialorder %v4179, 0.0
        %vm4639 = vcmp.gt.f32.partialorder %v4250, 0.0
        %vm4640 = vcmp.gt.f32.partialorder %v4252, 0.0
        %vm4641 = vcmp.gt.f32.partialorder %v4323, 0.0
        %vm4642 = vcmp.gt.f32.partialorder %v4325, 0.0
        %vm4643 = vcmp.gt.f32.partialorder %v4396, 0.0
        %vm4644 = vcmp.gt.f32.partialorder %v4398, 0.0
        %vm4645 = vcmp.gt.f32.partialorder %v4469, 0.0
        %vm4646 = vcmp.gt.f32.partialorder %v4471, 0.0
        %vm4647 = vcmp.gt.f32.partialorder %v3378, 0.0
        %vm4648 = vcmp.gt.f32.partialorder %v3380, 0.0
        %vm4649 = vcmp.gt.f32.partialorder %v3451, 0.0
        %vm4650 = vcmp.gt.f32.partialorder %v3453, 0.0
        %vm4651 = vcmp.gt.f32.partialorder %v3524, 0.0
        %vm4652 = vcmp.gt.f32.partialorder %v3526, 0.0
        %vm4653 = vcmp.gt.f32.partialorder %v3597, 0.0
        %vm4654 = vcmp.gt.f32.partialorder %v3599, 0.0
        %vm4655 = vcmp.gt.f32.partialorder %v3670, 0.0
        %vm4656 = vcmp.gt.f32.partialorder %v3672, 0.0
        %vm4657 = vcmp.gt.f32.partialorder %v3743, 0.0
        %vm4658 = vcmp.gt.f32.partialorder %v3745, 0.0
        %vm4659 = vcmp.gt.f32.partialorder %v3816, 0.0
        %vm4660 = vcmp.gt.f32.partialorder %v3818, 0.0
        %vm4661 = vcmp.gt.f32.partialorder %v3889, 0.0
        %vm4662 = vcmp.gt.f32.partialorder %v3891, 0.0
        %vm4663 = vcmp.gt.f32.partialorder %v3962, 0.0
        %vm4664 = vcmp.gt.f32.partialorder %v3964, 0.0
        %vm4665 = vcmp.gt.f32.partialorder %v4035, 0.0
        %vm4666 = vcmp.gt.f32.partialorder %v4037, 0.0
        %vm4667 = vcmp.gt.f32.partialorder %v4108, 0.0
        %vm4668 = vcmp.gt.f32.partialorder %v4110, 0.0
        %vm4669 = vcmp.gt.f32.partialorder %v4181, 0.0
        %vm4670 = vcmp.gt.f32.partialorder %v4183, 0.0
        %vm4671 = vcmp.gt.f32.partialorder %v4254, 0.0
        %vm4672 = vcmp.gt.f32.partialorder %v4256, 0.0
        %vm4673 = vcmp.gt.f32.partialorder %v4327, 0.0
        %vm4674 = vcmp.gt.f32.partialorder %v4329, 0.0
        %vm4675 = vcmp.gt.f32.partialorder %v4400, 0.0
        %vm4676 = vcmp.gt.f32.partialorder %v4402, 0.0
        %vm4677 = vcmp.gt.f32.partialorder %v4473, 0.0
        %vm4678 = vcmp.gt.f32.partialorder %v4475, 0.0
        %vm4679 = vcmp.gt.f32.partialorder %v3384, 0.0
        %vm4680 = vcmp.gt.f32.partialorder %v3386, 0.0
        %vm4681 = vcmp.gt.f32.partialorder %v3457, 0.0
        %vm4682 = vcmp.gt.f32.partialorder %v3459, 0.0
        %vm4683 = vcmp.gt.f32.partialorder %v3530, 0.0
        %vm4684 = vcmp.gt.f32.partialorder %v3532, 0.0
        %vm4685 = vcmp.gt.f32.partialorder %v3603, 0.0
        %vm4686 = vcmp.gt.f32.partialorder %v3605, 0.0
        %vm4687 = vcmp.gt.f32.partialorder %v3676, 0.0
        %vm4688 = vcmp.gt.f32.partialorder %v3678, 0.0
        %vm4689 = vcmp.gt.f32.partialorder %v3749, 0.0
        %vm4690 = vcmp.gt.f32.partialorder %v3751, 0.0
        %vm4691 = vcmp.gt.f32.partialorder %v3822, 0.0
        %vm4692 = vcmp.gt.f32.partialorder %v3824, 0.0
        %vm4693 = vcmp.gt.f32.partialorder %v3895, 0.0
        %vm4694 = vcmp.gt.f32.partialorder %v3897, 0.0
        %vm4695 = vcmp.gt.f32.partialorder %v3968, 0.0
        %vm4696 = vcmp.gt.f32.partialorder %v3970, 0.0
        %vm4697 = vcmp.gt.f32.partialorder %v4041, 0.0
        %vm4698 = vcmp.gt.f32.partialorder %v4043, 0.0
        %vm4699 = vcmp.gt.f32.partialorder %v4114, 0.0
        %vm4700 = vcmp.gt.f32.partialorder %v4116, 0.0
        %vm4701 = vcmp.gt.f32.partialorder %v4187, 0.0
        %vm4702 = vcmp.gt.f32.partialorder %v4189, 0.0
        %vm4703 = vcmp.gt.f32.partialorder %v4260, 0.0
        %vm4704 = vcmp.gt.f32.partialorder %v4262, 0.0
        %vm4705 = vcmp.gt.f32.partialorder %v4333, 0.0
        %vm4706 = vcmp.gt.f32.partialorder %v4335, 0.0
        %vm4707 = vcmp.gt.f32.partialorder %v4406, 0.0
        %vm4708 = vcmp.gt.f32.partialorder %v4408, 0.0
        %vm4709 = vcmp.gt.f32.partialorder %v4479, 0.0
        %vm4710 = vcmp.gt.f32.partialorder %v4481, 0.0
        %vm4711 = vcmp.gt.f32.partialorder %v3388, 0.0
        %vm4712 = vcmp.gt.f32.partialorder %v3390, 0.0
        %vm4713 = vcmp.gt.f32.partialorder %v3461, 0.0
        %vm4714 = vcmp.gt.f32.partialorder %v3463, 0.0
        %vm4715 = vcmp.gt.f32.partialorder %v3534, 0.0
        %vm4716 = vcmp.gt.f32.partialorder %v3536, 0.0
        %vm4717 = vcmp.gt.f32.partialorder %v3607, 0.0
        %vm4718 = vcmp.gt.f32.partialorder %v3609, 0.0
        %vm4719 = vcmp.gt.f32.partialorder %v3680, 0.0
        %vm4720 = vcmp.gt.f32.partialorder %v3682, 0.0
        %vm4721 = vcmp.gt.f32.partialorder %v3753, 0.0
        %vm4722 = vcmp.gt.f32.partialorder %v3755, 0.0
        %vm4723 = vcmp.gt.f32.partialorder %v3826, 0.0
        %vm4724 = vcmp.gt.f32.partialorder %v3828, 0.0
        %vm4725 = vcmp.gt.f32.partialorder %v3899, 0.0
        %vm4726 = vcmp.gt.f32.partialorder %v3901, 0.0
        %vm4727 = vcmp.gt.f32.partialorder %v3972, 0.0
        %vm4728 = vcmp.gt.f32.partialorder %v3974, 0.0
        %vm4729 = vcmp.gt.f32.partialorder %v4045, 0.0
        %vm4730 = vcmp.gt.f32.partialorder %v4047, 0.0
        %vm4731 = vcmp.gt.f32.partialorder %v4118, 0.0
        %vm4732 = vcmp.gt.f32.partialorder %v4120, 0.0
        %vm4733 = vcmp.gt.f32.partialorder %v4191, 0.0
        %vm4734 = vcmp.gt.f32.partialorder %v4193, 0.0
        %vm4735 = vcmp.gt.f32.partialorder %v4264, 0.0
        %vm4736 = vcmp.gt.f32.partialorder %v4266, 0.0
        %vm4737 = vcmp.gt.f32.partialorder %v4337, 0.0
        %vm4738 = vcmp.gt.f32.partialorder %v4339, 0.0
        %vm4739 = vcmp.gt.f32.partialorder %v4410, 0.0
        %vm4740 = vcmp.gt.f32.partialorder %v4412, 0.0
        %vm4741 = vcmp.gt.f32.partialorder %v4483, 0.0
        %vm4742 = vcmp.gt.f32.partialorder %v4485, 0.0
        %vm4743 = vmpackc.low %vm4519, %vm4487
        %vm4744 = vmpackc.low %vm4583, %vm4551
        %vm4745 = vmpackc.even %vm4744, %vm4743
        %vm4746 = vmpackc.low %vm4520, %vm4488
        %vm4747 = vmpackc.low %vm4584, %vm4552
        %vm4748 = vmpackc.even %vm4747, %vm4746
        %vm4749 = vmpackc.low %vm4521, %vm4489
        %vm4750 = vmpackc.low %vm4585, %vm4553
        %vm4751 = vmpackc.even %vm4750, %vm4749
        %vm4752 = vmpackc.low %vm4522, %vm4490
        %vm4753 = vmpackc.low %vm4586, %vm4554
        %vm4754 = vmpackc.even %vm4753, %vm4752
        %vm4755 = vmpackc.low %vm4523, %vm4491
        %vm4756 = vmpackc.low %vm4587, %vm4555
        %vm4757 = vmpackc.even %vm4756, %vm4755
        %vm4758 = vmpackc.low %vm4524, %vm4492
        %vm4759 = vmpackc.low %vm4588, %vm4556
        %vm4760 = vmpackc.even %vm4759, %vm4758
        %vm4761 = vmpackc.low %vm4525, %vm4493
        %vm4762 = vmpackc.low %vm4589, %vm4557
        %vm4763 = vmpackc.even %vm4762, %vm4761
        %vm4764 = vmpackc.low %vm4526, %vm4494
        %vm4765 = vmpackc.low %vm4590, %vm4558
        %vm4766 = vmpackc.even %vm4765, %vm4764
        %vm4767 = vmpackc.low %vm4527, %vm4495
        %vm4768 = vmpackc.low %vm4591, %vm4559
        %vm4769 = vmpackc.even %vm4768, %vm4767
        %vm4770 = vmpackc.low %vm4528, %vm4496
        %vm4771 = vmpackc.low %vm4592, %vm4560
        %vm4772 = vmpackc.even %vm4771, %vm4770
        %vm4773 = vmpackc.low %vm4529, %vm4497
        %vm4774 = vmpackc.low %vm4593, %vm4561
        %vm4775 = vmpackc.even %vm4774, %vm4773
        %vm4776 = vmpackc.low %vm4530, %vm4498
        %vm4777 = vmpackc.low %vm4594, %vm4562
        %vm4778 = vmpackc.even %vm4777, %vm4776
        %vm4779 = vmpackc.low %vm4531, %vm4499
        %vm4780 = vmpackc.low %vm4595, %vm4563
        %vm4781 = vmpackc.even %vm4780, %vm4779
        %vm4782 = vmpackc.low %vm4532, %vm4500
        %vm4783 = vmpackc.low %vm4596, %vm4564
        %vm4784 = vmpackc.even %vm4783, %vm4782
        %vm4785 = vmpackc.low %vm4533, %vm4501
        %vm4786 = vmpackc.low %vm4597, %vm4565
        %vm4787 = vmpackc.even %vm4786, %vm4785
        %vm4788 = vmpackc.low %vm4534, %vm4502
        %vm4789 = vmpackc.low %vm4598, %vm4566
        %vm4790 = vmpackc.even %vm4789, %vm4788
        %vm4791 = vmpackc.low %vm4535, %vm4503
        %vm4792 = vmpackc.low %vm4599, %vm4567
        %vm4793 = vmpackc.even %vm4792, %vm4791
        %vm4794 = vmpackc.low %vm4536, %vm4504
        %vm4795 = vmpackc.low %vm4600, %vm4568
        %vm4796 = vmpackc.even %vm4795, %vm4794
        %vm4797 = vmpackc.low %vm4537, %vm4505
        %vm4798 = vmpackc.low %vm4601, %vm4569
        %vm4799 = vmpackc.even %vm4798, %vm4797
        %vm4800 = vmpackc.low %vm4538, %vm4506
        %vm4801 = vmpackc.low %vm4602, %vm4570
        %vm4802 = vmpackc.even %vm4801, %vm4800
        %vm4803 = vmpackc.low %vm4539, %vm4507
        %vm4804 = vmpackc.low %vm4603, %vm4571
        %vm4805 = vmpackc.even %vm4804, %vm4803
        %vm4806 = vmpackc.low %vm4540, %vm4508
        %vm4807 = vmpackc.low %vm4604, %vm4572
        %vm4808 = vmpackc.even %vm4807, %vm4806
        %vm4809 = vmpackc.low %vm4541, %vm4509
        %vm4810 = vmpackc.low %vm4605, %vm4573
        %vm4811 = vmpackc.even %vm4810, %vm4809
        %vm4812 = vmpackc.low %vm4542, %vm4510
        %vm4813 = vmpackc.low %vm4606, %vm4574
        %vm4814 = vmpackc.even %vm4813, %vm4812
        %vm4815 = vmpackc.low %vm4543, %vm4511
        %vm4816 = vmpackc.low %vm4607, %vm4575
        %vm4817 = vmpackc.even %vm4816, %vm4815
        %vm4818 = vmpackc.low %vm4544, %vm4512
        %vm4819 = vmpackc.low %vm4608, %vm4576
        %vm4820 = vmpackc.even %vm4819, %vm4818
        %vm4821 = vmpackc.low %vm4545, %vm4513
        %vm4822 = vmpackc.low %vm4609, %vm4577
        %vm4823 = vmpackc.even %vm4822, %vm4821
        %vm4824 = vmpackc.low %vm4546, %vm4514
        %vm4825 = vmpackc.low %vm4610, %vm4578
        %vm4826 = vmpackc.even %vm4825, %vm4824
        %vm4827 = vmpackc.low %vm4547, %vm4515
        %vm4828 = vmpackc.low %vm4611, %vm4579
        %vm4829 = vmpackc.even %vm4828, %vm4827
        %vm4830 = vmpackc.low %vm4548, %vm4516
        %vm4831 = vmpackc.low %vm4612, %vm4580
        %vm4832 = vmpackc.even %vm4831, %vm4830
        %vm4833 = vmpackc.low %vm4549, %vm4517
        %vm4834 = vmpackc.low %vm4613, %vm4581
        %vm4835 = vmpackc.even %vm4834, %vm4833
        %vm4836 = vmpackc.low %vm4550, %vm4518
        %vm4837 = vmpackc.low %vm4614, %vm4582
        %vm4838 = vmpackc.even %vm4837, %vm4836
        %vm4839 = vmpackc.low %vm4647, %vm4615
        %vm4840 = vmpackc.low %vm4711, %vm4679
        %vm4841 = vmpackc.even %vm4840, %vm4839
        %vm4842 = vmpackc.low %vm4648, %vm4616
        %vm4843 = vmpackc.low %vm4712, %vm4680
        %vm4844 = vmpackc.even %vm4843, %vm4842
        %vm4845 = vmpackc.low %vm4649, %vm4617
        %vm4846 = vmpackc.low %vm4713, %vm4681
        %vm4847 = vmpackc.even %vm4846, %vm4845
        %vm4848 = vmpackc.low %vm4650, %vm4618
        %vm4849 = vmpackc.low %vm4714, %vm4682
        %vm4850 = vmpackc.even %vm4849, %vm4848
        %vm4851 = vmpackc.low %vm4651, %vm4619
        %vm4852 = vmpackc.low %vm4715, %vm4683
        %vm4853 = vmpackc.even %vm4852, %vm4851
        %vm4854 = vmpackc.low %vm4652, %vm4620
        %vm4855 = vmpackc.low %vm4716, %vm4684
        %vm4856 = vmpackc.even %vm4855, %vm4854
        %vm4857 = vmpackc.low %vm4653, %vm4621
        %vm4858 = vmpackc.low %vm4717, %vm4685
        %vm4859 = vmpackc.even %vm4858, %vm4857
        %vm4860 = vmpackc.low %vm4654, %vm4622
        %vm4861 = vmpackc.low %vm4718, %vm4686
        %vm4862 = vmpackc.even %vm4861, %vm4860
        %vm4863 = vmpackc.low %vm4655, %vm4623
        %vm4864 = vmpackc.low %vm4719, %vm4687
        %vm4865 = vmpackc.even %vm4864, %vm4863
        %vm4866 = vmpackc.low %vm4656, %vm4624
        %vm4867 = vmpackc.low %vm4720, %vm4688
        %vm4868 = vmpackc.even %vm4867, %vm4866
        %vm4869 = vmpackc.low %vm4657, %vm4625
        %vm4870 = vmpackc.low %vm4721, %vm4689
        %vm4871 = vmpackc.even %vm4870, %vm4869
        %vm4872 = vmpackc.low %vm4658, %vm4626
        %vm4873 = vmpackc.low %vm4722, %vm4690
        %vm4874 = vmpackc.even %vm4873, %vm4872
        %vm4875 = vmpackc.low %vm4659, %vm4627
        %vm4876 = vmpackc.low %vm4723, %vm4691
        %vm4877 = vmpackc.even %vm4876, %vm4875
        %vm4878 = vmpackc.low %vm4660, %vm4628
        %vm4879 = vmpackc.low %vm4724, %vm4692
        %vm4880 = vmpackc.even %vm4879, %vm4878
        %vm4881 = vmpackc.low %vm4661, %vm4629
        %vm4882 = vmpackc.low %vm4725, %vm4693
        %vm4883 = vmpackc.even %vm4882, %vm4881
        %vm4884 = vmpackc.low %vm4662, %vm4630
        %vm4885 = vmpackc.low %vm4726, %vm4694
        %vm4886 = vmpackc.even %vm4885, %vm4884
        %vm4887 = vmpackc.low %vm4663, %vm4631
        %vm4888 = vmpackc.low %vm4727, %vm4695
        %vm4889 = vmpackc.even %vm4888, %vm4887
        %vm4890 = vmpackc.low %vm4664, %vm4632
        %vm4891 = vmpackc.low %vm4728, %vm4696
        %vm4892 = vmpackc.even %vm4891, %vm4890
        %vm4893 = vmpackc.low %vm4665, %vm4633
        %vm4894 = vmpackc.low %vm4729, %vm4697
        %vm4895 = vmpackc.even %vm4894, %vm4893
        %vm4896 = vmpackc.low %vm4666, %vm4634
        %vm4897 = vmpackc.low %vm4730, %vm4698
        %vm4898 = vmpackc.even %vm4897, %vm4896
        %vm4899 = vmpackc.low %vm4667, %vm4635
        %vm4900 = vmpackc.low %vm4731, %vm4699
        %vm4901 = vmpackc.even %vm4900, %vm4899
        %vm4902 = vmpackc.low %vm4668, %vm4636
        %vm4903 = vmpackc.low %vm4732, %vm4700
        %vm4904 = vmpackc.even %vm4903, %vm4902
        %vm4905 = vmpackc.low %vm4669, %vm4637
        %vm4906 = vmpackc.low %vm4733, %vm4701
        %vm4907 = vmpackc.even %vm4906, %vm4905
        %vm4908 = vmpackc.low %vm4670, %vm4638
        %vm4909 = vmpackc.low %vm4734, %vm4702
        %vm4910 = vmpackc.even %vm4909, %vm4908
        %vm4911 = vmpackc.low %vm4671, %vm4639
        %vm4912 = vmpackc.low %vm4735, %vm4703
        %vm4913 = vmpackc.even %vm4912, %vm4911
        %vm4914 = vmpackc.low %vm4672, %vm4640
        %vm4915 = vmpackc.low %vm4736, %vm4704
        %vm4916 = vmpackc.even %vm4915, %vm4914
        %vm4917 = vmpackc.low %vm4673, %vm4641
        %vm4918 = vmpackc.low %vm4737, %vm4705
        %vm4919 = vmpackc.even %vm4918, %vm4917
        %vm4920 = vmpackc.low %vm4674, %vm4642
        %vm4921 = vmpackc.low %vm4738, %vm4706
        %vm4922 = vmpackc.even %vm4921, %vm4920
        %vm4923 = vmpackc.low %vm4675, %vm4643
        %vm4924 = vmpackc.low %vm4739, %vm4707
        %vm4925 = vmpackc.even %vm4924, %vm4923
        %vm4926 = vmpackc.low %vm4676, %vm4644
        %vm4927 = vmpackc.low %vm4740, %vm4708
        %vm4928 = vmpackc.even %vm4927, %vm4926
        %vm4929 = vmpackc.low %vm4677, %vm4645
        %vm4930 = vmpackc.low %vm4741, %vm4709
        %vm4931 = vmpackc.even %vm4930, %vm4929
        %vm4932 = vmpackc.low %vm4678, %vm4646
        %vm4933 = vmpackc.low %vm4742, %vm4710
        %vm4934 = vmpackc.even %vm4933, %vm4932
        %v4935 = vsel %vm4745, 16843009, 0
        %v4936 = vsel %vm4748, 16843009, 0
        %v4937 = vsel %vm4751, 16843009, 0
        %v4938 = vsel %vm4754, 16843009, 0
        %v4939 = vsel %vm4757, 16843009, 0
        %v4940 = vsel %vm4760, 16843009, 0
        %v4941 = vsel %vm4763, 16843009, 0
        %v4942 = vsel %vm4766, 16843009, 0
        %v4943 = vsel %vm4769, 16843009, 0
        %v4944 = vsel %vm4772, 16843009, 0
        %v4945 = vsel %vm4775, 16843009, 0
        %v4946 = vsel %vm4778, 16843009, 0
        %v4947 = vsel %vm4781, 16843009, 0
        %v4948 = vsel %vm4784, 16843009, 0
        %v4949 = vsel %vm4787, 16843009, 0
        %v4950 = vsel %vm4790, 16843009, 0
        %v4951 = vsel %vm4793, 16843009, 0
        %v4952 = vsel %vm4796, 16843009, 0
        %v4953 = vsel %vm4799, 16843009, 0
        %v4954 = vsel %vm4802, 16843009, 0
        %v4955 = vsel %vm4805, 16843009, 0
        %v4956 = vsel %vm4808, 16843009, 0
        %v4957 = vsel %vm4811, 16843009, 0
        %v4958 = vsel %vm4814, 16843009, 0
        %v4959 = vsel %vm4817, 16843009, 0
        %v4960 = vsel %vm4820, 16843009, 0
        %v4961 = vsel %vm4823, 16843009, 0
        %v4962 = vsel %vm4826, 16843009, 0
        %v4963 = vsel %vm4829, 16843009, 0
        %v4964 = vsel %vm4832, 16843009, 0
        %v4965 = vsel %vm4835, 16843009, 0
        %v4966 = vsel %vm4838, 16843009, 0
        %v4967 = vsel %vm4841, 16843009, 0
        %v4968 = vsel %vm4844, 16843009, 0
        %v4969 = vsel %vm4847, 16843009, 0
        %v4970 = vsel %vm4850, 16843009, 0
        %v4971 = vsel %vm4853, 16843009, 0
        %v4972 = vsel %vm4856, 16843009, 0
        %v4973 = vsel %vm4859, 16843009, 0
        %v4974 = vsel %vm4862, 16843009, 0
        %v4975 = vsel %vm4865, 16843009, 0
        %v4976 = vsel %vm4868, 16843009, 0
        %v4977 = vsel %vm4871, 16843009, 0
        %v4978 = vsel %vm4874, 16843009, 0
        %v4979 = vsel %vm4877, 16843009, 0
        %v4980 = vsel %vm4880, 16843009, 0
        %v4981 = vsel %vm4883, 16843009, 0
        %v4982 = vsel %vm4886, 16843009, 0
        %v4983 = vsel %vm4889, 16843009, 0
        %v4984 = vsel %vm4892, 16843009, 0
        %v4985 = vsel %vm4895, 16843009, 0
        %v4986 = vsel %vm4898, 16843009, 0
        %v4987 = vsel %vm4901, 16843009, 0
        %v4988 = vsel %vm4904, 16843009, 0
        %v4989 = vsel %vm4907, 16843009, 0
        %v4990 = vsel %vm4910, 16843009, 0
        %v4991 = vsel %vm4913, 16843009, 0
        %v4992 = vsel %vm4916, 16843009, 0
        %v4993 = vsel %vm4919, 16843009, 0
        %v4994 = vsel %vm4922, 16843009, 0
        %v4995 = vsel %vm4925, 16843009, 0
        %v4996 = vsel %vm4928, 16843009, 0
        %v4997 = vsel %vm4931, 16843009, 0
        %v4998 = vsel %vm4934, 16843009, 0
        %v4999 = vunpack.c.0.s8 %v4935
        %v5000 = vunpack.c.0.s8 %v4936
        %v5001 = vunpack.c.0.s8 %v4937
        %v5002 = vunpack.c.0.s8 %v4938
        %v5003 = vunpack.c.0.s8 %v4939
        %v5004 = vunpack.c.0.s8 %v4940
        %v5005 = vunpack.c.0.s8 %v4941
        %v5006 = vunpack.c.0.s8 %v4942
        %v5007 = vunpack.c.0.s8 %v4943
        %v5008 = vunpack.c.0.s8 %v4944
        %v5009 = vunpack.c.0.s8 %v4945
        %v5010 = vunpack.c.0.s8 %v4946
        %v5011 = vunpack.c.0.s8 %v4947
        %v5012 = vunpack.c.0.s8 %v4948
        %v5013 = vunpack.c.0.s8 %v4949
        %v5014 = vunpack.c.0.s8 %v4950
        %v5015 = vunpack.c.0.s8 %v4951
        %v5016 = vunpack.c.0.s8 %v4952
        %v5017 = vunpack.c.0.s8 %v4953
        %v5018 = vunpack.c.0.s8 %v4954
        %v5019 = vunpack.c.0.s8 %v4955
        %v5020 = vunpack.c.0.s8 %v4956
        %v5021 = vunpack.c.0.s8 %v4957
        %v5022 = vunpack.c.0.s8 %v4958
        %v5023 = vunpack.c.0.s8 %v4959
        %v5024 = vunpack.c.0.s8 %v4960
        %v5025 = vunpack.c.0.s8 %v4961
        %v5026 = vunpack.c.0.s8 %v4962
        %v5027 = vunpack.c.0.s8 %v4963
        %v5028 = vunpack.c.0.s8 %v4964
        %v5029 = vunpack.c.0.s8 %v4965
        %v5030 = vunpack.c.0.s8 %v4966
        %v5031 = vunpack.c.1.s8 %v4935
        %v5032 = vunpack.c.1.s8 %v4936
        %v5033 = vunpack.c.1.s8 %v4937
        %v5034 = vunpack.c.1.s8 %v4938
        %v5035 = vunpack.c.1.s8 %v4939
        %v5036 = vunpack.c.1.s8 %v4940
        %v5037 = vunpack.c.1.s8 %v4941
        %v5038 = vunpack.c.1.s8 %v4942
        %v5039 = vunpack.c.1.s8 %v4943
        %v5040 = vunpack.c.1.s8 %v4944
        %v5041 = vunpack.c.1.s8 %v4945
        %v5042 = vunpack.c.1.s8 %v4946
        %v5043 = vunpack.c.1.s8 %v4947
        %v5044 = vunpack.c.1.s8 %v4948
        %v5045 = vunpack.c.1.s8 %v4949
        %v5046 = vunpack.c.1.s8 %v4950
        %v5047 = vunpack.c.1.s8 %v4951
        %v5048 = vunpack.c.1.s8 %v4952
        %v5049 = vunpack.c.1.s8 %v4953
        %v5050 = vunpack.c.1.s8 %v4954
        %v5051 = vunpack.c.1.s8 %v4955
        %v5052 = vunpack.c.1.s8 %v4956
        %v5053 = vunpack.c.1.s8 %v4957
        %v5054 = vunpack.c.1.s8 %v4958
        %v5055 = vunpack.c.1.s8 %v4959
        %v5056 = vunpack.c.1.s8 %v4960
        %v5057 = vunpack.c.1.s8 %v4961
        %v5058 = vunpack.c.1.s8 %v4962
        %v5059 = vunpack.c.1.s8 %v4963
        %v5060 = vunpack.c.1.s8 %v4964
        %v5061 = vunpack.c.1.s8 %v4965
        %v5062 = vunpack.c.1.s8 %v4966
        %v5063 = vunpack.c.2.s8 %v4935
        %v5064 = vunpack.c.2.s8 %v4936
        %v5065 = vunpack.c.2.s8 %v4937
        %v5066 = vunpack.c.2.s8 %v4938
        %v5067 = vunpack.c.2.s8 %v4939
        %v5068 = vunpack.c.2.s8 %v4940
        %v5069 = vunpack.c.2.s8 %v4941
        %v5070 = vunpack.c.2.s8 %v4942
        %v5071 = vunpack.c.2.s8 %v4943
        %v5072 = vunpack.c.2.s8 %v4944
        %v5073 = vunpack.c.2.s8 %v4945
        %v5074 = vunpack.c.2.s8 %v4946
        %v5075 = vunpack.c.2.s8 %v4947
        %v5076 = vunpack.c.2.s8 %v4948
        %v5077 = vunpack.c.2.s8 %v4949
        %v5078 = vunpack.c.2.s8 %v4950
        %v5079 = vunpack.c.2.s8 %v4951
        %v5080 = vunpack.c.2.s8 %v4952
        %v5081 = vunpack.c.2.s8 %v4953
        %v5082 = vunpack.c.2.s8 %v4954
        %v5083 = vunpack.c.2.s8 %v4955
        %v5084 = vunpack.c.2.s8 %v4956
        %v5085 = vunpack.c.2.s8 %v4957
        %v5086 = vunpack.c.2.s8 %v4958
        %v5087 = vunpack.c.2.s8 %v4959
        %v5088 = vunpack.c.2.s8 %v4960
        %v5089 = vunpack.c.2.s8 %v4961
        %v5090 = vunpack.c.2.s8 %v4962
        %v5091 = vunpack.c.2.s8 %v4963
        %v5092 = vunpack.c.2.s8 %v4964
        %v5093 = vunpack.c.2.s8 %v4965
        %v5094 = vunpack.c.2.s8 %v4966
        %v5095 = vunpack.c.3.s8 %v4935
        %v5096 = vunpack.c.3.s8 %v4936
        %v5097 = vunpack.c.3.s8 %v4937
        %v5098 = vunpack.c.3.s8 %v4938
        %v5099 = vunpack.c.3.s8 %v4939
        %v5100 = vunpack.c.3.s8 %v4940
        %v5101 = vunpack.c.3.s8 %v4941
        %v5102 = vunpack.c.3.s8 %v4942
        %v5103 = vunpack.c.3.s8 %v4943
        %v5104 = vunpack.c.3.s8 %v4944
        %v5105 = vunpack.c.3.s8 %v4945
        %v5106 = vunpack.c.3.s8 %v4946
        %v5107 = vunpack.c.3.s8 %v4947
        %v5108 = vunpack.c.3.s8 %v4948
        %v5109 = vunpack.c.3.s8 %v4949
        %v5110 = vunpack.c.3.s8 %v4950
        %v5111 = vunpack.c.3.s8 %v4951
        %v5112 = vunpack.c.3.s8 %v4952
        %v5113 = vunpack.c.3.s8 %v4953
        %v5114 = vunpack.c.3.s8 %v4954
        %v5115 = vunpack.c.3.s8 %v4955
        %v5116 = vunpack.c.3.s8 %v4956
        %v5117 = vunpack.c.3.s8 %v4957
        %v5118 = vunpack.c.3.s8 %v4958
        %v5119 = vunpack.c.3.s8 %v4959
        %v5120 = vunpack.c.3.s8 %v4960
        %v5121 = vunpack.c.3.s8 %v4961
        %v5122 = vunpack.c.3.s8 %v4962
        %v5123 = vunpack.c.3.s8 %v4963
        %v5124 = vunpack.c.3.s8 %v4964
        %v5125 = vunpack.c.3.s8 %v4965
        %v5126 = vunpack.c.3.s8 %v4966
        %v5127 = vunpack.c.0.s8 %v4967
        %v5128 = vunpack.c.0.s8 %v4968
        %v5129 = vunpack.c.0.s8 %v4969
        %v5130 = vunpack.c.0.s8 %v4970
        %v5131 = vunpack.c.0.s8 %v4971
        %v5132 = vunpack.c.0.s8 %v4972
        %v5133 = vunpack.c.0.s8 %v4973
        %v5134 = vunpack.c.0.s8 %v4974
        %v5135 = vunpack.c.0.s8 %v4975
        %v5136 = vunpack.c.0.s8 %v4976
        %v5137 = vunpack.c.0.s8 %v4977
        %v5138 = vunpack.c.0.s8 %v4978
        %v5139 = vunpack.c.0.s8 %v4979
        %v5140 = vunpack.c.0.s8 %v4980
        %v5141 = vunpack.c.0.s8 %v4981
        %v5142 = vunpack.c.0.s8 %v4982
        %v5143 = vunpack.c.0.s8 %v4983
        %v5144 = vunpack.c.0.s8 %v4984
        %v5145 = vunpack.c.0.s8 %v4985
        %v5146 = vunpack.c.0.s8 %v4986
        %v5147 = vunpack.c.0.s8 %v4987
        %v5148 = vunpack.c.0.s8 %v4988
        %v5149 = vunpack.c.0.s8 %v4989
        %v5150 = vunpack.c.0.s8 %v4990
        %v5151 = vunpack.c.0.s8 %v4991
        %v5152 = vunpack.c.0.s8 %v4992
        %v5153 = vunpack.c.0.s8 %v4993
        %v5154 = vunpack.c.0.s8 %v4994
        %v5155 = vunpack.c.0.s8 %v4995
        %v5156 = vunpack.c.0.s8 %v4996
        %v5157 = vunpack.c.0.s8 %v4997
        %v5158 = vunpack.c.0.s8 %v4998
        %v5159 = vunpack.c.1.s8 %v4967
        %v5160 = vunpack.c.1.s8 %v4968
        %v5161 = vunpack.c.1.s8 %v4969
        %v5162 = vunpack.c.1.s8 %v4970
        %v5163 = vunpack.c.1.s8 %v4971
        %v5164 = vunpack.c.1.s8 %v4972
        %v5165 = vunpack.c.1.s8 %v4973
        %v5166 = vunpack.c.1.s8 %v4974
        %v5167 = vunpack.c.1.s8 %v4975
        %v5168 = vunpack.c.1.s8 %v4976
        %v5169 = vunpack.c.1.s8 %v4977
        %v5170 = vunpack.c.1.s8 %v4978
        %v5171 = vunpack.c.1.s8 %v4979
        %v5172 = vunpack.c.1.s8 %v4980
        %v5173 = vunpack.c.1.s8 %v4981
        %v5174 = vunpack.c.1.s8 %v4982
        %v5175 = vunpack.c.1.s8 %v4983
        %v5176 = vunpack.c.1.s8 %v4984
        %v5177 = vunpack.c.1.s8 %v4985
        %v5178 = vunpack.c.1.s8 %v4986
        %v5179 = vunpack.c.1.s8 %v4987
        %v5180 = vunpack.c.1.s8 %v4988
        %v5181 = vunpack.c.1.s8 %v4989
        %v5182 = vunpack.c.1.s8 %v4990
        %v5183 = vunpack.c.1.s8 %v4991
        %v5184 = vunpack.c.1.s8 %v4992
        %v5185 = vunpack.c.1.s8 %v4993
        %v5186 = vunpack.c.1.s8 %v4994
        %v5187 = vunpack.c.1.s8 %v4995
        %v5188 = vunpack.c.1.s8 %v4996
        %v5189 = vunpack.c.1.s8 %v4997
        %v5190 = vunpack.c.1.s8 %v4998
        %v5191 = vunpack.c.2.s8 %v4967
        %v5192 = vunpack.c.2.s8 %v4968
        %v5193 = vunpack.c.2.s8 %v4969
        %v5194 = vunpack.c.2.s8 %v4970
        %v5195 = vunpack.c.2.s8 %v4971
        %v5196 = vunpack.c.2.s8 %v4972
        %v5197 = vunpack.c.2.s8 %v4973
        %v5198 = vunpack.c.2.s8 %v4974
        %v5199 = vunpack.c.2.s8 %v4975
        %v5200 = vunpack.c.2.s8 %v4976
        %v5201 = vunpack.c.2.s8 %v4977
        %v5202 = vunpack.c.2.s8 %v4978
        %v5203 = vunpack.c.2.s8 %v4979
        %v5204 = vunpack.c.2.s8 %v4980
        %v5205 = vunpack.c.2.s8 %v4981
        %v5206 = vunpack.c.2.s8 %v4982
        %v5207 = vunpack.c.2.s8 %v4983
        %v5208 = vunpack.c.2.s8 %v4984
        %v5209 = vunpack.c.2.s8 %v4985
        %v5210 = vunpack.c.2.s8 %v4986
        %v5211 = vunpack.c.2.s8 %v4987
        %v5212 = vunpack.c.2.s8 %v4988
        %v5213 = vunpack.c.2.s8 %v4989
        %v5214 = vunpack.c.2.s8 %v4990
        %v5215 = vunpack.c.2.s8 %v4991
        %v5216 = vunpack.c.2.s8 %v4992
        %v5217 = vunpack.c.2.s8 %v4993
        %v5218 = vunpack.c.2.s8 %v4994
        %v5219 = vunpack.c.2.s8 %v4995
        %v5220 = vunpack.c.2.s8 %v4996
        %v5221 = vunpack.c.2.s8 %v4997
        %v5222 = vunpack.c.2.s8 %v4998
        %v5223 = vunpack.c.3.s8 %v4967
        %v5224 = vunpack.c.3.s8 %v4968
        %v5225 = vunpack.c.3.s8 %v4969
        %v5226 = vunpack.c.3.s8 %v4970
        %v5227 = vunpack.c.3.s8 %v4971
        %v5228 = vunpack.c.3.s8 %v4972
        %v5229 = vunpack.c.3.s8 %v4973
        %v5230 = vunpack.c.3.s8 %v4974
        %v5231 = vunpack.c.3.s8 %v4975
        %v5232 = vunpack.c.3.s8 %v4976
        %v5233 = vunpack.c.3.s8 %v4977
        %v5234 = vunpack.c.3.s8 %v4978
        %v5235 = vunpack.c.3.s8 %v4979
        %v5236 = vunpack.c.3.s8 %v4980
        %v5237 = vunpack.c.3.s8 %v4981
        %v5238 = vunpack.c.3.s8 %v4982
        %v5239 = vunpack.c.3.s8 %v4983
        %v5240 = vunpack.c.3.s8 %v4984
        %v5241 = vunpack.c.3.s8 %v4985
        %v5242 = vunpack.c.3.s8 %v4986
        %v5243 = vunpack.c.3.s8 %v4987
        %v5244 = vunpack.c.3.s8 %v4988
        %v5245 = vunpack.c.3.s8 %v4989
        %v5246 = vunpack.c.3.s8 %v4990
        %v5247 = vunpack.c.3.s8 %v4991
        %v5248 = vunpack.c.3.s8 %v4992
        %v5249 = vunpack.c.3.s8 %v4993
        %v5250 = vunpack.c.3.s8 %v4994
        %v5251 = vunpack.c.3.s8 %v4995
        %v5252 = vunpack.c.3.s8 %v4996
        %v5253 = vunpack.c.3.s8 %v4997
        %v5254 = vunpack.c.3.s8 %v4998
        %v5255 = vpack.c.b16 %v5000, %v4999
        %v5256 = vpack.c.b16 %v5002, %v5001
        %v5257 = vpack.c.b8 %v5256, %v5255
        %v5258 = vpack.c.b16 %v5004, %v5003
        %v5259 = vpack.c.b16 %v5006, %v5005
        %v5260 = vpack.c.b8 %v5259, %v5258
        %v5261 = vpack.c.b16 %v5008, %v5007
        %v5262 = vpack.c.b16 %v5010, %v5009
        %v5263 = vpack.c.b8 %v5262, %v5261
        %v5264 = vpack.c.b16 %v5012, %v5011
        %v5265 = vpack.c.b16 %v5014, %v5013
        %v5266 = vpack.c.b8 %v5265, %v5264
        %v5267 = vpack.c.b16 %v5016, %v5015
        %v5268 = vpack.c.b16 %v5018, %v5017
        %v5269 = vpack.c.b8 %v5268, %v5267
        %v5270 = vpack.c.b16 %v5020, %v5019
        %v5271 = vpack.c.b16 %v5022, %v5021
        %v5272 = vpack.c.b8 %v5271, %v5270
        %v5273 = vpack.c.b16 %v5024, %v5023
        %v5274 = vpack.c.b16 %v5026, %v5025
        %v5275 = vpack.c.b8 %v5274, %v5273
        %v5276 = vpack.c.b16 %v5028, %v5027
        %v5277 = vpack.c.b16 %v5030, %v5029
        %v5278 = vpack.c.b8 %v5277, %v5276
        %v5279 = vpack.c.b16 %v5032, %v5031
        %v5280 = vpack.c.b16 %v5034, %v5033
        %v5281 = vpack.c.b8 %v5280, %v5279
        %v5282 = vpack.c.b16 %v5036, %v5035
        %v5283 = vpack.c.b16 %v5038, %v5037
        %v5284 = vpack.c.b8 %v5283, %v5282
        %v5285 = vpack.c.b16 %v5040, %v5039
        %v5286 = vpack.c.b16 %v5042, %v5041
        %v5287 = vpack.c.b8 %v5286, %v5285
        %v5288 = vpack.c.b16 %v5044, %v5043
        %v5289 = vpack.c.b16 %v5046, %v5045
        %v5290 = vpack.c.b8 %v5289, %v5288
        %v5291 = vpack.c.b16 %v5048, %v5047
        %v5292 = vpack.c.b16 %v5050, %v5049
        %v5293 = vpack.c.b8 %v5292, %v5291
        %v5294 = vpack.c.b16 %v5052, %v5051
        %v5295 = vpack.c.b16 %v5054, %v5053
        %v5296 = vpack.c.b8 %v5295, %v5294
        %v5297 = vpack.c.b16 %v5056, %v5055
        %v5298 = vpack.c.b16 %v5058, %v5057
        %v5299 = vpack.c.b8 %v5298, %v5297
        %v5300 = vpack.c.b16 %v5060, %v5059
        %v5301 = vpack.c.b16 %v5062, %v5061
        %v5302 = vpack.c.b8 %v5301, %v5300
        %v5303 = vpack.c.b16 %v5064, %v5063
        %v5304 = vpack.c.b16 %v5066, %v5065
        %v5305 = vpack.c.b8 %v5304, %v5303
        %v5306 = vpack.c.b16 %v5068, %v5067
        %v5307 = vpack.c.b16 %v5070, %v5069
        %v5308 = vpack.c.b8 %v5307, %v5306
        %v5309 = vpack.c.b16 %v5072, %v5071
        %v5310 = vpack.c.b16 %v5074, %v5073
        %v5311 = vpack.c.b8 %v5310, %v5309
        %v5312 = vpack.c.b16 %v5076, %v5075
        %v5313 = vpack.c.b16 %v5078, %v5077
        %v5314 = vpack.c.b8 %v5313, %v5312
        %v5315 = vpack.c.b16 %v5080, %v5079
        %v5316 = vpack.c.b16 %v5082, %v5081
        %v5317 = vpack.c.b8 %v5316, %v5315
        %v5318 = vpack.c.b16 %v5084, %v5083
        %v5319 = vpack.c.b16 %v5086, %v5085
        %v5320 = vpack.c.b8 %v5319, %v5318
        %v5321 = vpack.c.b16 %v5088, %v5087
        %v5322 = vpack.c.b16 %v5090, %v5089
        %v5323 = vpack.c.b8 %v5322, %v5321
        %v5324 = vpack.c.b16 %v5092, %v5091
        %v5325 = vpack.c.b16 %v5094, %v5093
        %v5326 = vpack.c.b8 %v5325, %v5324
        %v5327 = vpack.c.b16 %v5096, %v5095
        %v5328 = vpack.c.b16 %v5098, %v5097
        %v5329 = vpack.c.b8 %v5328, %v5327
        %v5330 = vpack.c.b16 %v5100, %v5099
        %v5331 = vpack.c.b16 %v5102, %v5101
        %v5332 = vpack.c.b8 %v5331, %v5330
        %v5333 = vpack.c.b16 %v5104, %v5103
        %v5334 = vpack.c.b16 %v5106, %v5105
        %v5335 = vpack.c.b8 %v5334, %v5333
        %v5336 = vpack.c.b16 %v5108, %v5107
        %v5337 = vpack.c.b16 %v5110, %v5109
        %v5338 = vpack.c.b8 %v5337, %v5336
        %v5339 = vpack.c.b16 %v5112, %v5111
        %v5340 = vpack.c.b16 %v5114, %v5113
        %v5341 = vpack.c.b8 %v5340, %v5339
        %v5342 = vpack.c.b16 %v5116, %v5115
        %v5343 = vpack.c.b16 %v5118, %v5117
        %v5344 = vpack.c.b8 %v5343, %v5342
        %v5345 = vpack.c.b16 %v5120, %v5119
        %v5346 = vpack.c.b16 %v5122, %v5121
        %v5347 = vpack.c.b8 %v5346, %v5345
        %v5348 = vpack.c.b16 %v5124, %v5123
        %v5349 = vpack.c.b16 %v5126, %v5125
        %v5350 = vpack.c.b8 %v5349, %v5348
        %v5351 = vpack.c.b16 %v5128, %v5127
        %v5352 = vpack.c.b16 %v5130, %v5129
        %v5353 = vpack.c.b8 %v5352, %v5351
        %v5354 = vpack.c.b16 %v5132, %v5131
        %v5355 = vpack.c.b16 %v5134, %v5133
        %v5356 = vpack.c.b8 %v5355, %v5354
        %v5357 = vpack.c.b16 %v5136, %v5135
        %v5358 = vpack.c.b16 %v5138, %v5137
        %v5359 = vpack.c.b8 %v5358, %v5357
        %v5360 = vpack.c.b16 %v5140, %v5139
        %v5361 = vpack.c.b16 %v5142, %v5141
        %v5362 = vpack.c.b8 %v5361, %v5360
        %v5363 = vpack.c.b16 %v5144, %v5143
        %v5364 = vpack.c.b16 %v5146, %v5145
        %v5365 = vpack.c.b8 %v5364, %v5363
        %v5366 = vpack.c.b16 %v5148, %v5147
        %v5367 = vpack.c.b16 %v5150, %v5149
        %v5368 = vpack.c.b8 %v5367, %v5366
        %v5369 = vpack.c.b16 %v5152, %v5151
        %v5370 = vpack.c.b16 %v5154, %v5153
        %v5371 = vpack.c.b8 %v5370, %v5369
        %v5372 = vpack.c.b16 %v5156, %v5155
        %v5373 = vpack.c.b16 %v5158, %v5157
        %v5374 = vpack.c.b8 %v5373, %v5372
        %v5375 = vpack.c.b16 %v5160, %v5159
        %v5376 = vpack.c.b16 %v5162, %v5161
        %v5377 = vpack.c.b8 %v5376, %v5375
        %v5378 = vpack.c.b16 %v5164, %v5163
        %v5379 = vpack.c.b16 %v5166, %v5165
        %v5380 = vpack.c.b8 %v5379, %v5378
        %v5381 = vpack.c.b16 %v5168, %v5167
        %v5382 = vpack.c.b16 %v5170, %v5169
        %v5383 = vpack.c.b8 %v5382, %v5381
        %v5384 = vpack.c.b16 %v5172, %v5171
        %v5385 = vpack.c.b16 %v5174, %v5173
        %v5386 = vpack.c.b8 %v5385, %v5384
        %v5387 = vpack.c.b16 %v5176, %v5175
        %v5388 = vpack.c.b16 %v5178, %v5177
        %v5389 = vpack.c.b8 %v5388, %v5387
        %v5390 = vpack.c.b16 %v5180, %v5179
        %v5391 = vpack.c.b16 %v5182, %v5181
        %v5392 = vpack.c.b8 %v5391, %v5390
        %v5393 = vpack.c.b16 %v5184, %v5183
        %v5394 = vpack.c.b16 %v5186, %v5185
        %v5395 = vpack.c.b8 %v5394, %v5393
        %v5396 = vpack.c.b16 %v5188, %v5187
        %v5397 = vpack.c.b16 %v5190, %v5189
        %v5398 = vpack.c.b8 %v5397, %v5396
        %v5399 = vpack.c.b16 %v5192, %v5191
        %v5400 = vpack.c.b16 %v5194, %v5193
        %v5401 = vpack.c.b8 %v5400, %v5399
        %v5402 = vpack.c.b16 %v5196, %v5195
        %v5403 = vpack.c.b16 %v5198, %v5197
        %v5404 = vpack.c.b8 %v5403, %v5402
        %v5405 = vpack.c.b16 %v5200, %v5199
        %v5406 = vpack.c.b16 %v5202, %v5201
        %v5407 = vpack.c.b8 %v5406, %v5405
        %v5408 = vpack.c.b16 %v5204, %v5203
        %v5409 = vpack.c.b16 %v5206, %v5205
        %v5410 = vpack.c.b8 %v5409, %v5408
        %v5411 = vpack.c.b16 %v5208, %v5207
        %v5412 = vpack.c.b16 %v5210, %v5209
        %v5413 = vpack.c.b8 %v5412, %v5411
        %v5414 = vpack.c.b16 %v5212, %v5211
        %v5415 = vpack.c.b16 %v5214, %v5213
        %v5416 = vpack.c.b8 %v5415, %v5414
        %v5417 = vpack.c.b16 %v5216, %v5215
        %v5418 = vpack.c.b16 %v5218, %v5217
        %v5419 = vpack.c.b8 %v5418, %v5417
        %v5420 = vpack.c.b16 %v5220, %v5219
        %v5421 = vpack.c.b16 %v5222, %v5221
        %v5422 = vpack.c.b8 %v5421, %v5420
        %v5423 = vpack.c.b16 %v5224, %v5223
        %v5424 = vpack.c.b16 %v5226, %v5225
        %v5425 = vpack.c.b8 %v5424, %v5423
        %v5426 = vpack.c.b16 %v5228, %v5227
        %v5427 = vpack.c.b16 %v5230, %v5229
        %v5428 = vpack.c.b8 %v5427, %v5426
        %v5429 = vpack.c.b16 %v5232, %v5231
        %v5430 = vpack.c.b16 %v5234, %v5233
        %v5431 = vpack.c.b8 %v5430, %v5429
        %v5432 = vpack.c.b16 %v5236, %v5235
        %v5433 = vpack.c.b16 %v5238, %v5237
        %v5434 = vpack.c.b8 %v5433, %v5432
        %v5435 = vpack.c.b16 %v5240, %v5239
        %v5436 = vpack.c.b16 %v5242, %v5241
        %v5437 = vpack.c.b8 %v5436, %v5435
        %v5438 = vpack.c.b16 %v5244, %v5243
        %v5439 = vpack.c.b16 %v5246, %v5245
        %v5440 = vpack.c.b8 %v5439, %v5438
        %v5441 = vpack.c.b16 %v5248, %v5247
        %v5442 = vpack.c.b16 %v5250, %v5249
        %v5443 = vpack.c.b8 %v5442, %v5441
        %v5444 = vpack.c.b16 %v5252, %v5251
        %v5445 = vpack.c.b16 %v5254, %v5253
        %v5446 = vpack.c.b8 %v5445, %v5444
        %5447 = vst [vmem:[%s184] sm:$0xff] %v5257
        %5448 = vst [vmem:[%s184 + $0x8] sm:$0xff] %v5260
        %5449 = vst [vmem:[%s184 + $0x10] sm:$0xff] %v5263
        %5450 = vst [vmem:[%s184 + $0x18] sm:$0xff] %v5266
        %5451 = vst [vmem:[%s184 + $0x20] sm:$0xff] %v5269
        %5452 = vst [vmem:[%s184 + $0x28] sm:$0xff] %v5272
        %5453 = vst [vmem:[%s184 + $0x30] sm:$0xff] %v5275
        %5454 = vst [vmem:[%s184 + $0x38] sm:$0xff] %v5278
        %5455 = vst [vmem:[%s184 + $0x40] sm:$0xff] %v5281
        %5456 = vst [vmem:[%s184 + $0x48] sm:$0xff] %v5284
        %5457 = vst [vmem:[%s184 + $0x50] sm:$0xff] %v5287
        %5458 = vst [vmem:[%s184 + $0x58] sm:$0xff] %v5290
        %5459 = vst [vmem:[%s184 + $0x60] sm:$0xff] %v5293
        %5460 = vst [vmem:[%s184 + $0x68] sm:$0xff] %v5296
        %5461 = vst [vmem:[%s184 + $0x70] sm:$0xff] %v5299
        %5462 = vst [vmem:[%s184 + $0x78] sm:$0xff] %v5302
        %5463 = vst [vmem:[%s184 + $0x80] sm:$0xff] %v5305
        %5464 = vst [vmem:[%s184 + $0x88] sm:$0xff] %v5308
        %5465 = vst [vmem:[%s184 + $0x90] sm:$0xff] %v5311
        %5466 = vst [vmem:[%s184 + $0x98] sm:$0xff] %v5314
        %5467 = vst [vmem:[%s184 + $0xa0] sm:$0xff] %v5317
        %5468 = vst [vmem:[%s184 + $0xa8] sm:$0xff] %v5320
        %5469 = vst [vmem:[%s184 + $0xb0] sm:$0xff] %v5323
        %5470 = vst [vmem:[%s184 + $0xb8] sm:$0xff] %v5326
        %5471 = vst [vmem:[%s184 + $0xc0] sm:$0xff] %v5329
        %5472 = vst [vmem:[%s184 + $0xc8] sm:$0xff] %v5332
        %5473 = vst [vmem:[%s184 + $0xd0] sm:$0xff] %v5335
        %5474 = vst [vmem:[%s184 + $0xd8] sm:$0xff] %v5338
        %5475 = vst [vmem:[%s184 + $0xe0] sm:$0xff] %v5341
        %5476 = vst [vmem:[%s184 + $0xe8] sm:$0xff] %v5344
        %5477 = vst [vmem:[%s184 + $0xf0] sm:$0xff] %v5347
        %5478 = vst [vmem:[%s184 + $0xf8] sm:$0xff] %v5350
        %5479 = vst [vmem:[%s184 + $0x100] sm:$0xff] %v5353
        %5480 = vst [vmem:[%s184 + $0x108] sm:$0xff] %v5356
        %5481 = vst [vmem:[%s184 + $0x110] sm:$0xff] %v5359
        %5482 = vst [vmem:[%s184 + $0x118] sm:$0xff] %v5362
        %5483 = vst [vmem:[%s184 + $0x120] sm:$0xff] %v5365
        %5484 = vst [vmem:[%s184 + $0x128] sm:$0xff] %v5368
        %5485 = vst [vmem:[%s184 + $0x130] sm:$0xff] %v5371
        %5486 = vst [vmem:[%s184 + $0x138] sm:$0xff] %v5374
        %5487 = vst [vmem:[%s184 + $0x140] sm:$0xff] %v5377
        %5488 = vst [vmem:[%s184 + $0x148] sm:$0xff] %v5380
        %5489 = vst [vmem:[%s184 + $0x150] sm:$0xff] %v5383
        %5490 = vst [vmem:[%s184 + $0x158] sm:$0xff] %v5386
        %5491 = vst [vmem:[%s184 + $0x160] sm:$0xff] %v5389
        %5492 = vst [vmem:[%s184 + $0x168] sm:$0xff] %v5392
        %5493 = vst [vmem:[%s184 + $0x170] sm:$0xff] %v5395
        %5494 = vst [vmem:[%s184 + $0x178] sm:$0xff] %v5398
        %5495 = vst [vmem:[%s184 + $0x180] sm:$0xff] %v5401
        %5496 = vst [vmem:[%s184 + $0x188] sm:$0xff] %v5404
        %5497 = vst [vmem:[%s184 + $0x190] sm:$0xff] %v5407
        %5498 = vst [vmem:[%s184 + $0x198] sm:$0xff] %v5410
        %5499 = vst [vmem:[%s184 + $0x1a0] sm:$0xff] %v5413
        %5500 = vst [vmem:[%s184 + $0x1a8] sm:$0xff] %v5416
        %5501 = vst [vmem:[%s184 + $0x1b0] sm:$0xff] %v5419
        %5502 = vst [vmem:[%s184 + $0x1b8] sm:$0xff] %v5422
        %5503 = vst [vmem:[%s184 + $0x1c0] sm:$0xff] %v5425
        %5504 = vst [vmem:[%s184 + $0x1c8] sm:$0xff] %v5428
        %5505 = vst [vmem:[%s184 + $0x1d0] sm:$0xff] %v5431
        %5506 = vst [vmem:[%s184 + $0x1d8] sm:$0xff] %v5434
        %5507 = vst [vmem:[%s184 + $0x1e0] sm:$0xff] %v5437
        %5508 = vst [vmem:[%s184 + $0x1e8] sm:$0xff] %v5440
        %5509 = vst [vmem:[%s184 + $0x1f0] sm:$0xff] %v5443
        %5510 = vst [vmem:[%s184 + $0x1f8] sm:$0xff] %v5446
        %s5511 = sand.u32 %s75, 1
        %s5512 = scalar_lea.sflag [#allocation4], %s5511
        %s5513 = sand.u32 %s75, 1
        %s5514 = smul.addr %s5513, 512
        %s5515 = scalar_lea.vmem [#allocation7], %s5514
        // Predicated region
        $region37: #{tpu_custom_call.1} parent=27 // pred_check
          %p5516 = pneg %p85
        $region38: #{tpu_custom_call.1} parent=27 // pred_check_branch
          %5518 = sbr.rel (%p5516) target = $region40
        $region39: #{tpu_custom_call.1} parent=27 // pred_region
          %s5519 = smul.u32 8, %s20
          %s5520 = ssub.s32 50, %s5519
          %p5521 = scmp.lt.s32.totalorder %s5520, 8
          %s5522 = scalar_select %p5521, %s5520, 8
          %s5523 = smul.u32 32, %s5522
          %s5524 = smul.u32 %s5523, 32
          %s5526 = ssub.s32 8192, %s5524
          %5527 = vsyncadd %s5512, %s5526
          %p5528 = scmp.ne.s32.totalorder 0, %s5524
          %s5529 = smul.addr %s5519, 32
          %s5530 = smul.addr %s5529, 32
          %s5531 = scalar_lea.hbm %s2, %s5530
          %s5532 = smul.u32 64, %s5522
          %s5533 = sshll.u32 %s5515, 4
          %s5534 = int_to_ptr.vmem [resolvable:$true] %s5533
          %s5535 = sshll.u32 %s5532, 4
          %5539 = dma.vmem_to_hbm [thread:$0]  (%p5528), %s5534, %s5535, %s5531, %s5512, 1024, 1024, 64
        $region40: #{tpu_custom_call.1} parent=27 // pred_fallthru
          _
      $region28: #{tpu_custom_call.1} parent=5 // pred_fallthru
        _
      %p5540 = scmp.le.s32.totalorder 2, %s15
      // Predicated region
      $region41: #{tpu_custom_call.1} parent=5 // pred_check
        %p5541 = pneg %p5540
      $region42: #{tpu_custom_call.1} parent=5 // pred_check_branch
        %5543 = sbr.rel (%p5541) target = $region44
      $region43: #{tpu_custom_call.1} parent=5 // pred_region
        %s5544 = ssub.s32 %s15, 2
        // Predicated region
        $region45: #{tpu_custom_call.1} parent=43 // pred_check
          %p5545 = pneg %p91
        $region46: #{tpu_custom_call.1} parent=43 // pred_check_branch
          %5547 = sbr.rel (%p5545) target = $region48
        $region47: #{tpu_custom_call.1} parent=43 // pred_region
          %s5548 = sand.u32 %s76, 1
          %s5549 = scalar_lea.sflag [#allocation4], %s5548
          %s5550 = sand.u32 %s76, 1
          %s5551 = smul.addr %s5550, 512
          %s5552 = scalar_lea.vmem [#allocation7], %s5551
          %5553 = dma.done %s5549, 8192
        $region48: #{tpu_custom_call.1} parent=43 // pred_fallthru
          _
      $region44: #{tpu_custom_call.1} parent=5 // pred_fallthru
        _
    $region6: #{tpu_custom_call.1} parent=1 // loop_footer
      %s19 = sadd.s32 1, %s15
    $region7: #{tpu_custom_call.1} parent=1 // loop_footer_branch
      %14 = sbr.rel target = $region3
    $region8: #{tpu_custom_call.1} parent=1 // loop_exit
      _
    %5554 = vsyncpa [#allocation3], 1
    %s5555 = scalar_lea.sflag [#allocation3], 1
    %5556 = vsyncpa %s5555, 1
    %5557 = vsyncpa [#allocation6], 1
    %5558 = vsyncpa [#allocation4], 1
    %s5559 = scalar_lea.sflag [#allocation4], 1
    %5560 = vsyncpa %s5559, 1

</llo_original>
